<compile_context>
chip_gen: v7x
topology: tpu7x:2x2x1
jax: 0.10.0
libtpu: 0.0.40
codegen_flags: <defaults>
</compile_context>

<pallas_src>
import math
import numpy as np
import jax
import jax.numpy as jnp
from jax import lax
from jax.experimental import pallas as pl
from jax.experimental.pallas import tpu as pltpu
from jax.scipy.special import erf as _erf_ref

LANE = 128
_PAD_L = 8                      # sublane-aligned left padding of conv scratch
_PAD_R = 8                      # right padding (>=1; keeps width a mult of 8)
_SQRT1_2 = 0.7071067811865476


# -----------------------------------------------------------------------------
# In-kernel exact GELU (erf via Abramowitz & Stegun 7.1.26, max abs err ~1.5e-7)
# Only uses exp / mul / add / where -> lowers cleanly in Mosaic.
# -----------------------------------------------------------------------------
def _erf_approx(x):
    ax = jnp.abs(x)
    t = pl.reciprocal(1.0 + 0.3275911 * ax, approx=True)      # EUP slot, ~free
    poly = ((((1.061405429 * t - 1.453152027) * t + 1.421413741) * t
             - 0.284496736) * t + 0.254829592) * t
    e = 1.0 - poly * jnp.exp(-ax * ax)
    return jnp.where(x >= 0.0, e, -e)


def _gelu_exact(x):
    return 0.5 * x * (1.0 + _erf_approx(x * _SQRT1_2))


# -----------------------------------------------------------------------------
# Fused kernel: mlp_1 -> depthwise 3x3 -> GELU -> mlp_2   (one batch element)
# -----------------------------------------------------------------------------
def _mix_ffn_kernel(x_ref, w1_ref, b1_ref, wd_ref, bd_ref, w2_ref, b2_ref,
                    o_ref, hpad_ref):
    Hp2, Wp, Hd = hpad_ref.shape
    H = Hp2 - 2
    HW = x_ref.shape[1]
    W = HW // H

    # ---- mlp_1: (HW, E) @ (E, Hd); bf16 operands, f32 accumulation ----------
    h = jnp.dot(x_ref[0].astype(jnp.bfloat16), w1_ref[...],
                preferred_element_type=jnp.float32)
    h = h + b1_ref[...]

    # ---- depthwise 3x3 conv, padding=1 ---------------------------------------
    # Zero-padded VMEM scratch; interior store is sublane-aligned (offset 8).
    hpad_ref[...] = jnp.zeros_like(hpad_ref)
    hpad_ref[1:H + 1, _PAD_L:_PAD_L + W, :] = h.reshape(H, W, Hd)

    acc = jnp.zeros((H, W, Hd), jnp.float32)
    for dy in range(3):
        for dx in range(3):
            t = dy * 3 + dx
            w_tap = wd_ref[t:t + 1, :].reshape(1, 1, Hd)
            shifted = hpad_ref[dy:dy + H,
                               _PAD_L - 1 + dx:_PAD_L - 1 + dx + W, :]
            acc = acc + shifted * w_tap
    acc = acc + bd_ref[...].reshape(1, 1, Hd)

    # ---- exact GELU ----------------------------------------------------------
    g = _gelu_exact(acc)

    # ---- mlp_2: (HW, Hd) @ (Hd, Ep); Ep lane-padded -> dense (unmasked) store
    out = jnp.dot(g.reshape(HW, Hd).astype(jnp.bfloat16), w2_ref[...],
                  preferred_element_type=jnp.float32)
    o_ref[0] = out + b2_ref[...]


# -----------------------------------------------------------------------------
# One-time weight prep (hoisted off the forward path)
# -----------------------------------------------------------------------------
def prepare_params(params):
    Hd, E = params["w1"].shape
    Ep = pl.cdiv(E, LANE) * LANE
    w1 = jnp.transpose(params["w1"]).astype(jnp.bfloat16)            # (E, Hd)
    b1 = params["b1"].reshape(1, Hd).astype(jnp.float32)
    wd = params["wd"].reshape(Hd, 9).T.astype(jnp.float32)           # (9, Hd)
    bd = params["bd"].reshape(1, Hd).astype(jnp.float32)
    w2 = jnp.transpose(params["w2"])                                 # (Hd, E)
    w2 = jnp.pad(w2, ((0, 0), (0, Ep - E))).astype(jnp.bfloat16)     # (Hd, Ep)
    b2 = jnp.pad(params["b2"], (0, Ep - E)).reshape(1, Ep).astype(jnp.float32)
    return {"w1": w1, "b1": b1, "wd": wd, "bd": bd, "w2": w2, "b2": b2,
            "E": E, "Hd": Hd, "Ep": Ep}


# -----------------------------------------------------------------------------
# Forward wrapper
# -----------------------------------------------------------------------------
def mix_ffn2d_forward(x_nhwc, prep):
    N, H, W, E = x_nhwc.shape
    Hd, Ep = prep["Hd"], prep["Ep"]
    HW = H * W
    Wp = _PAD_L + W + _PAD_R
    x_flat = x_nhwc.reshape(N, HW, E)

    out = pl.pallas_call(
        _mix_ffn_kernel,
        out_shape=jax.ShapeDtypeStruct((N, HW, Ep), jnp.float32),
        grid_spec=pltpu.PrefetchScalarGridSpec(
            num_scalar_prefetch=0,
            grid=(N,),
            in_specs=[
                pl.BlockSpec((1, HW, E), lambda n: (n, 0, 0)),   # x
                pl.BlockSpec((E, Hd), lambda n: (0, 0)),         # w1 (bf16)
                pl.BlockSpec((1, Hd), lambda n: (0, 0)),         # b1
                pl.BlockSpec((9, Hd), lambda n: (0, 0)),         # depthwise w
                pl.BlockSpec((1, Hd), lambda n: (0, 0)),         # depthwise b
                pl.BlockSpec((Hd, Ep), lambda n: (0, 0)),        # w2 (bf16)
                pl.BlockSpec((1, Ep), lambda n: (0, 0)),         # b2
            ],
            out_specs=pl.BlockSpec((1, HW, Ep), lambda n: (n, 0, 0)),
            scratch_shapes=[pltpu.VMEM((H + 2, Wp, Hd), jnp.float32)],
        ),
        compiler_params=pltpu.CompilerParams(
            dimension_semantics=("parallel",),
            vmem_limit_bytes=64 * 1024 * 1024,
        ),
    )(x_flat, prep["w1"], prep["b1"], prep["wd"], prep["bd"],
      prep["w2"], prep["b2"])

    # slice off the lane padding (glue), back to (N, H, W, E)
    return out[..., :prep["E"]].reshape(N, H, W, prep["E"])


# -----------------------------------------------------------------------------
# Deterministic parameter init (PyTorch-layout shapes)
# -----------------------------------------------------------------------------
def init_params(key, embed_dim, hidden_dim):
    ks = jax.random.split(key, 6)
    w1 = jax.random.normal(ks[0], (hidden_dim, embed_dim), jnp.float32) \
        * math.sqrt(1.0 / embed_dim)
    b1 = 0.1 * jax.random.normal(ks[1], (hidden_dim,), jnp.float32)
    wd = jax.random.normal(ks[2], (hidden_dim, 1, 3, 3), jnp.float32) / 3.0
    bd = 0.1 * jax.random.normal(ks[3], (hidden_dim,), jnp.float32)
    w2 = jax.random.normal(ks[4], (embed_dim, hidden_dim), jnp.float32) \
        * math.sqrt(1.0 / hidden_dim)
    b2 = 0.1 * jax.random.normal(ks[5], (embed_dim,), jnp.float32)
    return {"w1": w1, "b1": b1, "wd": wd, "bd": bd, "w2": w2, "b2": b2}


# -----------------------------------------------------------------------------
# Pure-JAX reference (exact GELU, HIGHEST precision) for correctness check
# -----------------------------------------------------------------------------
def reference_forward(x, params):
    Hd = params["w1"].shape[0]
    h = jnp.einsum("nhwe,fe->nhwf", x, params["w1"],
                   precision=lax.Precision.HIGHEST) + params["b1"]
    h_nchw = jnp.transpose(h, (0, 3, 1, 2))
    y = lax.conv_general_dilated(
        h_nchw, params["wd"], (1, 1), ((1, 1), (1, 1)),
        dimension_numbers=("NCHW", "OIHW", "NCHW"),
        feature_group_count=Hd, precision=lax.Precision.HIGHEST)
    y = y + params["bd"].reshape(1, -1, 1, 1)
    y = jnp.transpose(y, (0, 2, 3, 1))
    y = 0.5 * y * (1.0 + _erf_ref(y * _SQRT1_2))
    out = jnp.einsum("nhwf,of->nhwo", y, params["w2"],
                     precision=lax.Precision.HIGHEST) + params["b2"]
    return out


if __name__ == "__main__":
    N, H, W = 2, 16, 16
    EMBED_DIM, HIDDEN_DIM = 32, 128

    key = jax.random.PRNGKey(0)
    kx, kp = jax.random.split(key)
    x = jax.random.normal(kx, (N, H, W, EMBED_DIM), jnp.float32)
    params = init_params(kp, EMBED_DIM, HIDDEN_DIM)
    prep = prepare_params(params)          # weight prep hoisted (done once)

    out = jax.block_until_ready(mix_ffn2d_forward(x, prep))
    assert out.shape == (N, H, W, EMBED_DIM)

    ref = jax.block_until_ready(reference_forward(x, params))
    np.testing.assert_allclose(np.asarray(out), np.asarray(ref),
                               rtol=2e-2, atol=2e-2)
    print("KERNEL_OK")
</pallas_src>

<mosaic_0001>
module attributes {stable_mosaic.version = 11 : i64} {
  func.func @_mix_ffn_kernel(%arg0: i32, %arg1: memref<1x256x32xf32, #tpu.memory_space<vmem>>, %arg2: memref<32x128xbf16, #tpu.memory_space<vmem>>, %arg3: memref<1x128xf32, #tpu.memory_space<vmem>>, %arg4: memref<9x128xf32, #tpu.memory_space<vmem>>, %arg5: memref<1x128xf32, #tpu.memory_space<vmem>>, %arg6: memref<128x128xbf16, #tpu.memory_space<vmem>>, %arg7: memref<1x128xf32, #tpu.memory_space<vmem>>, %arg8: memref<1x256x128xf32, #tpu.memory_space<vmem>>, %arg9: memref<18x32x128xf32, #tpu.memory_space<vmem>>) attributes {dimension_semantics = [#tpu.dimension_semantics<parallel>], iteration_bounds = array<i64: 2>, scalar_prefetch = 0 : i64, scratch_operands = 1 : i64, tpu.core_type = #tpu.core_type<tc>, window_params = [{transform_indices = @transform_0, window_bounds = array<i64: 1, 256, 32>}, {pipeline_mode = #tpu.pipeline_mode<synchronous>, transform_indices = @transform_1, window_bounds = array<i64: 32, 128>}, {pipeline_mode = #tpu.pipeline_mode<synchronous>, transform_indices = @transform_2, window_bounds = array<i64: 1, 128>}, {pipeline_mode = #tpu.pipeline_mode<synchronous>, transform_indices = @transform_3, window_bounds = array<i64: 9, 128>}, {pipeline_mode = #tpu.pipeline_mode<synchronous>, transform_indices = @transform_4, window_bounds = array<i64: 1, 128>}, {pipeline_mode = #tpu.pipeline_mode<synchronous>, transform_indices = @transform_5, window_bounds = array<i64: 128, 128>}, {pipeline_mode = #tpu.pipeline_mode<synchronous>, transform_indices = @transform_6, window_bounds = array<i64: 1, 128>}, {transform_indices = @transform_7, window_bounds = array<i64: 1, 256, 128>}]} {
    %c0 = arith.constant 0 : index
    %c0_0 = arith.constant 0 : index
    %c0_1 = arith.constant 0 : index
    %0 = vector.load %arg1[%c0, %c0_0, %c0_1] : memref<1x256x32xf32, #tpu.memory_space<vmem>>, vector<1x256x32xf32>
    %1 = vector.shape_cast %0 : vector<1x256x32xf32> to vector<256x32xf32>
    %2 = arith.truncf %1 : vector<256x32xf32> to vector<256x32xbf16>
    %c0_2 = arith.constant 0 : index
    %c0_3 = arith.constant 0 : index
    %3 = vector.load %arg2[%c0_2, %c0_3] : memref<32x128xbf16, #tpu.memory_space<vmem>>, vector<32x128xbf16>
    %cst = arith.constant dense<0.000000e+00> : vector<256x128xf32>
    %4 = tpu.matmul %2, %3, %cst {dimension_numbers = #tpu.dot_dimension_numbers<[1], [0], [0], [1], [0, 0, 1, 1], [], []>} : vector<256x32xbf16>, vector<32x128xbf16>, vector<256x128xf32> -> vector<256x128xf32>
    %c0_4 = arith.constant 0 : index
    %c0_5 = arith.constant 0 : index
    %5 = vector.load %arg3[%c0_4, %c0_5] : memref<1x128xf32, #tpu.memory_space<vmem>>, vector<1x128xf32>
    %6 = vector.broadcast %5 : vector<1x128xf32> to vector<256x128xf32>
    %7 = arith.addf %4, %6 : vector<256x128xf32>
    %cst_6 = arith.constant 0.000000e+00 : f32
    %8 = vector.broadcast %cst_6 : f32 to vector<18x32x128xf32>
    %c0_7 = arith.constant 0 : index
    %c0_8 = arith.constant 0 : index
    %c0_9 = arith.constant 0 : index
    %9 = vector.load %arg9[%c0_7, %c0_8, %c0_9] : memref<18x32x128xf32, #tpu.memory_space<vmem>>, vector<18x32x128xf32>
    tpu.vector_store %arg9[%c0_7, %c0_8, %c0_9], %8 {strides = array<i32>} : memref<18x32x128xf32, #tpu.memory_space<vmem>>, vector<18x32x128xf32>,
    %10 = vector.shape_cast %7 : vector<256x128xf32> to vector<16x16x128xf32>
    %c1 = arith.constant 1 : index
    %c8 = arith.constant 8 : index
    %c0_10 = arith.constant 0 : index
    %11 = vector.load %arg9[%c1, %c8, %c0_10] : memref<18x32x128xf32, #tpu.memory_space<vmem>>, vector<16x16x128xf32>
    tpu.vector_store %arg9[%c1, %c8, %c0_10], %10 {strides = array<i32>} : memref<18x32x128xf32, #tpu.memory_space<vmem>>, vector<16x16x128xf32>,
    %cst_11 = arith.constant 0.000000e+00 : f32
    %12 = vector.broadcast %cst_11 : f32 to vector<16x16x128xf32>
    %c0_12 = arith.constant 0 : index
    %c0_13 = arith.constant 0 : index
    %13 = vector.load %arg4[%c0_12, %c0_13] : memref<9x128xf32, #tpu.memory_space<vmem>>, vector<1x128xf32>
    %14 = vector.shape_cast %13 : vector<1x128xf32> to vector<1x1x128xf32>
    %c0_14 = arith.constant 0 : index
    %c7 = arith.constant 7 : index
    %c0_15 = arith.constant 0 : index
    %15 = vector.load %arg9[%c0_14, %c7, %c0_15] : memref<18x32x128xf32, #tpu.memory_space<vmem>>, vector<16x16x128xf32>
    %16 = vector.broadcast %14 : vector<1x1x128xf32> to vector<16x16x128xf32>
    %17 = arith.mulf %15, %16 : vector<16x16x128xf32>
    %18 = arith.addf %12, %17 : vector<16x16x128xf32>
    %c1_16 = arith.constant 1 : index
    %c0_17 = arith.constant 0 : index
    %19 = vector.load %arg4[%c1_16, %c0_17] : memref<9x128xf32, #tpu.memory_space<vmem>>, vector<1x128xf32>
    %20 = vector.shape_cast %19 : vector<1x128xf32> to vector<1x1x128xf32>
    %c0_18 = arith.constant 0 : index
    %c8_19 = arith.constant 8 : index
    %c0_20 = arith.constant 0 : index
    %21 = vector.load %arg9[%c0_18, %c8_19, %c0_20] : memref<18x32x128xf32, #tpu.memory_space<vmem>>, vector<16x16x128xf32>
    %22 = vector.broadcast %20 : vector<1x1x128xf32> to vector<16x16x128xf32>
    %23 = arith.mulf %21, %22 : vector<16x16x128xf32>
    %24 = arith.addf %18, %23 : vector<16x16x128xf32>
    %c2 = arith.constant 2 : index
    %c0_21 = arith.constant 0 : index
    %25 = vector.load %arg4[%c2, %c0_21] : memref<9x128xf32, #tpu.memory_space<vmem>>, vector<1x128xf32>
    %26 = vector.shape_cast %25 : vector<1x128xf32> to vector<1x1x128xf32>
    %c0_22 = arith.constant 0 : index
    %c9 = arith.constant 9 : index
    %c0_23 = arith.constant 0 : index
    %27 = vector.load %arg9[%c0_22, %c9, %c0_23] : memref<18x32x128xf32, #tpu.memory_space<vmem>>, vector<16x16x128xf32>
    %28 = vector.broadcast %26 : vector<1x1x128xf32> to vector<16x16x128xf32>
    %29 = arith.mulf %27, %28 : vector<16x16x128xf32>
    %30 = arith.addf %24, %29 : vector<16x16x128xf32>
    %c3 = arith.constant 3 : index
    %c0_24 = arith.constant 0 : index
    %31 = vector.load %arg4[%c3, %c0_24] : memref<9x128xf32, #tpu.memory_space<vmem>>, vector<1x128xf32>
    %32 = vector.shape_cast %31 : vector<1x128xf32> to vector<1x1x128xf32>
    %c1_25 = arith.constant 1 : index
    %c7_26 = arith.constant 7 : index
    %c0_27 = arith.constant 0 : index
    %33 = vector.load %arg9[%c1_25, %c7_26, %c0_27] : memref<18x32x128xf32, #tpu.memory_space<vmem>>, vector<16x16x128xf32>
    %34 = vector.broadcast %32 : vector<1x1x128xf32> to vector<16x16x128xf32>
    %35 = arith.mulf %33, %34 : vector<16x16x128xf32>
    %36 = arith.addf %30, %35 : vector<16x16x128xf32>
    %c4 = arith.constant 4 : index
    %c0_28 = arith.constant 0 : index
    %37 = vector.load %arg4[%c4, %c0_28] : memref<9x128xf32, #tpu.memory_space<vmem>>, vector<1x128xf32>
    %38 = vector.shape_cast %37 : vector<1x128xf32> to vector<1x1x128xf32>
    %c1_29 = arith.constant 1 : index
    %c8_30 = arith.constant 8 : index
    %c0_31 = arith.constant 0 : index
    %39 = vector.load %arg9[%c1_29, %c8_30, %c0_31] : memref<18x32x128xf32, #tpu.memory_space<vmem>>, vector<16x16x128xf32>
    %40 = vector.broadcast %38 : vector<1x1x128xf32> to vector<16x16x128xf32>
    %41 = arith.mulf %39, %40 : vector<16x16x128xf32>
    %42 = arith.addf %36, %41 : vector<16x16x128xf32>
    %c5 = arith.constant 5 : index
    %c0_32 = arith.constant 0 : index
    %43 = vector.load %arg4[%c5, %c0_32] : memref<9x128xf32, #tpu.memory_space<vmem>>, vector<1x128xf32>
    %44 = vector.shape_cast %43 : vector<1x128xf32> to vector<1x1x128xf32>
    %c1_33 = arith.constant 1 : index
    %c9_34 = arith.constant 9 : index
    %c0_35 = arith.constant 0 : index
    %45 = vector.load %arg9[%c1_33, %c9_34, %c0_35] : memref<18x32x128xf32, #tpu.memory_space<vmem>>, vector<16x16x128xf32>
    %46 = vector.broadcast %44 : vector<1x1x128xf32> to vector<16x16x128xf32>
    %47 = arith.mulf %45, %46 : vector<16x16x128xf32>
    %48 = arith.addf %42, %47 : vector<16x16x128xf32>
    %c6 = arith.constant 6 : index
    %c0_36 = arith.constant 0 : index
    %49 = vector.load %arg4[%c6, %c0_36] : memref<9x128xf32, #tpu.memory_space<vmem>>, vector<1x128xf32>
    %50 = vector.shape_cast %49 : vector<1x128xf32> to vector<1x1x128xf32>
    %c2_37 = arith.constant 2 : index
    %c7_38 = arith.constant 7 : index
    %c0_39 = arith.constant 0 : index
    %51 = vector.load %arg9[%c2_37, %c7_38, %c0_39] : memref<18x32x128xf32, #tpu.memory_space<vmem>>, vector<16x16x128xf32>
    %52 = vector.broadcast %50 : vector<1x1x128xf32> to vector<16x16x128xf32>
    %53 = arith.mulf %51, %52 : vector<16x16x128xf32>
    %54 = arith.addf %48, %53 : vector<16x16x128xf32>
    %c7_40 = arith.constant 7 : index
    %c0_41 = arith.constant 0 : index
    %55 = vector.load %arg4[%c7_40, %c0_41] : memref<9x128xf32, #tpu.memory_space<vmem>>, vector<1x128xf32>
    %56 = vector.shape_cast %55 : vector<1x128xf32> to vector<1x1x128xf32>
    %c2_42 = arith.constant 2 : index
    %c8_43 = arith.constant 8 : index
    %c0_44 = arith.constant 0 : index
    %57 = vector.load %arg9[%c2_42, %c8_43, %c0_44] : memref<18x32x128xf32, #tpu.memory_space<vmem>>, vector<16x16x128xf32>
    %58 = vector.broadcast %56 : vector<1x1x128xf32> to vector<16x16x128xf32>
    %59 = arith.mulf %57, %58 : vector<16x16x128xf32>
    %60 = arith.addf %54, %59 : vector<16x16x128xf32>
    %c8_45 = arith.constant 8 : index
    %c0_46 = arith.constant 0 : index
    %61 = vector.load %arg4[%c8_45, %c0_46] : memref<9x128xf32, #tpu.memory_space<vmem>>, vector<1x128xf32>
    %62 = vector.shape_cast %61 : vector<1x128xf32> to vector<1x1x128xf32>
    %c2_47 = arith.constant 2 : index
    %c9_48 = arith.constant 9 : index
    %c0_49 = arith.constant 0 : index
    %63 = vector.load %arg9[%c2_47, %c9_48, %c0_49] : memref<18x32x128xf32, #tpu.memory_space<vmem>>, vector<16x16x128xf32>
    %64 = vector.broadcast %62 : vector<1x1x128xf32> to vector<16x16x128xf32>
    %65 = arith.mulf %63, %64 : vector<16x16x128xf32>
    %66 = arith.addf %60, %65 : vector<16x16x128xf32>
    %c0_50 = arith.constant 0 : index
    %c0_51 = arith.constant 0 : index
    %67 = vector.load %arg5[%c0_50, %c0_51] : memref<1x128xf32, #tpu.memory_space<vmem>>, vector<1x128xf32>
    %68 = vector.shape_cast %67 : vector<1x128xf32> to vector<1x1x128xf32>
    %69 = vector.broadcast %68 : vector<1x1x128xf32> to vector<16x16x128xf32>
    %70 = arith.addf %66, %69 : vector<16x16x128xf32>
    %cst_52 = arith.constant 5.000000e-01 : f32
    %71 = vector.broadcast %cst_52 : f32 to vector<16x16x128xf32>
    %72 = arith.mulf %71, %70 : vector<16x16x128xf32>
    %cst_53 = arith.constant 0.707106769 : f32
    %73 = vector.broadcast %cst_53 : f32 to vector<16x16x128xf32>
    %74 = arith.mulf %70, %73 : vector<16x16x128xf32>
    %75 = math.absf %74 : vector<16x16x128xf32>
    %cst_54 = arith.constant 0.327591091 : f32
    %76 = vector.broadcast %cst_54 : f32 to vector<16x16x128xf32>
    %77 = arith.mulf %76, %75 : vector<16x16x128xf32>
    %cst_55 = arith.constant 1.000000e+00 : f32
    %78 = vector.broadcast %cst_55 : f32 to vector<16x16x128xf32>
    %79 = arith.addf %78, %77 : vector<16x16x128xf32>
    %80 = tpu.reciprocal %79 {approx = true} : vector<16x16x128xf32> -> vector<16x16x128xf32>
    %cst_56 = arith.constant 1.06140542 : f32
    %81 = vector.broadcast %cst_56 : f32 to vector<16x16x128xf32>
    %82 = arith.mulf %81, %80 : vector<16x16x128xf32>
    %cst_57 = arith.constant 1.45315206 : f32
    %83 = vector.broadcast %cst_57 : f32 to vector<16x16x128xf32>
    %84 = arith.subf %82, %83 : vector<16x16x128xf32>
    %85 = arith.mulf %84, %80 : vector<16x16x128xf32>
    %cst_58 = arith.constant 1.42141378 : f32
    %86 = vector.broadcast %cst_58 : f32 to vector<16x16x128xf32>
    %87 = arith.addf %85, %86 : vector<16x16x128xf32>
    %88 = arith.mulf %87, %80 : vector<16x16x128xf32>
    %cst_59 = arith.constant 0.284496725 : f32
    %89 = vector.broadcast %cst_59 : f32 to vector<16x16x128xf32>
    %90 = arith.subf %88, %89 : vector<16x16x128xf32>
    %91 = arith.mulf %90, %80 : vector<16x16x128xf32>
    %cst_60 = arith.constant 0.254829586 : f32
    %92 = vector.broadcast %cst_60 : f32 to vector<16x16x128xf32>
    %93 = arith.addf %91, %92 : vector<16x16x128xf32>
    %94 = arith.mulf %93, %80 : vector<16x16x128xf32>
    %cst_61 = arith.constant 0.000000e+00 : f32
    %95 = vector.broadcast %cst_61 : f32 to vector<16x16x128xf32>
    %96 = arith.subf %95, %75 : vector<16x16x128xf32>
    %97 = arith.mulf %96, %75 : vector<16x16x128xf32>
    %98 = math.exp %97 : vector<16x16x128xf32>
    %99 = arith.mulf %94, %98 : vector<16x16x128xf32>
    %cst_62 = arith.constant 1.000000e+00 : f32
    %100 = vector.broadcast %cst_62 : f32 to vector<16x16x128xf32>
    %101 = arith.subf %100, %99 : vector<16x16x128xf32>
    %cst_63 = arith.constant 0.000000e+00 : f32
    %102 = vector.broadcast %cst_63 : f32 to vector<16x16x128xf32>
    %103 = arith.cmpf oge, %74, %102 : vector<16x16x128xf32>
    %cst_64 = arith.constant 0.000000e+00 : f32
    %104 = vector.broadcast %cst_64 : f32 to vector<16x16x128xf32>
    %105 = arith.subf %104, %101 : vector<16x16x128xf32>
    %106 = arith.select %103, %101, %105 : vector<16x16x128xi1>, vector<16x16x128xf32>
    %cst_65 = arith.constant 1.000000e+00 : f32
    %107 = vector.broadcast %cst_65 : f32 to vector<16x16x128xf32>
    %108 = arith.addf %107, %106 : vector<16x16x128xf32>
    %109 = arith.mulf %72, %108 : vector<16x16x128xf32>
    %110 = vector.shape_cast %109 : vector<16x16x128xf32> to vector<256x128xf32>
    %111 = arith.truncf %110 : vector<256x128xf32> to vector<256x128xbf16>
    %c0_66 = arith.constant 0 : index
    %c0_67 = arith.constant 0 : index
    %112 = vector.load %arg6[%c0_66, %c0_67] : memref<128x128xbf16, #tpu.memory_space<vmem>>, vector<128x128xbf16>
    %cst_68 = arith.constant dense<0.000000e+00> : vector<256x128xf32>
    %113 = tpu.matmul %111, %112, %cst_68 {dimension_numbers = #tpu.dot_dimension_numbers<[1], [0], [0], [1], [0, 0, 1, 1], [], []>} : vector<256x128xbf16>, vector<128x128xbf16>, vector<256x128xf32> -> vector<256x128xf32>
    %c0_69 = arith.constant 0 : index
    %c0_70 = arith.constant 0 : index
    %114 = vector.load %arg7[%c0_69, %c0_70] : memref<1x128xf32, #tpu.memory_space<vmem>>, vector<1x128xf32>
    %115 = vector.broadcast %114 : vector<1x128xf32> to vector<256x128xf32>
    %116 = arith.addf %113, %115 : vector<256x128xf32>
    %c0_71 = arith.constant 0 : index
    %c0_72 = arith.constant 0 : index
    %c0_73 = arith.constant 0 : index
    %117 = vector.load %arg8[%c0_71, %c0_72, %c0_73] : memref<1x256x128xf32, #tpu.memory_space<vmem>>, vector<1x256x128xf32>
    %118 = vector.shape_cast %117 : vector<1x256x128xf32> to vector<256x128xf32>
    %119 = vector.shape_cast %116 : vector<256x128xf32> to vector<1x256x128xf32>
    tpu.vector_store %arg8[%c0_71, %c0_72, %c0_73], %119 {strides = array<i32>} : memref<1x256x128xf32, #tpu.memory_space<vmem>>, vector<1x256x128xf32>,
    return
  }
  func.func @transform_0(%arg0: i32) -> (i32, i32, i32) {
    %c0_i32 = arith.constant 0 : i32
    %c0_i32_0 = arith.constant 0 : i32
    %c0_i32_1 = arith.constant 0 : i32
    return %arg0, %c0_i32, %c0_i32_0 : i32, i32, i32
  }
  func.func @transform_1(%arg0: i32) -> (i32, i32) {
    %c0_i32 = arith.constant 0 : i32
    %c0_i32_0 = arith.constant 0 : i32
    %c0_i32_1 = arith.constant 0 : i32
    return %c0_i32, %c0_i32_0 : i32, i32
  }
  func.func @transform_2(%arg0: i32) -> (i32, i32) {
    %c0_i32 = arith.constant 0 : i32
    %c0_i32_0 = arith.constant 0 : i32
    %c0_i32_1 = arith.constant 0 : i32
    return %c0_i32, %c0_i32_0 : i32, i32
  }
  func.func @transform_3(%arg0: i32) -> (i32, i32) {
    %c0_i32 = arith.constant 0 : i32
    %c0_i32_0 = arith.constant 0 : i32
    %c0_i32_1 = arith.constant 0 : i32
    return %c0_i32, %c0_i32_0 : i32, i32
  }
  func.func @transform_4(%arg0: i32) -> (i32, i32) {
    %c0_i32 = arith.constant 0 : i32
    %c0_i32_0 = arith.constant 0 : i32
    %c0_i32_1 = arith.constant 0 : i32
    return %c0_i32, %c0_i32_0 : i32, i32
  }
  func.func @transform_5(%arg0: i32) -> (i32, i32) {
    %c0_i32 = arith.constant 0 : i32
    %c0_i32_0 = arith.constant 0 : i32
    %c0_i32_1 = arith.constant 0 : i32
    return %c0_i32, %c0_i32_0 : i32, i32
  }
  func.func @transform_6(%arg0: i32) -> (i32, i32) {
    %c0_i32 = arith.constant 0 : i32
    %c0_i32_0 = arith.constant 0 : i32
    %c0_i32_1 = arith.constant 0 : i32
    return %c0_i32, %c0_i32_0 : i32, i32
  }
  func.func @transform_7(%arg0: i32) -> (i32, i32, i32) {
    %c0_i32 = arith.constant 0 : i32
    %c0_i32_0 = arith.constant 0 : i32
    %c0_i32_1 = arith.constant 0 : i32
    return %arg0, %c0_i32, %c0_i32_0 : i32, i32, i32
  }
}

</mosaic_0001>

<llo_original>
// kernel: tpu_custom_call.1
$region0: #{tpu_custom_call.1}
  #allocation0 [shape = 'u32[]', space=smem, size = 0x4, offset = 0x4, fixed_abs, tag = 'smem constant byte address 0x4 - core index']
  #allocation1 [shape = 'u32[144,128]{1,0:T(1,128)}', space=vmem, size = 0x12000, scoped, tag = 'internal scratch']
  #allocation2 [shape = 'f32[18,32,128]{2,1,0:T(8,128)}', space=vmem, size = 0x48000, scoped, tag = 'scratch operand']
  %s0 = inlined_call_operand.hbm [shape: f32[2,256,32], index: 0, kind: input, shape index: {}]
  %s1 = inlined_call_operand.hbm [shape: bf16[32,128], index: 1, kind: input, shape index: {}]
  %s2 = inlined_call_operand.hbm [shape: f32[1,128], index: 2, kind: input, shape index: {}]
  %s3 = inlined_call_operand.hbm [shape: f32[9,128], index: 3, kind: input, shape index: {}]
  %s4 = inlined_call_operand.hbm [shape: f32[1,128], index: 4, kind: input, shape index: {}]
  %s5 = inlined_call_operand.hbm [shape: bf16[128,128], index: 5, kind: input, shape index: {}]
  %s6 = inlined_call_operand.hbm [shape: f32[1,128], index: 6, kind: input, shape index: {}]
  %s7 = inlined_call_operand.hbm [shape: f32[2,256,128], index: 7, kind: output, shape index: {}]
  %s8 = sld [smem:[#allocation0]]
  $region89: #{tpu_custom_call.1} parent=0
    _
  %s10 = ssub.s32 1, %s8
  %s11 = scalar_select 0, %s10, %s8
  $region1: #{tpu_custom_call.1} parent=0
    #allocation3 [shape = 'u8[262144]{0}', space=vmem, size = 0x40000, scoped, tag = 'input window, operand 0']
    #allocation4 [shape = 's32[2]{0}', space=sflag, size = 0x8, scoped, tag = 'scoped memory for tpu_custom_call.1']
    #allocation5 [shape = 's32[2]{0}', space=sflag, size = 0x8, scoped, tag = 'scoped memory for tpu_custom_call.1']
    #allocation6 [shape = 'u8[8192]{0}', space=vmem, size = 0x2000, scoped, tag = 'input window, operand 1, single buffered']
    #allocation7 [shape = 's32[1]{0}', space=sflag, size = 0x4, scoped, tag = 'scoped memory for tpu_custom_call.1']
    #allocation8 [shape = 'u8[512]{0}', space=vmem, size = 0x400, scoped, tag = 'input window, operand 2, single buffered']
    #allocation9 [shape = 'u8[8192]{0}', space=vmem, size = 0x2000, scoped, tag = 'input window, operand 3, single buffered']
    #allocation10 [shape = 's32[1]{0}', space=sflag, size = 0x4, scoped, tag = 'scoped memory for tpu_custom_call.1']
    #allocation11 [shape = 'u8[512]{0}', space=vmem, size = 0x400, scoped, tag = 'input window, operand 4, single buffered']
    #allocation12 [shape = 'u8[32768]{0}', space=vmem, size = 0x8000, scoped, tag = 'input window, operand 5, single buffered']
    #allocation13 [shape = 's32[1]{0}', space=sflag, size = 0x4, scoped, tag = 'scoped memory for tpu_custom_call.1']
    #allocation14 [shape = 'u8[512]{0}', space=vmem, size = 0x400, scoped, tag = 'input window, operand 6, single buffered']
    #allocation15 [shape = 'u8[262144]{0}', space=vmem, size = 0x40000, scoped, tag = 'output window, operand 0']
    %12 = vsyncpa [#allocation4], 0
    %s13 = scalar_lea.sflag [#allocation4], 1
    %14 = vsyncpa %s13, 0
    %15 = vsyncpa [#allocation7], 0
    %16 = vsyncpa [#allocation10], 0
    %17 = vsyncpa [#allocation13], 0
    %18 = vsyncpa [#allocation5], 0
    %s19 = scalar_lea.sflag [#allocation5], 1
    %20 = vsyncpa %s19, 0
    loop: start=0, step=1, limit=4
    $region2: #{tpu_custom_call.1} parent=1 // loop_pre_header
      _
    $region3: #{tpu_custom_call.1} parent=1 // loop_header
      %s22 = sphi 0, %s26
      %p23 = scmp.ge.s32.totalorder %s22, 4
      %s32 = sphi 0, %s34
      %s35 = sphi 0, %s32
      %s36 = sphi 0, %s35
      %s52 = sphi 0, %s36
      %s56 = sphi 0, %s56
      %s58 = sphi 0, %s56
      %s59 = sphi 0, %s58
      %s73 = sphi 0, %s59
      %s77 = sphi 0, %s77
      %s79 = sphi 0, %s77
      %s80 = sphi 0, %s79
      %s94 = sphi 0, %s80
      %s98 = sphi 0, %s98
      %s100 = sphi 0, %s98
      %s101 = sphi 0, %s100
      %s115 = sphi 0, %s101
      %s119 = sphi 0, %s119
      %s121 = sphi 0, %s119
      %s122 = sphi 0, %s121
      %s136 = sphi 0, %s122
      %s140 = sphi 0, %s140
      %s142 = sphi 0, %s140
      %s143 = sphi 0, %s142
      %s157 = sphi 0, %s143
      %s161 = sphi 0, %s161
      %s163 = sphi 0, %s161
      %s164 = sphi 0, %s163
      %s178 = sphi 0, %s164
      %s184 = sphi 0, %s186
      %s187 = sphi 0, %s184
      %s188 = sphi 0, %s187
      %s204 = sphi 0, %s188
    $region4: #{tpu_custom_call.1} parent=1 // loop_header_branch
      %25 = sbr.rel (%p23) target = $region8
    $region5: #{tpu_custom_call.1} parent=1 // loop_body
      %s27 = ssub.s32 %s22, 1
      %s28 = ssub.s32 %s22, 2
      %s29 = sadd.s32 %s22, 1
      %s30 = ssub.s32 %s22, %s29
      %p31 = scmp.eq.s32.totalorder %s30, 0
      %s33 = sadd.s32 %s32, 1
      %s34 = scalar_select %p31, %s32, %s33
      %p37 = pneg %p31
      %p38 = scmp.eq.s32.totalorder %s22, 1
      %p39 = por %p37, %p38
      %p40 = scmp.ne.s32.totalorder %s32, %s35
      %p41 = scmp.eq.s32.totalorder %s22, 0
      %p42 = por %p40, %p41
      %p43 = scmp.ne.s32.totalorder %s32, %s35
      %p44 = scmp.eq.s32.totalorder %s27, 1
      %p45 = por %p43, %p44
      %p46 = scmp.ne.s32.totalorder %s35, %s36
      %p47 = scmp.eq.s32.totalorder %s27, 0
      %p48 = por %p46, %p47
      %p49 = scmp.ne.s32.totalorder %s35, %s36
      %p50 = scmp.eq.s32.totalorder %s28, 1
      %p51 = por %p49, %p50
      %p53 = scmp.ne.s32.totalorder %s36, %s52
      %p54 = scmp.eq.s32.totalorder %s28, 0
      %p55 = por %p53, %p54
      %s57 = sadd.s32 %s56, 1
      %p60 = scmp.eq.s32.totalorder %s22, 1
      %p61 = scmp.ne.s32.totalorder %s56, %s58
      %p62 = scmp.eq.s32.totalorder %s22, 0
      %p63 = por %p61, %p62
      %p64 = scmp.ne.s32.totalorder %s56, %s58
      %p65 = scmp.eq.s32.totalorder %s27, 1
      %p66 = por %p64, %p65
      %p67 = scmp.ne.s32.totalorder %s58, %s59
      %p68 = scmp.eq.s32.totalorder %s27, 0
      %p69 = por %p67, %p68
      %p70 = scmp.ne.s32.totalorder %s58, %s59
      %p71 = scmp.eq.s32.totalorder %s28, 1
      %p72 = por %p70, %p71
      %p74 = scmp.ne.s32.totalorder %s59, %s73
      %p75 = scmp.eq.s32.totalorder %s28, 0
      %p76 = por %p74, %p75
      %s78 = sadd.s32 %s77, 1
      %p81 = scmp.eq.s32.totalorder %s22, 1
      %p82 = scmp.ne.s32.totalorder %s77, %s79
      %p83 = scmp.eq.s32.totalorder %s22, 0
      %p84 = por %p82, %p83
      %p85 = scmp.ne.s32.totalorder %s77, %s79
      %p86 = scmp.eq.s32.totalorder %s27, 1
      %p87 = por %p85, %p86
      %p88 = scmp.ne.s32.totalorder %s79, %s80
      %p89 = scmp.eq.s32.totalorder %s27, 0
      %p90 = por %p88, %p89
      %p91 = scmp.ne.s32.totalorder %s79, %s80
      %p92 = scmp.eq.s32.totalorder %s28, 1
      %p93 = por %p91, %p92
      %p95 = scmp.ne.s32.totalorder %s80, %s94
      %p96 = scmp.eq.s32.totalorder %s28, 0
      %p97 = por %p95, %p96
      %s99 = sadd.s32 %s98, 1
      %p102 = scmp.eq.s32.totalorder %s22, 1
      %p103 = scmp.ne.s32.totalorder %s98, %s100
      %p104 = scmp.eq.s32.totalorder %s22, 0
      %p105 = por %p103, %p104
      %p106 = scmp.ne.s32.totalorder %s98, %s100
      %p107 = scmp.eq.s32.totalorder %s27, 1
      %p108 = por %p106, %p107
      %p109 = scmp.ne.s32.totalorder %s100, %s101
      %p110 = scmp.eq.s32.totalorder %s27, 0
      %p111 = por %p109, %p110
      %p112 = scmp.ne.s32.totalorder %s100, %s101
      %p113 = scmp.eq.s32.totalorder %s28, 1
      %p114 = por %p112, %p113
      %p116 = scmp.ne.s32.totalorder %s101, %s115
      %p117 = scmp.eq.s32.totalorder %s28, 0
      %p118 = por %p116, %p117
      %s120 = sadd.s32 %s119, 1
      %p123 = scmp.eq.s32.totalorder %s22, 1
      %p124 = scmp.ne.s32.totalorder %s119, %s121
      %p125 = scmp.eq.s32.totalorder %s22, 0
      %p126 = por %p124, %p125
      %p127 = scmp.ne.s32.totalorder %s119, %s121
      %p128 = scmp.eq.s32.totalorder %s27, 1
      %p129 = por %p127, %p128
      %p130 = scmp.ne.s32.totalorder %s121, %s122
      %p131 = scmp.eq.s32.totalorder %s27, 0
      %p132 = por %p130, %p131
      %p133 = scmp.ne.s32.totalorder %s121, %s122
      %p134 = scmp.eq.s32.totalorder %s28, 1
      %p135 = por %p133, %p134
      %p137 = scmp.ne.s32.totalorder %s122, %s136
      %p138 = scmp.eq.s32.totalorder %s28, 0
      %p139 = por %p137, %p138
      %s141 = sadd.s32 %s140, 1
      %p144 = scmp.eq.s32.totalorder %s22, 1
      %p145 = scmp.ne.s32.totalorder %s140, %s142
      %p146 = scmp.eq.s32.totalorder %s22, 0
      %p147 = por %p145, %p146
      %p148 = scmp.ne.s32.totalorder %s140, %s142
      %p149 = scmp.eq.s32.totalorder %s27, 1
      %p150 = por %p148, %p149
      %p151 = scmp.ne.s32.totalorder %s142, %s143
      %p152 = scmp.eq.s32.totalorder %s27, 0
      %p153 = por %p151, %p152
      %p154 = scmp.ne.s32.totalorder %s142, %s143
      %p155 = scmp.eq.s32.totalorder %s28, 1
      %p156 = por %p154, %p155
      %p158 = scmp.ne.s32.totalorder %s143, %s157
      %p159 = scmp.eq.s32.totalorder %s28, 0
      %p160 = por %p158, %p159
      %s162 = sadd.s32 %s161, 1
      %p165 = scmp.eq.s32.totalorder %s22, 1
      %p166 = scmp.ne.s32.totalorder %s161, %s163
      %p167 = scmp.eq.s32.totalorder %s22, 0
      %p168 = por %p166, %p167
      %p169 = scmp.ne.s32.totalorder %s161, %s163
      %p170 = scmp.eq.s32.totalorder %s27, 1
      %p171 = por %p169, %p170
      %p172 = scmp.ne.s32.totalorder %s163, %s164
      %p173 = scmp.eq.s32.totalorder %s27, 0
      %p174 = por %p172, %p173
      %p175 = scmp.ne.s32.totalorder %s163, %s164
      %p176 = scmp.eq.s32.totalorder %s28, 1
      %p177 = por %p175, %p176
      %p179 = scmp.ne.s32.totalorder %s164, %s178
      %p180 = scmp.eq.s32.totalorder %s28, 0
      %p181 = por %p179, %p180
      %s182 = ssub.s32 %s22, %s29
      %p183 = scmp.eq.s32.totalorder %s182, 0
      %s185 = sadd.s32 %s184, 1
      %s186 = scalar_select %p183, %s184, %s185
      %p189 = pneg %p183
      %p190 = scmp.eq.s32.totalorder %s22, 1
      %p191 = por %p189, %p190
      %p192 = scmp.ne.s32.totalorder %s184, %s187
      %p193 = scmp.eq.s32.totalorder %s22, 0
      %p194 = por %p192, %p193
      %p195 = scmp.ne.s32.totalorder %s184, %s187
      %p196 = scmp.eq.s32.totalorder %s27, 1
      %p197 = por %p195, %p196
      %p198 = scmp.ne.s32.totalorder %s187, %s188
      %p199 = scmp.eq.s32.totalorder %s27, 0
      %p200 = por %p198, %p199
      %p201 = scmp.ne.s32.totalorder %s187, %s188
      %p202 = scmp.eq.s32.totalorder %s28, 1
      %p203 = por %p201, %p202
      %p205 = scmp.ne.s32.totalorder %s188, %s204
      %p206 = scmp.eq.s32.totalorder %s28, 0
      %p207 = por %p205, %p206
      %p208 = scmp.le.s32.totalorder 1, %s22
      %p209 = scmp.lt.s32.totalorder %s22, 3
      %p210 = pnand %p208, %p209
      %p211 = pneg %p210
      // Predicated region
      $region9: #{tpu_custom_call.1} parent=5 // pred_check
        _
      $region10: #{tpu_custom_call.1} parent=5 // pred_check_branch
        %213 = sbr.rel (%p210) target = $region12
      $region11: #{tpu_custom_call.1} parent=5 // pred_region
        %s214 = ssub.s32 %s22, 1
        // Predicated region
        $region13: #{tpu_custom_call.1} parent=11 // pred_check
          %p215 = pneg %p69
        $region14: #{tpu_custom_call.1} parent=11 // pred_check_branch
          %217 = sbr.rel (%p215) target = $region16
        $region15: #{tpu_custom_call.1} parent=11 // pred_region
          %s219 = ssub.s32 256, 256
          %220 = vsyncadd [#allocation7], %s219
          %s221 = sshll.u32 [#allocation6], 4
          %s222 = int_to_ptr.vmem [resolvable:$true] %s221
          %227 = dma.hbm_to_vmem [thread:$0]  %s1, 256, %s222, [#allocation7], 64, 64, 4
        $region16: #{tpu_custom_call.1} parent=11 // pred_fallthru
          _
        // Predicated region
        $region17: #{tpu_custom_call.1} parent=11 // pred_check
          %p228 = pneg %p90
        $region18: #{tpu_custom_call.1} parent=11 // pred_check_branch
          %230 = sbr.rel (%p228) target = $region20
        $region19: #{tpu_custom_call.1} parent=11 // pred_region
          %s232 = ssub.s32 16, 16
          %233 = vsyncadd [#allocation7], %s232
          %s235 = sshll.u32 [#allocation8], 4
          %s236 = int_to_ptr.vmem [resolvable:$true] %s235
          %238 = dma.hbm_to_vmem [thread:$0]  %s2, 16, %s236, [#allocation7]
        $region20: #{tpu_custom_call.1} parent=11 // pred_fallthru
          _
        // Predicated region
        $region21: #{tpu_custom_call.1} parent=11 // pred_check
          %p239 = pneg %p111
        $region22: #{tpu_custom_call.1} parent=11 // pred_check_branch
          %241 = sbr.rel (%p239) target = $region24
        $region23: #{tpu_custom_call.1} parent=11 // pred_region
          %s243 = ssub.s32 256, 256
          %244 = vsyncadd [#allocation10], %s243
          %s245 = sshll.u32 [#allocation9], 4
          %s246 = int_to_ptr.vmem [resolvable:$true] %s245
          %251 = dma.hbm_to_vmem [thread:$0]  %s3, 256, %s246, [#allocation10], 128, 128, 8
        $region24: #{tpu_custom_call.1} parent=11 // pred_fallthru
          _
        // Predicated region
        $region25: #{tpu_custom_call.1} parent=11 // pred_check
          %p252 = pneg %p132
        $region26: #{tpu_custom_call.1} parent=11 // pred_check_branch
          %254 = sbr.rel (%p252) target = $region28
        $region27: #{tpu_custom_call.1} parent=11 // pred_region
          %s256 = ssub.s32 16, 16
          %257 = vsyncadd [#allocation10], %s256
          %s259 = sshll.u32 [#allocation11], 4
          %s260 = int_to_ptr.vmem [resolvable:$true] %s259
          %262 = dma.hbm_to_vmem [thread:$0]  %s4, 16, %s260, [#allocation10]
        $region28: #{tpu_custom_call.1} parent=11 // pred_fallthru
          _
        // Predicated region
        $region29: #{tpu_custom_call.1} parent=11 // pred_check
          %p263 = pneg %p153
        $region30: #{tpu_custom_call.1} parent=11 // pred_check_branch
          %265 = sbr.rel (%p263) target = $region32
        $region31: #{tpu_custom_call.1} parent=11 // pred_region
          %s267 = ssub.s32 1024, 1024
          %268 = vsyncadd [#allocation13], %s267
          %s269 = sshll.u32 [#allocation12], 4
          %s270 = int_to_ptr.vmem [resolvable:$true] %s269
          %275 = dma.hbm_to_vmem [thread:$0]  %s5, 1024, %s270, [#allocation13], 64, 64, 4
        $region32: #{tpu_custom_call.1} parent=11 // pred_fallthru
          _
        // Predicated region
        $region33: #{tpu_custom_call.1} parent=11 // pred_check
          %p276 = pneg %p174
        $region34: #{tpu_custom_call.1} parent=11 // pred_check_branch
          %278 = sbr.rel (%p276) target = $region36
        $region35: #{tpu_custom_call.1} parent=11 // pred_region
          %s280 = ssub.s32 16, 16
          %281 = vsyncadd [#allocation13], %s280
          %s283 = sshll.u32 [#allocation14], 4
          %s284 = int_to_ptr.vmem [resolvable:$true] %s283
          %286 = dma.hbm_to_vmem [thread:$0]  %s6, 16, %s284, [#allocation13]
        $region36: #{tpu_custom_call.1} parent=11 // pred_fallthru
          _
      $region12: #{tpu_custom_call.1} parent=5 // pred_fallthru
        _
      %p287 = scmp.lt.s32.totalorder %s22, 2
      // Predicated region
      $region37: #{tpu_custom_call.1} parent=5 // pred_check
        %p288 = pneg %p287
      $region38: #{tpu_custom_call.1} parent=5 // pred_check_branch
        %290 = sbr.rel (%p288) target = $region40
      $region39: #{tpu_custom_call.1} parent=5 // pred_region
        // Predicated region
        $region41: #{tpu_custom_call.1} parent=39 // pred_check
          %p291 = pneg %p42
        $region42: #{tpu_custom_call.1} parent=39 // pred_check_branch
          %293 = sbr.rel (%p291) target = $region44
        $region43: #{tpu_custom_call.1} parent=39 // pred_region
          %s294 = sand.u32 %s32, 1
          %s295 = scalar_lea.sflag [#allocation4], %s294
          %s296 = sand.u32 %s32, 1
          %s297 = smul.addr %s296, 256
          %s298 = scalar_lea.vmem [#allocation3], %s297
          %s300 = ssub.s32 4096, 4096
          %301 = vsyncadd %s295, %s300
          %s302 = smul.addr %s22, 32
          %s303 = smul.addr %s302, 128
          %s304 = scalar_lea.hbm %s0, %s303
          %s305 = sshll.u32 %s298, 4
          %s306 = int_to_ptr.vmem [resolvable:$true] %s305
          %311 = dma.hbm_to_vmem [thread:$0]  %s304, 4096, %s306, %s295, 128, 128, 8
        $region44: #{tpu_custom_call.1} parent=39 // pred_fallthru
          _
      $region40: #{tpu_custom_call.1} parent=5 // pred_fallthru
        _
      %p312 = scmp.le.s32.totalorder 1, %s22
      %p313 = scmp.lt.s32.totalorder %s22, 3
      %p314 = pnand %p312, %p313
      %p315 = pneg %p314
      // Predicated region
      $region45: #{tpu_custom_call.1} parent=5 // pred_check
        _
      $region46: #{tpu_custom_call.1} parent=5 // pred_check_branch
        %317 = sbr.rel (%p314) target = $region48
      $region47: #{tpu_custom_call.1} parent=5 // pred_region
        %s318 = ssub.s32 %s22, 1
        %s319 = sand.u32 %s35, 1
        %s320 = scalar_lea.sflag [#allocation4], %s319
        %s321 = sand.u32 %s35, 1
        %s322 = smul.addr %s321, 256
        %s323 = scalar_lea.vmem [#allocation3], %s322
        // Predicated region
        $region49: #{tpu_custom_call.1} parent=47 // pred_check
          %p324 = pneg %p48
        $region50: #{tpu_custom_call.1} parent=47 // pred_check_branch
          %326 = sbr.rel (%p324) target = $region52
        $region51: #{tpu_custom_call.1} parent=47 // pred_region
          %327 = dma.done %s320, 4096
        $region52: #{tpu_custom_call.1} parent=47 // pred_fallthru
          _
        // Predicated region
        $region53: #{tpu_custom_call.1} parent=47 // pred_check
          %p328 = pneg %p69
        $region54: #{tpu_custom_call.1} parent=47 // pred_check_branch
          %330 = sbr.rel (%p328) target = $region56
        $region55: #{tpu_custom_call.1} parent=47 // pred_region
          %331 = dma.done [#allocation7], 256
        $region56: #{tpu_custom_call.1} parent=47 // pred_fallthru
          _
        // Predicated region
        $region57: #{tpu_custom_call.1} parent=47 // pred_check
          %p332 = pneg %p90
        $region58: #{tpu_custom_call.1} parent=47 // pred_check_branch
          %334 = sbr.rel (%p332) target = $region60
        $region59: #{tpu_custom_call.1} parent=47 // pred_region
          %335 = dma.done [#allocation7], 16
        $region60: #{tpu_custom_call.1} parent=47 // pred_fallthru
          _
        // Predicated region
        $region61: #{tpu_custom_call.1} parent=47 // pred_check
          %p336 = pneg %p111
        $region62: #{tpu_custom_call.1} parent=47 // pred_check_branch
          %338 = sbr.rel (%p336) target = $region64
        $region63: #{tpu_custom_call.1} parent=47 // pred_region
          %339 = dma.done [#allocation10], 256
        $region64: #{tpu_custom_call.1} parent=47 // pred_fallthru
          _
        // Predicated region
        $region65: #{tpu_custom_call.1} parent=47 // pred_check
          %p340 = pneg %p132
        $region66: #{tpu_custom_call.1} parent=47 // pred_check_branch
          %342 = sbr.rel (%p340) target = $region68
        $region67: #{tpu_custom_call.1} parent=47 // pred_region
          %343 = dma.done [#allocation10], 16
        $region68: #{tpu_custom_call.1} parent=47 // pred_fallthru
          _
        // Predicated region
        $region69: #{tpu_custom_call.1} parent=47 // pred_check
          %p344 = pneg %p153
        $region70: #{tpu_custom_call.1} parent=47 // pred_check_branch
          %346 = sbr.rel (%p344) target = $region72
        $region71: #{tpu_custom_call.1} parent=47 // pred_region
          %347 = dma.done [#allocation13], 1024
        $region72: #{tpu_custom_call.1} parent=47 // pred_fallthru
          _
        // Predicated region
        $region73: #{tpu_custom_call.1} parent=47 // pred_check
          %p348 = pneg %p174
        $region74: #{tpu_custom_call.1} parent=47 // pred_check_branch
          %350 = sbr.rel (%p348) target = $region76
        $region75: #{tpu_custom_call.1} parent=47 // pred_region
          %351 = dma.done [#allocation13], 16
        $region76: #{tpu_custom_call.1} parent=47 // pred_fallthru
          _
        %s352 = sand.u32 %s35, 1
        %s353 = scalar_lea.sflag [#allocation4], %s352
        %s354 = sand.u32 %s35, 1
        %s355 = smul.addr %s354, 256
        %s356 = scalar_lea.vmem [#allocation3], %s355
        %p357 = pneg %p48
        %p358 = pneg %p45
        %p359 = pneg %p69
        %p360 = pneg %p66
        %p361 = pneg %p90
        %p362 = pneg %p87
        %p363 = pneg %p111
        %p364 = pneg %p108
        %p365 = pneg %p132
        %p366 = pneg %p129
        %p367 = pneg %p153
        %p368 = pneg %p150
        %p369 = pneg %p174
        %p370 = pneg %p171
        %p371 = pneg %p200
        %p372 = pneg %p197
        %s373 = sand.u32 %s187, 1
        %s374 = scalar_lea.sflag [#allocation5], %s373
        %s375 = sand.u32 %s187, 1
        %s376 = smul.addr %s375, 256
        %s377 = scalar_lea.vmem [#allocation15], %s376
        %v379 = vld [vmem:[%s323] sm:$0xff]
        %v380 = vld [vmem:[%s323 + $0x8] sm:$0xff]
        %v381 = vld [vmem:[%s323 + $0x10] sm:$0xff]
        %v382 = vld [vmem:[%s323 + $0x18] sm:$0xff]
        %v383 = vld [vmem:[%s323 + $0x20] sm:$0xff]
        %v384 = vld [vmem:[%s323 + $0x28] sm:$0xff]
        %v385 = vld [vmem:[%s323 + $0x30] sm:$0xff]
        %v386 = vld [vmem:[%s323 + $0x38] sm:$0xff]
        %v387 = vld [vmem:[%s323 + $0x40] sm:$0xff]
        %v388 = vld [vmem:[%s323 + $0x48] sm:$0xff]
        %v389 = vld [vmem:[%s323 + $0x50] sm:$0xff]
        %v390 = vld [vmem:[%s323 + $0x58] sm:$0xff]
        %v391 = vld [vmem:[%s323 + $0x60] sm:$0xff]
        %v392 = vld [vmem:[%s323 + $0x68] sm:$0xff]
        %v393 = vld [vmem:[%s323 + $0x70] sm:$0xff]
        %v394 = vld [vmem:[%s323 + $0x78] sm:$0xff]
        %v395 = vld [vmem:[%s323 + $0x80] sm:$0xff]
        %v396 = vld [vmem:[%s323 + $0x88] sm:$0xff]
        %v397 = vld [vmem:[%s323 + $0x90] sm:$0xff]
        %v398 = vld [vmem:[%s323 + $0x98] sm:$0xff]
        %v399 = vld [vmem:[%s323 + $0xa0] sm:$0xff]
        %v400 = vld [vmem:[%s323 + $0xa8] sm:$0xff]
        %v401 = vld [vmem:[%s323 + $0xb0] sm:$0xff]
        %v402 = vld [vmem:[%s323 + $0xb8] sm:$0xff]
        %v403 = vld [vmem:[%s323 + $0xc0] sm:$0xff]
        %v404 = vld [vmem:[%s323 + $0xc8] sm:$0xff]
        %v405 = vld [vmem:[%s323 + $0xd0] sm:$0xff]
        %v406 = vld [vmem:[%s323 + $0xd8] sm:$0xff]
        %v407 = vld [vmem:[%s323 + $0xe0] sm:$0xff]
        %v408 = vld [vmem:[%s323 + $0xe8] sm:$0xff]
        %v409 = vld [vmem:[%s323 + $0xf0] sm:$0xff]
        %v410 = vld [vmem:[%s323 + $0xf8] sm:$0xff]
        %v411 = vpack.c.bf16 %v380, %v379
        %v412 = vpack.c.bf16 %v382, %v381
        %v413 = vpack.c.bf16 %v384, %v383
        %v414 = vpack.c.bf16 %v386, %v385
        %v415 = vpack.c.bf16 %v388, %v387
        %v416 = vpack.c.bf16 %v390, %v389
        %v417 = vpack.c.bf16 %v392, %v391
        %v418 = vpack.c.bf16 %v394, %v393
        %v419 = vpack.c.bf16 %v396, %v395
        %v420 = vpack.c.bf16 %v398, %v397
        %v421 = vpack.c.bf16 %v400, %v399
        %v422 = vpack.c.bf16 %v402, %v401
        %v423 = vpack.c.bf16 %v404, %v403
        %v424 = vpack.c.bf16 %v406, %v405
        %v425 = vpack.c.bf16 %v408, %v407
        %v426 = vpack.c.bf16 %v410, %v409
        %v427 = vld [vmem:[#allocation6] sm:$0xf]
        %v428 = vld [vmem:[#allocation6 + $0x4] sm:$0xf]
        %v429 = vld [vmem:[#allocation6 + $0x8] sm:$0xf]
        %v430 = vld [vmem:[#allocation6 + $0xc] sm:$0xf]
        %v431 = vld [vmem:[#allocation8] sm:$0x1]
        %v433 = vlaneseq
        %v434 = vshrl.u32 %v433, 7
        %v435 = vsub.s32 0, %v434
        %v436 = vrot.slane %v431, %v435
        %v442 = vunpack.c.l.b16 %v427
        %v443 = vunpack.c.l.b16 %v428
        %v444 = vunpack.c.l.b16 %v429
        %v445 = vunpack.c.l.b16 %v430
        %v446 = vpack.c.b16 %v443, %v442
        %v447 = vpack.c.b16 %v445, %v444
        %vm450 = vcmask 261120
        %v452 = vsel %vm450, %v411, 0
        %v455 = vsel %vm450, %v412, 0
        %v458 = vsel %vm450, %v413, 0
        %v461 = vsel %vm450, %v414, 0
        %v464 = vsel %vm450, %v415, 0
        %v467 = vsel %vm450, %v416, 0
        %v470 = vsel %vm450, %v417, 0
        %v473 = vsel %vm450, %v418, 0
        %v476 = vsel %vm450, %v419, 0
        %v479 = vsel %vm450, %v420, 0
        %v482 = vsel %vm450, %v421, 0
        %v485 = vsel %vm450, %v422, 0
        %v488 = vsel %vm450, %v423, 0
        %v491 = vsel %vm450, %v424, 0
        %v494 = vsel %vm450, %v425, 0
        %v497 = vsel %vm450, %v426, 0
        %499 = vmatprep.subr.bf16.mxu0 0
        %500 = vmatpush1.bf16.msra.mxu0 %v446
        %501 = vmatprep.subr.bf16.mxu0 0
        %502 = vmatpush1.bf16.msra.mxu0 %v447
        %503 = vmatprep.subr.bf16.mxu0 0
        %504 = vmatpush1.bf16.msra.mxu0 0
        %505 = vmatprep.subr.bf16.mxu0 0
        %506 = vmatpush1.bf16.msra.mxu0 0
        %507 = vmatprep.subr.bf16.mxu0 0
        %508 = vmatpush1.bf16.msra.mxu0 0
        %509 = vmatprep.subr.bf16.mxu0 0
        %510 = vmatpush1.bf16.msra.mxu0 0
        %511 = vmatprep.subr.bf16.mxu0 0
        %512 = vmatpush1.bf16.msra.mxu0 0
        %513 = vmatprep.subr.bf16.mxu0 0
        %514 = vmatpush1.bf16.msra.mxu0 0
        %515 = vmatprep.subr.bf16.mxu0 0
        %516 = vmatpush1.bf16.msra.mxu0 0
        %517 = vmatprep.subr.bf16.mxu0 0
        %518 = vmatpush1.bf16.msra.mxu0 0
        %519 = vmatprep.subr.bf16.mxu0 0
        %520 = vmatpush1.bf16.msra.mxu0 0
        %521 = vmatprep.subr.bf16.mxu0 0
        %522 = vmatpush1.bf16.msra.mxu0 0
        %523 = vmatprep.subr.bf16.mxu0 0
        %524 = vmatpush1.bf16.msra.mxu0 0
        %525 = vmatprep.subr.bf16.mxu0 0
        %526 = vmatpush1.bf16.msra.mxu0 0
        %527 = vmatprep.subr.bf16.mxu0 0
        %528 = vmatpush1.bf16.msra.mxu0 0
        %529 = vmatprep.subr.bf16.mxu0 0
        %530 = vmatpush1.bf16.msra.mxu0 0
        %531 = vmatprep.mubr.bf16.mxu0 0
        %532 = vmatmul.mubr.bf16.gmra.mrb[0].mxu0 %v452
        %v533 = vpop.f32.mrb[0].mxu0
        %v534 = vadd.f32 %v436, %v533
        %v535 = vpop.f32.mrb[0].mxu0
        %v536 = vpop.f32.mrb[0].mxu0
        %v537 = vadd.f32 %v436, %v536
        %v538 = vpop.f32.mrb[0].mxu0
        %539 = vmatprep.mubr.bf16.mxu0 0
        %540 = vmatmul.mubr.bf16.gmra.mrb[0].mxu0 %v455
        %v541 = vpop.f32.mrb[0].mxu0
        %v542 = vadd.f32 %v436, %v541
        %v543 = vpop.f32.mrb[0].mxu0
        %v544 = vpop.f32.mrb[0].mxu0
        %v545 = vadd.f32 %v436, %v544
        %v546 = vpop.f32.mrb[0].mxu0
        %547 = vmatprep.mubr.bf16.mxu0 0
        %548 = vmatmul.mubr.bf16.gmra.mrb[0].mxu0 %v458
        %v549 = vpop.f32.mrb[0].mxu0
        %v550 = vadd.f32 %v436, %v549
        %v551 = vpop.f32.mrb[0].mxu0
        %v552 = vpop.f32.mrb[0].mxu0
        %v553 = vadd.f32 %v436, %v552
        %v554 = vpop.f32.mrb[0].mxu0
        %555 = vmatprep.mubr.bf16.mxu0 0
        %556 = vmatmul.mubr.bf16.gmra.mrb[0].mxu0 %v461
        %v557 = vpop.f32.mrb[0].mxu0
        %v558 = vadd.f32 %v436, %v557
        %v559 = vpop.f32.mrb[0].mxu0
        %v560 = vpop.f32.mrb[0].mxu0
        %v561 = vadd.f32 %v436, %v560
        %v562 = vpop.f32.mrb[0].mxu0
        %563 = vmatprep.mubr.bf16.mxu0 0
        %564 = vmatmul.mubr.bf16.gmra.mrb[0].mxu0 %v464
        %v565 = vpop.f32.mrb[0].mxu0
        %v566 = vadd.f32 %v436, %v565
        %v567 = vpop.f32.mrb[0].mxu0
        %v568 = vpop.f32.mrb[0].mxu0
        %v569 = vadd.f32 %v436, %v568
        %v570 = vpop.f32.mrb[0].mxu0
        %571 = vmatprep.mubr.bf16.mxu0 0
        %572 = vmatmul.mubr.bf16.gmra.mrb[0].mxu0 %v467
        %v573 = vpop.f32.mrb[0].mxu0
        %v574 = vadd.f32 %v436, %v573
        %v575 = vpop.f32.mrb[0].mxu0
        %v576 = vpop.f32.mrb[0].mxu0
        %v577 = vadd.f32 %v436, %v576
        %v578 = vpop.f32.mrb[0].mxu0
        %579 = vmatprep.mubr.bf16.mxu0 0
        %580 = vmatmul.mubr.bf16.gmra.mrb[0].mxu0 %v470
        %v581 = vpop.f32.mrb[0].mxu0
        %v582 = vadd.f32 %v436, %v581
        %v583 = vpop.f32.mrb[0].mxu0
        %v584 = vpop.f32.mrb[0].mxu0
        %v585 = vadd.f32 %v436, %v584
        %v586 = vpop.f32.mrb[0].mxu0
        %587 = vmatprep.mubr.bf16.mxu0 0
        %588 = vmatmul.mubr.bf16.gmra.mrb[0].mxu0 %v473
        %v589 = vpop.f32.mrb[0].mxu0
        %v590 = vadd.f32 %v436, %v589
        %v591 = vpop.f32.mrb[0].mxu0
        %v592 = vpop.f32.mrb[0].mxu0
        %v593 = vadd.f32 %v436, %v592
        %v594 = vpop.f32.mrb[0].mxu0
        %595 = vmatprep.mubr.bf16.mxu0 0
        %596 = vmatmul.mubr.bf16.gmra.mrb[0].mxu0 %v476
        %v597 = vpop.f32.mrb[0].mxu0
        %v598 = vadd.f32 %v436, %v597
        %v599 = vpop.f32.mrb[0].mxu0
        %v600 = vpop.f32.mrb[0].mxu0
        %v601 = vadd.f32 %v436, %v600
        %v602 = vpop.f32.mrb[0].mxu0
        %603 = vmatprep.mubr.bf16.mxu0 0
        %604 = vmatmul.mubr.bf16.gmra.mrb[0].mxu0 %v479
        %v605 = vpop.f32.mrb[0].mxu0
        %v606 = vadd.f32 %v436, %v605
        %v607 = vpop.f32.mrb[0].mxu0
        %v608 = vpop.f32.mrb[0].mxu0
        %v609 = vadd.f32 %v436, %v608
        %v610 = vpop.f32.mrb[0].mxu0
        %611 = vmatprep.mubr.bf16.mxu0 0
        %612 = vmatmul.mubr.bf16.gmra.mrb[0].mxu0 %v482
        %v613 = vpop.f32.mrb[0].mxu0
        %v614 = vadd.f32 %v436, %v613
        %v615 = vpop.f32.mrb[0].mxu0
        %v616 = vpop.f32.mrb[0].mxu0
        %v617 = vadd.f32 %v436, %v616
        %v618 = vpop.f32.mrb[0].mxu0
        %619 = vmatprep.mubr.bf16.mxu0 0
        %620 = vmatmul.mubr.bf16.gmra.mrb[0].mxu0 %v485
        %v621 = vpop.f32.mrb[0].mxu0
        %v622 = vadd.f32 %v436, %v621
        %v623 = vpop.f32.mrb[0].mxu0
        %v624 = vpop.f32.mrb[0].mxu0
        %v625 = vadd.f32 %v436, %v624
        %v626 = vpop.f32.mrb[0].mxu0
        %627 = vmatprep.mubr.bf16.mxu0 0
        %628 = vmatmul.mubr.bf16.gmra.mrb[0].mxu0 %v488
        %v629 = vpop.f32.mrb[0].mxu0
        %v630 = vadd.f32 %v436, %v629
        %v631 = vpop.f32.mrb[0].mxu0
        %v632 = vpop.f32.mrb[0].mxu0
        %v633 = vadd.f32 %v436, %v632
        %v634 = vpop.f32.mrb[0].mxu0
        %635 = vmatprep.mubr.bf16.mxu0 0
        %636 = vmatmul.mubr.bf16.gmra.mrb[0].mxu0 %v491
        %v637 = vpop.f32.mrb[0].mxu0
        %v638 = vadd.f32 %v436, %v637
        %v639 = vpop.f32.mrb[0].mxu0
        %v640 = vpop.f32.mrb[0].mxu0
        %v641 = vadd.f32 %v436, %v640
        %v642 = vpop.f32.mrb[0].mxu0
        %643 = vmatprep.mubr.bf16.mxu0 0
        %644 = vmatmul.mubr.bf16.gmra.mrb[0].mxu0 %v494
        %v645 = vpop.f32.mrb[0].mxu0
        %v646 = vadd.f32 %v436, %v645
        %v647 = vpop.f32.mrb[0].mxu0
        %v648 = vpop.f32.mrb[0].mxu0
        %v649 = vadd.f32 %v436, %v648
        %v650 = vpop.f32.mrb[0].mxu0
        %651 = vmatprep.mubr.bf16.mxu0 0
        %652 = vmatmul.mubr.bf16.gmra.mrb[0].mxu0 %v497
        %v653 = vpop.f32.mrb[0].mxu0
        %v654 = vadd.f32 %v436, %v653
        %v655 = vpop.f32.mrb[0].mxu0
        %v656 = vpop.f32.mrb[0].mxu0
        %v657 = vadd.f32 %v436, %v656
        %v658 = vpop.f32.mrb[0].mxu0
        %659 = vdwg.mxu0
        %660 = vst [vmem:[#allocation2] sm:$0xff] 0.0
        %661 = vst [vmem:[#allocation2 + $0x8] sm:$0xff] 0.0
        %662 = vst [vmem:[#allocation2 + $0x10] sm:$0xff] 0.0
        %663 = vst [vmem:[#allocation2 + $0x18] sm:$0xff] 0.0
        %664 = vst [vmem:[#allocation2 + $0x20] sm:$0xff] 0.0
        %665 = vst [vmem:[#allocation2 + $0x28] sm:$0xff] 0.0
        %666 = vst [vmem:[#allocation2 + $0x30] sm:$0xff] 0.0
        %667 = vst [vmem:[#allocation2 + $0x38] sm:$0xff] 0.0
        %668 = vst [vmem:[#allocation2 + $0x40] sm:$0xff] 0.0
        %669 = vst [vmem:[#allocation2 + $0x48] sm:$0xff] 0.0
        %670 = vst [vmem:[#allocation2 + $0x50] sm:$0xff] 0.0
        %671 = vst [vmem:[#allocation2 + $0x58] sm:$0xff] 0.0
        %672 = vst [vmem:[#allocation2 + $0x60] sm:$0xff] 0.0
        %673 = vst [vmem:[#allocation2 + $0x68] sm:$0xff] 0.0
        %674 = vst [vmem:[#allocation2 + $0x70] sm:$0xff] 0.0
        %675 = vst [vmem:[#allocation2 + $0x78] sm:$0xff] 0.0
        %676 = vst [vmem:[#allocation2 + $0x80] sm:$0xff] 0.0
        %677 = vst [vmem:[#allocation2 + $0x88] sm:$0xff] 0.0
        %678 = vst [vmem:[#allocation2 + $0x90] sm:$0xff] 0.0
        %679 = vst [vmem:[#allocation2 + $0x98] sm:$0xff] 0.0
        %680 = vst [vmem:[#allocation2 + $0xa0] sm:$0xff] 0.0
        %681 = vst [vmem:[#allocation2 + $0xa8] sm:$0xff] 0.0
        %682 = vst [vmem:[#allocation2 + $0xb0] sm:$0xff] 0.0
        %683 = vst [vmem:[#allocation2 + $0xb8] sm:$0xff] 0.0
        %684 = vst [vmem:[#allocation2 + $0xc0] sm:$0xff] 0.0
        %685 = vst [vmem:[#allocation2 + $0xc8] sm:$0xff] 0.0
        %686 = vst [vmem:[#allocation2 + $0xd0] sm:$0xff] 0.0
        %687 = vst [vmem:[#allocation2 + $0xd8] sm:$0xff] 0.0
        %688 = vst [vmem:[#allocation2 + $0xe0] sm:$0xff] 0.0
        %689 = vst [vmem:[#allocation2 + $0xe8] sm:$0xff] 0.0
        %690 = vst [vmem:[#allocation2 + $0xf0] sm:$0xff] 0.0
        %691 = vst [vmem:[#allocation2 + $0xf8] sm:$0xff] 0.0
        %692 = vst [vmem:[#allocation2 + $0x100] sm:$0xff] 0.0
        %693 = vst [vmem:[#allocation2 + $0x108] sm:$0xff] 0.0
        %694 = vst [vmem:[#allocation2 + $0x110] sm:$0xff] 0.0
        %695 = vst [vmem:[#allocation2 + $0x118] sm:$0xff] 0.0
        %696 = vst [vmem:[#allocation2 + $0x120] sm:$0xff] 0.0
        %697 = vst [vmem:[#allocation2 + $0x128] sm:$0xff] 0.0
        %698 = vst [vmem:[#allocation2 + $0x130] sm:$0xff] 0.0
        %699 = vst [vmem:[#allocation2 + $0x138] sm:$0xff] 0.0
        %700 = vst [vmem:[#allocation2 + $0x140] sm:$0xff] 0.0
        %701 = vst [vmem:[#allocation2 + $0x148] sm:$0xff] 0.0
        %702 = vst [vmem:[#allocation2 + $0x150] sm:$0xff] 0.0
        %703 = vst [vmem:[#allocation2 + $0x158] sm:$0xff] 0.0
        %704 = vst [vmem:[#allocation2 + $0x160] sm:$0xff] 0.0
        %705 = vst [vmem:[#allocation2 + $0x168] sm:$0xff] 0.0
        %706 = vst [vmem:[#allocation2 + $0x170] sm:$0xff] 0.0
        %707 = vst [vmem:[#allocation2 + $0x178] sm:$0xff] 0.0
        %708 = vst [vmem:[#allocation2 + $0x180] sm:$0xff] 0.0
        %709 = vst [vmem:[#allocation2 + $0x188] sm:$0xff] 0.0
        %710 = vst [vmem:[#allocation2 + $0x190] sm:$0xff] 0.0
        %711 = vst [vmem:[#allocation2 + $0x198] sm:$0xff] 0.0
        %712 = vst [vmem:[#allocation2 + $0x1a0] sm:$0xff] 0.0
        %713 = vst [vmem:[#allocation2 + $0x1a8] sm:$0xff] 0.0
        %714 = vst [vmem:[#allocation2 + $0x1b0] sm:$0xff] 0.0
        %715 = vst [vmem:[#allocation2 + $0x1b8] sm:$0xff] 0.0
        %716 = vst [vmem:[#allocation2 + $0x1c0] sm:$0xff] 0.0
        %717 = vst [vmem:[#allocation2 + $0x1c8] sm:$0xff] 0.0
        %718 = vst [vmem:[#allocation2 + $0x1d0] sm:$0xff] 0.0
        %719 = vst [vmem:[#allocation2 + $0x1d8] sm:$0xff] 0.0
        %720 = vst [vmem:[#allocation2 + $0x1e0] sm:$0xff] 0.0
        %721 = vst [vmem:[#allocation2 + $0x1e8] sm:$0xff] 0.0
        %722 = vst [vmem:[#allocation2 + $0x1f0] sm:$0xff] 0.0
        %723 = vst [vmem:[#allocation2 + $0x1f8] sm:$0xff] 0.0
        %724 = vst [vmem:[#allocation2 + $0x200] sm:$0xff] 0.0
        %725 = vst [vmem:[#allocation2 + $0x208] sm:$0xff] 0.0
        %726 = vst [vmem:[#allocation2 + $0x210] sm:$0xff] 0.0
        %727 = vst [vmem:[#allocation2 + $0x218] sm:$0xff] 0.0
        %728 = vst [vmem:[#allocation2 + $0x220] sm:$0xff] 0.0
        %729 = vst [vmem:[#allocation2 + $0x228] sm:$0xff] 0.0
        %730 = vst [vmem:[#allocation2 + $0x230] sm:$0xff] 0.0
        %731 = vst [vmem:[#allocation2 + $0x238] sm:$0xff] 0.0
        %s732 = scalar_lea.vmem [#allocation2], 32
        %733 = vst [vmem:[%s732 + $0x8] sm:$0xff] %v534
        %734 = vst [vmem:[%s732 + $0x10] sm:$0xff] %v537
        %735 = vst [vmem:[%s732 + $0x28] sm:$0xff] %v542
        %736 = vst [vmem:[%s732 + $0x30] sm:$0xff] %v545
        %737 = vst [vmem:[%s732 + $0x48] sm:$0xff] %v550
        %738 = vst [vmem:[%s732 + $0x50] sm:$0xff] %v553
        %739 = vst [vmem:[%s732 + $0x68] sm:$0xff] %v558
        %740 = vst [vmem:[%s732 + $0x70] sm:$0xff] %v561
        %741 = vst [vmem:[%s732 + $0x88] sm:$0xff] %v566
        %742 = vst [vmem:[%s732 + $0x90] sm:$0xff] %v569
        %743 = vst [vmem:[%s732 + $0xa8] sm:$0xff] %v574
        %744 = vst [vmem:[%s732 + $0xb0] sm:$0xff] %v577
        %745 = vst [vmem:[%s732 + $0xc8] sm:$0xff] %v582
        %746 = vst [vmem:[%s732 + $0xd0] sm:$0xff] %v585
        %747 = vst [vmem:[%s732 + $0xe8] sm:$0xff] %v590
        %748 = vst [vmem:[%s732 + $0xf0] sm:$0xff] %v593
        %749 = vst [vmem:[%s732 + $0x108] sm:$0xff] %v598
        %750 = vst [vmem:[%s732 + $0x110] sm:$0xff] %v601
        %751 = vst [vmem:[%s732 + $0x128] sm:$0xff] %v606
        %752 = vst [vmem:[%s732 + $0x130] sm:$0xff] %v609
        %753 = vst [vmem:[%s732 + $0x148] sm:$0xff] %v614
        %754 = vst [vmem:[%s732 + $0x150] sm:$0xff] %v617
        %755 = vst [vmem:[%s732 + $0x168] sm:$0xff] %v622
        %756 = vst [vmem:[%s732 + $0x170] sm:$0xff] %v625
        %757 = vst [vmem:[%s732 + $0x188] sm:$0xff] %v630
        %758 = vst [vmem:[%s732 + $0x190] sm:$0xff] %v633
        %759 = vst [vmem:[%s732 + $0x1a8] sm:$0xff] %v638
        %760 = vst [vmem:[%s732 + $0x1b0] sm:$0xff] %v641
        %761 = vst [vmem:[%s732 + $0x1c8] sm:$0xff] %v646
        %762 = vst [vmem:[%s732 + $0x1d0] sm:$0xff] %v649
        %763 = vst [vmem:[%s732 + $0x1e8] sm:$0xff] %v654
        %764 = vst [vmem:[%s732 + $0x1f0] sm:$0xff] %v657
        %v765 = vld [vmem:[#allocation9] sm:$0x1]
        %v766 = vld [vmem:[#allocation2 + $0x7] sm:$0xff]
        %v767 = vld [vmem:[#allocation2 + $0xf] sm:$0xff]
        %v768 = vld [vmem:[#allocation2 + $0x27] sm:$0xff]
        %v769 = vld [vmem:[#allocation2 + $0x2f] sm:$0xff]
        %v770 = vld [vmem:[#allocation2 + $0x47] sm:$0xff]
        %v771 = vld [vmem:[#allocation2 + $0x4f] sm:$0xff]
        %v772 = vld [vmem:[#allocation2 + $0x67] sm:$0xff]
        %v773 = vld [vmem:[#allocation2 + $0x6f] sm:$0xff]
        %v774 = vld [vmem:[#allocation2 + $0x87] sm:$0xff]
        %v775 = vld [vmem:[#allocation2 + $0x8f] sm:$0xff]
        %v776 = vld [vmem:[#allocation2 + $0xa7] sm:$0xff]
        %v777 = vld [vmem:[#allocation2 + $0xaf] sm:$0xff]
        %v778 = vld [vmem:[#allocation2 + $0xc7] sm:$0xff]
        %v779 = vld [vmem:[#allocation2 + $0xcf] sm:$0xff]
        %v780 = vld [vmem:[#allocation2 + $0xe7] sm:$0xff]
        %v781 = vld [vmem:[#allocation2 + $0xef] sm:$0xff]
        %v782 = vld [vmem:[#allocation2 + $0x107] sm:$0xff]
        %v783 = vld [vmem:[#allocation2 + $0x10f] sm:$0xff]
        %v784 = vld [vmem:[#allocation2 + $0x127] sm:$0xff]
        %v785 = vld [vmem:[#allocation2 + $0x12f] sm:$0xff]
        %v786 = vld [vmem:[#allocation2 + $0x147] sm:$0xff]
        %v787 = vld [vmem:[#allocation2 + $0x14f] sm:$0xff]
        %v788 = vld [vmem:[#allocation2 + $0x167] sm:$0xff]
        %v789 = vld [vmem:[#allocation2 + $0x16f] sm:$0xff]
        %v790 = vld [vmem:[#allocation2 + $0x187] sm:$0xff]
        %v791 = vld [vmem:[#allocation2 + $0x18f] sm:$0xff]
        %v792 = vld [vmem:[#allocation2 + $0x1a7] sm:$0xff]
        %v793 = vld [vmem:[#allocation2 + $0x1af] sm:$0xff]
        %v794 = vld [vmem:[#allocation2 + $0x1c7] sm:$0xff]
        %v795 = vld [vmem:[#allocation2 + $0x1cf] sm:$0xff]
        %v796 = vld [vmem:[#allocation2 + $0x1e7] sm:$0xff]
        %v797 = vld [vmem:[#allocation2 + $0x1ef] sm:$0xff]
        %v798 = vlaneseq
        %v799 = vshrl.u32 %v798, 7
        %v800 = vsub.s32 0, %v799
        %v801 = vrot.slane %v765, %v800
        %v802 = vmul.f32 %v766, %v801
        %v803 = vmul.f32 %v767, %v801
        %v804 = vmul.f32 %v768, %v801
        %v805 = vmul.f32 %v769, %v801
        %v806 = vmul.f32 %v770, %v801
        %v807 = vmul.f32 %v771, %v801
        %v808 = vmul.f32 %v772, %v801
        %v809 = vmul.f32 %v773, %v801
        %v810 = vmul.f32 %v774, %v801
        %v811 = vmul.f32 %v775, %v801
        %v812 = vmul.f32 %v776, %v801
        %v813 = vmul.f32 %v777, %v801
        %v814 = vmul.f32 %v778, %v801
        %v815 = vmul.f32 %v779, %v801
        %v816 = vmul.f32 %v780, %v801
        %v817 = vmul.f32 %v781, %v801
        %v818 = vmul.f32 %v782, %v801
        %v819 = vmul.f32 %v783, %v801
        %v820 = vmul.f32 %v784, %v801
        %v821 = vmul.f32 %v785, %v801
        %v822 = vmul.f32 %v786, %v801
        %v823 = vmul.f32 %v787, %v801
        %v824 = vmul.f32 %v788, %v801
        %v825 = vmul.f32 %v789, %v801
        %v826 = vmul.f32 %v790, %v801
        %v827 = vmul.f32 %v791, %v801
        %v828 = vmul.f32 %v792, %v801
        %v829 = vmul.f32 %v793, %v801
        %v830 = vmul.f32 %v794, %v801
        %v831 = vmul.f32 %v795, %v801
        %v832 = vmul.f32 %v796, %v801
        %v833 = vmul.f32 %v797, %v801
        %v834 = vadd.f32 %v802, 0.0
        %v835 = vadd.f32 %v803, 0.0
        %v836 = vadd.f32 %v804, 0.0
        %v837 = vadd.f32 %v805, 0.0
        %v838 = vadd.f32 %v806, 0.0
        %v839 = vadd.f32 %v807, 0.0
        %v840 = vadd.f32 %v808, 0.0
        %v841 = vadd.f32 %v809, 0.0
        %v842 = vadd.f32 %v810, 0.0
        %v843 = vadd.f32 %v811, 0.0
        %v844 = vadd.f32 %v812, 0.0
        %v845 = vadd.f32 %v813, 0.0
        %v846 = vadd.f32 %v814, 0.0
        %v847 = vadd.f32 %v815, 0.0
        %v848 = vadd.f32 %v816, 0.0
        %v849 = vadd.f32 %v817, 0.0
        %v850 = vadd.f32 %v818, 0.0
        %v851 = vadd.f32 %v819, 0.0
        %v852 = vadd.f32 %v820, 0.0
        %v853 = vadd.f32 %v821, 0.0
        %v854 = vadd.f32 %v822, 0.0
        %v855 = vadd.f32 %v823, 0.0
        %v856 = vadd.f32 %v824, 0.0
        %v857 = vadd.f32 %v825, 0.0
        %v858 = vadd.f32 %v826, 0.0
        %v859 = vadd.f32 %v827, 0.0
        %v860 = vadd.f32 %v828, 0.0
        %v861 = vadd.f32 %v829, 0.0
        %v862 = vadd.f32 %v830, 0.0
        %v863 = vadd.f32 %v831, 0.0
        %v864 = vadd.f32 %v832, 0.0
        %v865 = vadd.f32 %v833, 0.0
        %v866 = vld [vmem:[#allocation9 + $0x1] sm:$0x1]
        %v867 = vld [vmem:[#allocation2 + $0x8] sm:$0xff]
        %v868 = vld [vmem:[#allocation2 + $0x10] sm:$0xff]
        %v869 = vld [vmem:[#allocation2 + $0x28] sm:$0xff]
        %v870 = vld [vmem:[#allocation2 + $0x30] sm:$0xff]
        %v871 = vld [vmem:[#allocation2 + $0x48] sm:$0xff]
        %v872 = vld [vmem:[#allocation2 + $0x50] sm:$0xff]
        %v873 = vld [vmem:[#allocation2 + $0x68] sm:$0xff]
        %v874 = vld [vmem:[#allocation2 + $0x70] sm:$0xff]
        %v875 = vld [vmem:[#allocation2 + $0x88] sm:$0xff]
        %v876 = vld [vmem:[#allocation2 + $0x90] sm:$0xff]
        %v877 = vld [vmem:[#allocation2 + $0xa8] sm:$0xff]
        %v878 = vld [vmem:[#allocation2 + $0xb0] sm:$0xff]
        %v879 = vld [vmem:[#allocation2 + $0xc8] sm:$0xff]
        %v880 = vld [vmem:[#allocation2 + $0xd0] sm:$0xff]
        %v881 = vld [vmem:[#allocation2 + $0xe8] sm:$0xff]
        %v882 = vld [vmem:[#allocation2 + $0xf0] sm:$0xff]
        %v883 = vld [vmem:[#allocation2 + $0x108] sm:$0xff]
        %v884 = vld [vmem:[#allocation2 + $0x110] sm:$0xff]
        %v885 = vld [vmem:[#allocation2 + $0x128] sm:$0xff]
        %v886 = vld [vmem:[#allocation2 + $0x130] sm:$0xff]
        %v887 = vld [vmem:[#allocation2 + $0x148] sm:$0xff]
        %v888 = vld [vmem:[#allocation2 + $0x150] sm:$0xff]
        %v889 = vld [vmem:[#allocation2 + $0x168] sm:$0xff]
        %v890 = vld [vmem:[#allocation2 + $0x170] sm:$0xff]
        %v891 = vld [vmem:[#allocation2 + $0x188] sm:$0xff]
        %v892 = vld [vmem:[#allocation2 + $0x190] sm:$0xff]
        %v893 = vld [vmem:[#allocation2 + $0x1a8] sm:$0xff]
        %v894 = vld [vmem:[#allocation2 + $0x1b0] sm:$0xff]
        %v895 = vld [vmem:[#allocation2 + $0x1c8] sm:$0xff]
        %v896 = vld [vmem:[#allocation2 + $0x1d0] sm:$0xff]
        %v897 = vld [vmem:[#allocation2 + $0x1e8] sm:$0xff]
        %v898 = vld [vmem:[#allocation2 + $0x1f0] sm:$0xff]
        %v899 = vlaneseq
        %v900 = vshrl.u32 %v899, 7
        %v901 = vsub.s32 0, %v900
        %v902 = vrot.slane %v866, %v901
        %v903 = vmul.f32 %v867, %v902
        %v904 = vmul.f32 %v868, %v902
        %v905 = vmul.f32 %v869, %v902
        %v906 = vmul.f32 %v870, %v902
        %v907 = vmul.f32 %v871, %v902
        %v908 = vmul.f32 %v872, %v902
        %v909 = vmul.f32 %v873, %v902
        %v910 = vmul.f32 %v874, %v902
        %v911 = vmul.f32 %v875, %v902
        %v912 = vmul.f32 %v876, %v902
        %v913 = vmul.f32 %v877, %v902
        %v914 = vmul.f32 %v878, %v902
        %v915 = vmul.f32 %v879, %v902
        %v916 = vmul.f32 %v880, %v902
        %v917 = vmul.f32 %v881, %v902
        %v918 = vmul.f32 %v882, %v902
        %v919 = vmul.f32 %v883, %v902
        %v920 = vmul.f32 %v884, %v902
        %v921 = vmul.f32 %v885, %v902
        %v922 = vmul.f32 %v886, %v902
        %v923 = vmul.f32 %v887, %v902
        %v924 = vmul.f32 %v888, %v902
        %v925 = vmul.f32 %v889, %v902
        %v926 = vmul.f32 %v890, %v902
        %v927 = vmul.f32 %v891, %v902
        %v928 = vmul.f32 %v892, %v902
        %v929 = vmul.f32 %v893, %v902
        %v930 = vmul.f32 %v894, %v902
        %v931 = vmul.f32 %v895, %v902
        %v932 = vmul.f32 %v896, %v902
        %v933 = vmul.f32 %v897, %v902
        %v934 = vmul.f32 %v898, %v902
        %v935 = vadd.f32 %v834, %v903
        %v936 = vadd.f32 %v835, %v904
        %v937 = vadd.f32 %v836, %v905
        %v938 = vadd.f32 %v837, %v906
        %v939 = vadd.f32 %v838, %v907
        %v940 = vadd.f32 %v839, %v908
        %v941 = vadd.f32 %v840, %v909
        %v942 = vadd.f32 %v841, %v910
        %v943 = vadd.f32 %v842, %v911
        %v944 = vadd.f32 %v843, %v912
        %v945 = vadd.f32 %v844, %v913
        %v946 = vadd.f32 %v845, %v914
        %v947 = vadd.f32 %v846, %v915
        %v948 = vadd.f32 %v847, %v916
        %v949 = vadd.f32 %v848, %v917
        %v950 = vadd.f32 %v849, %v918
        %v951 = vadd.f32 %v850, %v919
        %v952 = vadd.f32 %v851, %v920
        %v953 = vadd.f32 %v852, %v921
        %v954 = vadd.f32 %v853, %v922
        %v955 = vadd.f32 %v854, %v923
        %v956 = vadd.f32 %v855, %v924
        %v957 = vadd.f32 %v856, %v925
        %v958 = vadd.f32 %v857, %v926
        %v959 = vadd.f32 %v858, %v927
        %v960 = vadd.f32 %v859, %v928
        %v961 = vadd.f32 %v860, %v929
        %v962 = vadd.f32 %v861, %v930
        %v963 = vadd.f32 %v862, %v931
        %v964 = vadd.f32 %v863, %v932
        %v965 = vadd.f32 %v864, %v933
        %v966 = vadd.f32 %v865, %v934
        %v967 = vld [vmem:[#allocation9 + $0x2] sm:$0x1]
        %v968 = vld [vmem:[#allocation2 + $0x9] sm:$0xff]
        %v969 = vld [vmem:[#allocation2 + $0x11] sm:$0xff]
        %v970 = vld [vmem:[#allocation2 + $0x29] sm:$0xff]
        %v971 = vld [vmem:[#allocation2 + $0x31] sm:$0xff]
        %v972 = vld [vmem:[#allocation2 + $0x49] sm:$0xff]
        %v973 = vld [vmem:[#allocation2 + $0x51] sm:$0xff]
        %v974 = vld [vmem:[#allocation2 + $0x69] sm:$0xff]
        %v975 = vld [vmem:[#allocation2 + $0x71] sm:$0xff]
        %v976 = vld [vmem:[#allocation2 + $0x89] sm:$0xff]
        %v977 = vld [vmem:[#allocation2 + $0x91] sm:$0xff]
        %v978 = vld [vmem:[#allocation2 + $0xa9] sm:$0xff]
        %v979 = vld [vmem:[#allocation2 + $0xb1] sm:$0xff]
        %v980 = vld [vmem:[#allocation2 + $0xc9] sm:$0xff]
        %v981 = vld [vmem:[#allocation2 + $0xd1] sm:$0xff]
        %v982 = vld [vmem:[#allocation2 + $0xe9] sm:$0xff]
        %v983 = vld [vmem:[#allocation2 + $0xf1] sm:$0xff]
        %v984 = vld [vmem:[#allocation2 + $0x109] sm:$0xff]
        %v985 = vld [vmem:[#allocation2 + $0x111] sm:$0xff]
        %v986 = vld [vmem:[#allocation2 + $0x129] sm:$0xff]
        %v987 = vld [vmem:[#allocation2 + $0x131] sm:$0xff]
        %v988 = vld [vmem:[#allocation2 + $0x149] sm:$0xff]
        %v989 = vld [vmem:[#allocation2 + $0x151] sm:$0xff]
        %v990 = vld [vmem:[#allocation2 + $0x169] sm:$0xff]
        %v991 = vld [vmem:[#allocation2 + $0x171] sm:$0xff]
        %v992 = vld [vmem:[#allocation2 + $0x189] sm:$0xff]
        %v993 = vld [vmem:[#allocation2 + $0x191] sm:$0xff]
        %v994 = vld [vmem:[#allocation2 + $0x1a9] sm:$0xff]
        %v995 = vld [vmem:[#allocation2 + $0x1b1] sm:$0xff]
        %v996 = vld [vmem:[#allocation2 + $0x1c9] sm:$0xff]
        %v997 = vld [vmem:[#allocation2 + $0x1d1] sm:$0xff]
        %v998 = vld [vmem:[#allocation2 + $0x1e9] sm:$0xff]
        %v999 = vld [vmem:[#allocation2 + $0x1f1] sm:$0xff]
        %v1000 = vlaneseq
        %v1001 = vshrl.u32 %v1000, 7
        %v1002 = vsub.s32 0, %v1001
        %v1003 = vrot.slane %v967, %v1002
        %v1004 = vmul.f32 %v968, %v1003
        %v1005 = vmul.f32 %v969, %v1003
        %v1006 = vmul.f32 %v970, %v1003
        %v1007 = vmul.f32 %v971, %v1003
        %v1008 = vmul.f32 %v972, %v1003
        %v1009 = vmul.f32 %v973, %v1003
        %v1010 = vmul.f32 %v974, %v1003
        %v1011 = vmul.f32 %v975, %v1003
        %v1012 = vmul.f32 %v976, %v1003
        %v1013 = vmul.f32 %v977, %v1003
        %v1014 = vmul.f32 %v978, %v1003
        %v1015 = vmul.f32 %v979, %v1003
        %v1016 = vmul.f32 %v980, %v1003
        %v1017 = vmul.f32 %v981, %v1003
        %v1018 = vmul.f32 %v982, %v1003
        %v1019 = vmul.f32 %v983, %v1003
        %v1020 = vmul.f32 %v984, %v1003
        %v1021 = vmul.f32 %v985, %v1003
        %v1022 = vmul.f32 %v986, %v1003
        %v1023 = vmul.f32 %v987, %v1003
        %v1024 = vmul.f32 %v988, %v1003
        %v1025 = vmul.f32 %v989, %v1003
        %v1026 = vmul.f32 %v990, %v1003
        %v1027 = vmul.f32 %v991, %v1003
        %v1028 = vmul.f32 %v992, %v1003
        %v1029 = vmul.f32 %v993, %v1003
        %v1030 = vmul.f32 %v994, %v1003
        %v1031 = vmul.f32 %v995, %v1003
        %v1032 = vmul.f32 %v996, %v1003
        %v1033 = vmul.f32 %v997, %v1003
        %v1034 = vmul.f32 %v998, %v1003
        %v1035 = vmul.f32 %v999, %v1003
        %v1036 = vadd.f32 %v935, %v1004
        %v1037 = vadd.f32 %v936, %v1005
        %v1038 = vadd.f32 %v937, %v1006
        %v1039 = vadd.f32 %v938, %v1007
        %v1040 = vadd.f32 %v939, %v1008
        %v1041 = vadd.f32 %v940, %v1009
        %v1042 = vadd.f32 %v941, %v1010
        %v1043 = vadd.f32 %v942, %v1011
        %v1044 = vadd.f32 %v943, %v1012
        %v1045 = vadd.f32 %v944, %v1013
        %v1046 = vadd.f32 %v945, %v1014
        %v1047 = vadd.f32 %v946, %v1015
        %v1048 = vadd.f32 %v947, %v1016
        %v1049 = vadd.f32 %v948, %v1017
        %v1050 = vadd.f32 %v949, %v1018
        %v1051 = vadd.f32 %v950, %v1019
        %v1052 = vadd.f32 %v951, %v1020
        %v1053 = vadd.f32 %v952, %v1021
        %v1054 = vadd.f32 %v953, %v1022
        %v1055 = vadd.f32 %v954, %v1023
        %v1056 = vadd.f32 %v955, %v1024
        %v1057 = vadd.f32 %v956, %v1025
        %v1058 = vadd.f32 %v957, %v1026
        %v1059 = vadd.f32 %v958, %v1027
        %v1060 = vadd.f32 %v959, %v1028
        %v1061 = vadd.f32 %v960, %v1029
        %v1062 = vadd.f32 %v961, %v1030
        %v1063 = vadd.f32 %v962, %v1031
        %v1064 = vadd.f32 %v963, %v1032
        %v1065 = vadd.f32 %v964, %v1033
        %v1066 = vadd.f32 %v965, %v1034
        %v1067 = vadd.f32 %v966, %v1035
        %v1068 = vld [vmem:[#allocation9 + $0x3] sm:$0x1]
        %v1069 = vld [vmem:[%s732 + $0x7] sm:$0xff]
        %v1070 = vld [vmem:[%s732 + $0xf] sm:$0xff]
        %v1071 = vld [vmem:[%s732 + $0x27] sm:$0xff]
        %v1072 = vld [vmem:[%s732 + $0x2f] sm:$0xff]
        %v1073 = vld [vmem:[%s732 + $0x47] sm:$0xff]
        %v1074 = vld [vmem:[%s732 + $0x4f] sm:$0xff]
        %v1075 = vld [vmem:[%s732 + $0x67] sm:$0xff]
        %v1076 = vld [vmem:[%s732 + $0x6f] sm:$0xff]
        %v1077 = vld [vmem:[%s732 + $0x87] sm:$0xff]
        %v1078 = vld [vmem:[%s732 + $0x8f] sm:$0xff]
        %v1079 = vld [vmem:[%s732 + $0xa7] sm:$0xff]
        %v1080 = vld [vmem:[%s732 + $0xaf] sm:$0xff]
        %v1081 = vld [vmem:[%s732 + $0xc7] sm:$0xff]
        %v1082 = vld [vmem:[%s732 + $0xcf] sm:$0xff]
        %v1083 = vld [vmem:[%s732 + $0xe7] sm:$0xff]
        %v1084 = vld [vmem:[%s732 + $0xef] sm:$0xff]
        %v1085 = vld [vmem:[%s732 + $0x107] sm:$0xff]
        %v1086 = vld [vmem:[%s732 + $0x10f] sm:$0xff]
        %v1087 = vld [vmem:[%s732 + $0x127] sm:$0xff]
        %v1088 = vld [vmem:[%s732 + $0x12f] sm:$0xff]
        %v1089 = vld [vmem:[%s732 + $0x147] sm:$0xff]
        %v1090 = vld [vmem:[%s732 + $0x14f] sm:$0xff]
        %v1091 = vld [vmem:[%s732 + $0x167] sm:$0xff]
        %v1092 = vld [vmem:[%s732 + $0x16f] sm:$0xff]
        %v1093 = vld [vmem:[%s732 + $0x187] sm:$0xff]
        %v1094 = vld [vmem:[%s732 + $0x18f] sm:$0xff]
        %v1095 = vld [vmem:[%s732 + $0x1a7] sm:$0xff]
        %v1096 = vld [vmem:[%s732 + $0x1af] sm:$0xff]
        %v1097 = vld [vmem:[%s732 + $0x1c7] sm:$0xff]
        %v1098 = vld [vmem:[%s732 + $0x1cf] sm:$0xff]
        %v1099 = vld [vmem:[%s732 + $0x1e7] sm:$0xff]
        %v1100 = vld [vmem:[%s732 + $0x1ef] sm:$0xff]
        %v1101 = vlaneseq
        %v1102 = vshrl.u32 %v1101, 7
        %v1103 = vsub.s32 0, %v1102
        %v1104 = vrot.slane %v1068, %v1103
        %v1105 = vmul.f32 %v1069, %v1104
        %v1106 = vmul.f32 %v1070, %v1104
        %v1107 = vmul.f32 %v1071, %v1104
        %v1108 = vmul.f32 %v1072, %v1104
        %v1109 = vmul.f32 %v1073, %v1104
        %v1110 = vmul.f32 %v1074, %v1104
        %v1111 = vmul.f32 %v1075, %v1104
        %v1112 = vmul.f32 %v1076, %v1104
        %v1113 = vmul.f32 %v1077, %v1104
        %v1114 = vmul.f32 %v1078, %v1104
        %v1115 = vmul.f32 %v1079, %v1104
        %v1116 = vmul.f32 %v1080, %v1104
        %v1117 = vmul.f32 %v1081, %v1104
        %v1118 = vmul.f32 %v1082, %v1104
        %v1119 = vmul.f32 %v1083, %v1104
        %v1120 = vmul.f32 %v1084, %v1104
        %v1121 = vmul.f32 %v1085, %v1104
        %v1122 = vmul.f32 %v1086, %v1104
        %v1123 = vmul.f32 %v1087, %v1104
        %v1124 = vmul.f32 %v1088, %v1104
        %v1125 = vmul.f32 %v1089, %v1104
        %v1126 = vmul.f32 %v1090, %v1104
        %v1127 = vmul.f32 %v1091, %v1104
        %v1128 = vmul.f32 %v1092, %v1104
        %v1129 = vmul.f32 %v1093, %v1104
        %v1130 = vmul.f32 %v1094, %v1104
        %v1131 = vmul.f32 %v1095, %v1104
        %v1132 = vmul.f32 %v1096, %v1104
        %v1133 = vmul.f32 %v1097, %v1104
        %v1134 = vmul.f32 %v1098, %v1104
        %v1135 = vmul.f32 %v1099, %v1104
        %v1136 = vmul.f32 %v1100, %v1104
        %v1137 = vadd.f32 %v1036, %v1105
        %v1138 = vadd.f32 %v1037, %v1106
        %v1139 = vadd.f32 %v1038, %v1107
        %v1140 = vadd.f32 %v1039, %v1108
        %v1141 = vadd.f32 %v1040, %v1109
        %v1142 = vadd.f32 %v1041, %v1110
        %v1143 = vadd.f32 %v1042, %v1111
        %v1144 = vadd.f32 %v1043, %v1112
        %v1145 = vadd.f32 %v1044, %v1113
        %v1146 = vadd.f32 %v1045, %v1114
        %v1147 = vadd.f32 %v1046, %v1115
        %v1148 = vadd.f32 %v1047, %v1116
        %v1149 = vadd.f32 %v1048, %v1117
        %v1150 = vadd.f32 %v1049, %v1118
        %v1151 = vadd.f32 %v1050, %v1119
        %v1152 = vadd.f32 %v1051, %v1120
        %v1153 = vadd.f32 %v1052, %v1121
        %v1154 = vadd.f32 %v1053, %v1122
        %v1155 = vadd.f32 %v1054, %v1123
        %v1156 = vadd.f32 %v1055, %v1124
        %v1157 = vadd.f32 %v1056, %v1125
        %v1158 = vadd.f32 %v1057, %v1126
        %v1159 = vadd.f32 %v1058, %v1127
        %v1160 = vadd.f32 %v1059, %v1128
        %v1161 = vadd.f32 %v1060, %v1129
        %v1162 = vadd.f32 %v1061, %v1130
        %v1163 = vadd.f32 %v1062, %v1131
        %v1164 = vadd.f32 %v1063, %v1132
        %v1165 = vadd.f32 %v1064, %v1133
        %v1166 = vadd.f32 %v1065, %v1134
        %v1167 = vadd.f32 %v1066, %v1135
        %v1168 = vadd.f32 %v1067, %v1136
        %v1169 = vld [vmem:[#allocation9 + $0x4] sm:$0x1]
        %v1170 = vld [vmem:[%s732 + $0x8] sm:$0xff]
        %v1171 = vld [vmem:[%s732 + $0x10] sm:$0xff]
        %v1172 = vld [vmem:[%s732 + $0x28] sm:$0xff]
        %v1173 = vld [vmem:[%s732 + $0x30] sm:$0xff]
        %v1174 = vld [vmem:[%s732 + $0x48] sm:$0xff]
        %v1175 = vld [vmem:[%s732 + $0x50] sm:$0xff]
        %v1176 = vld [vmem:[%s732 + $0x68] sm:$0xff]
        %v1177 = vld [vmem:[%s732 + $0x70] sm:$0xff]
        %v1178 = vld [vmem:[%s732 + $0x88] sm:$0xff]
        %v1179 = vld [vmem:[%s732 + $0x90] sm:$0xff]
        %v1180 = vld [vmem:[%s732 + $0xa8] sm:$0xff]
        %v1181 = vld [vmem:[%s732 + $0xb0] sm:$0xff]
        %v1182 = vld [vmem:[%s732 + $0xc8] sm:$0xff]
        %v1183 = vld [vmem:[%s732 + $0xd0] sm:$0xff]
        %v1184 = vld [vmem:[%s732 + $0xe8] sm:$0xff]
        %v1185 = vld [vmem:[%s732 + $0xf0] sm:$0xff]
        %v1186 = vld [vmem:[%s732 + $0x108] sm:$0xff]
        %v1187 = vld [vmem:[%s732 + $0x110] sm:$0xff]
        %v1188 = vld [vmem:[%s732 + $0x128] sm:$0xff]
        %v1189 = vld [vmem:[%s732 + $0x130] sm:$0xff]
        %v1190 = vld [vmem:[%s732 + $0x148] sm:$0xff]
        %v1191 = vld [vmem:[%s732 + $0x150] sm:$0xff]
        %v1192 = vld [vmem:[%s732 + $0x168] sm:$0xff]
        %v1193 = vld [vmem:[%s732 + $0x170] sm:$0xff]
        %v1194 = vld [vmem:[%s732 + $0x188] sm:$0xff]
        %v1195 = vld [vmem:[%s732 + $0x190] sm:$0xff]
        %v1196 = vld [vmem:[%s732 + $0x1a8] sm:$0xff]
        %v1197 = vld [vmem:[%s732 + $0x1b0] sm:$0xff]
        %v1198 = vld [vmem:[%s732 + $0x1c8] sm:$0xff]
        %v1199 = vld [vmem:[%s732 + $0x1d0] sm:$0xff]
        %v1200 = vld [vmem:[%s732 + $0x1e8] sm:$0xff]
        %v1201 = vld [vmem:[%s732 + $0x1f0] sm:$0xff]
        %v1202 = vlaneseq
        %v1203 = vshrl.u32 %v1202, 7
        %v1204 = vsub.s32 0, %v1203
        %v1205 = vrot.slane %v1169, %v1204
        %v1206 = vmul.f32 %v1170, %v1205
        %v1207 = vmul.f32 %v1171, %v1205
        %v1208 = vmul.f32 %v1172, %v1205
        %v1209 = vmul.f32 %v1173, %v1205
        %v1210 = vmul.f32 %v1174, %v1205
        %v1211 = vmul.f32 %v1175, %v1205
        %v1212 = vmul.f32 %v1176, %v1205
        %v1213 = vmul.f32 %v1177, %v1205
        %v1214 = vmul.f32 %v1178, %v1205
        %v1215 = vmul.f32 %v1179, %v1205
        %v1216 = vmul.f32 %v1180, %v1205
        %v1217 = vmul.f32 %v1181, %v1205
        %v1218 = vmul.f32 %v1182, %v1205
        %v1219 = vmul.f32 %v1183, %v1205
        %v1220 = vmul.f32 %v1184, %v1205
        %v1221 = vmul.f32 %v1185, %v1205
        %v1222 = vmul.f32 %v1186, %v1205
        %v1223 = vmul.f32 %v1187, %v1205
        %v1224 = vmul.f32 %v1188, %v1205
        %v1225 = vmul.f32 %v1189, %v1205
        %v1226 = vmul.f32 %v1190, %v1205
        %v1227 = vmul.f32 %v1191, %v1205
        %v1228 = vmul.f32 %v1192, %v1205
        %v1229 = vmul.f32 %v1193, %v1205
        %v1230 = vmul.f32 %v1194, %v1205
        %v1231 = vmul.f32 %v1195, %v1205
        %v1232 = vmul.f32 %v1196, %v1205
        %v1233 = vmul.f32 %v1197, %v1205
        %v1234 = vmul.f32 %v1198, %v1205
        %v1235 = vmul.f32 %v1199, %v1205
        %v1236 = vmul.f32 %v1200, %v1205
        %v1237 = vmul.f32 %v1201, %v1205
        %v1238 = vadd.f32 %v1137, %v1206
        %v1239 = vadd.f32 %v1138, %v1207
        %v1240 = vadd.f32 %v1139, %v1208
        %v1241 = vadd.f32 %v1140, %v1209
        %v1242 = vadd.f32 %v1141, %v1210
        %v1243 = vadd.f32 %v1142, %v1211
        %v1244 = vadd.f32 %v1143, %v1212
        %v1245 = vadd.f32 %v1144, %v1213
        %v1246 = vadd.f32 %v1145, %v1214
        %v1247 = vadd.f32 %v1146, %v1215
        %v1248 = vadd.f32 %v1147, %v1216
        %v1249 = vadd.f32 %v1148, %v1217
        %v1250 = vadd.f32 %v1149, %v1218
        %v1251 = vadd.f32 %v1150, %v1219
        %v1252 = vadd.f32 %v1151, %v1220
        %v1253 = vadd.f32 %v1152, %v1221
        %v1254 = vadd.f32 %v1153, %v1222
        %v1255 = vadd.f32 %v1154, %v1223
        %v1256 = vadd.f32 %v1155, %v1224
        %v1257 = vadd.f32 %v1156, %v1225
        %v1258 = vadd.f32 %v1157, %v1226
        %v1259 = vadd.f32 %v1158, %v1227
        %v1260 = vadd.f32 %v1159, %v1228
        %v1261 = vadd.f32 %v1160, %v1229
        %v1262 = vadd.f32 %v1161, %v1230
        %v1263 = vadd.f32 %v1162, %v1231
        %v1264 = vadd.f32 %v1163, %v1232
        %v1265 = vadd.f32 %v1164, %v1233
        %v1266 = vadd.f32 %v1165, %v1234
        %v1267 = vadd.f32 %v1166, %v1235
        %v1268 = vadd.f32 %v1167, %v1236
        %v1269 = vadd.f32 %v1168, %v1237
        %v1270 = vld [vmem:[#allocation9 + $0x5] sm:$0x1]
        %v1271 = vld [vmem:[%s732 + $0x9] sm:$0xff]
        %v1272 = vld [vmem:[%s732 + $0x11] sm:$0xff]
        %v1273 = vld [vmem:[%s732 + $0x29] sm:$0xff]
        %v1274 = vld [vmem:[%s732 + $0x31] sm:$0xff]
        %v1275 = vld [vmem:[%s732 + $0x49] sm:$0xff]
        %v1276 = vld [vmem:[%s732 + $0x51] sm:$0xff]
        %v1277 = vld [vmem:[%s732 + $0x69] sm:$0xff]
        %v1278 = vld [vmem:[%s732 + $0x71] sm:$0xff]
        %v1279 = vld [vmem:[%s732 + $0x89] sm:$0xff]
        %v1280 = vld [vmem:[%s732 + $0x91] sm:$0xff]
        %v1281 = vld [vmem:[%s732 + $0xa9] sm:$0xff]
        %v1282 = vld [vmem:[%s732 + $0xb1] sm:$0xff]
        %v1283 = vld [vmem:[%s732 + $0xc9] sm:$0xff]
        %v1284 = vld [vmem:[%s732 + $0xd1] sm:$0xff]
        %v1285 = vld [vmem:[%s732 + $0xe9] sm:$0xff]
        %v1286 = vld [vmem:[%s732 + $0xf1] sm:$0xff]
        %v1287 = vld [vmem:[%s732 + $0x109] sm:$0xff]
        %v1288 = vld [vmem:[%s732 + $0x111] sm:$0xff]
        %v1289 = vld [vmem:[%s732 + $0x129] sm:$0xff]
        %v1290 = vld [vmem:[%s732 + $0x131] sm:$0xff]
        %v1291 = vld [vmem:[%s732 + $0x149] sm:$0xff]
        %v1292 = vld [vmem:[%s732 + $0x151] sm:$0xff]
        %v1293 = vld [vmem:[%s732 + $0x169] sm:$0xff]
        %v1294 = vld [vmem:[%s732 + $0x171] sm:$0xff]
        %v1295 = vld [vmem:[%s732 + $0x189] sm:$0xff]
        %v1296 = vld [vmem:[%s732 + $0x191] sm:$0xff]
        %v1297 = vld [vmem:[%s732 + $0x1a9] sm:$0xff]
        %v1298 = vld [vmem:[%s732 + $0x1b1] sm:$0xff]
        %v1299 = vld [vmem:[%s732 + $0x1c9] sm:$0xff]
        %v1300 = vld [vmem:[%s732 + $0x1d1] sm:$0xff]
        %v1301 = vld [vmem:[%s732 + $0x1e9] sm:$0xff]
        %v1302 = vld [vmem:[%s732 + $0x1f1] sm:$0xff]
        %v1303 = vlaneseq
        %v1304 = vshrl.u32 %v1303, 7
        %v1305 = vsub.s32 0, %v1304
        %v1306 = vrot.slane %v1270, %v1305
        %v1307 = vmul.f32 %v1271, %v1306
        %v1308 = vmul.f32 %v1272, %v1306
        %v1309 = vmul.f32 %v1273, %v1306
        %v1310 = vmul.f32 %v1274, %v1306
        %v1311 = vmul.f32 %v1275, %v1306
        %v1312 = vmul.f32 %v1276, %v1306
        %v1313 = vmul.f32 %v1277, %v1306
        %v1314 = vmul.f32 %v1278, %v1306
        %v1315 = vmul.f32 %v1279, %v1306
        %v1316 = vmul.f32 %v1280, %v1306
        %v1317 = vmul.f32 %v1281, %v1306
        %v1318 = vmul.f32 %v1282, %v1306
        %v1319 = vmul.f32 %v1283, %v1306
        %v1320 = vmul.f32 %v1284, %v1306
        %v1321 = vmul.f32 %v1285, %v1306
        %v1322 = vmul.f32 %v1286, %v1306
        %v1323 = vmul.f32 %v1287, %v1306
        %v1324 = vmul.f32 %v1288, %v1306
        %v1325 = vmul.f32 %v1289, %v1306
        %v1326 = vmul.f32 %v1290, %v1306
        %v1327 = vmul.f32 %v1291, %v1306
        %v1328 = vmul.f32 %v1292, %v1306
        %v1329 = vmul.f32 %v1293, %v1306
        %v1330 = vmul.f32 %v1294, %v1306
        %v1331 = vmul.f32 %v1295, %v1306
        %v1332 = vmul.f32 %v1296, %v1306
        %v1333 = vmul.f32 %v1297, %v1306
        %v1334 = vmul.f32 %v1298, %v1306
        %v1335 = vmul.f32 %v1299, %v1306
        %v1336 = vmul.f32 %v1300, %v1306
        %v1337 = vmul.f32 %v1301, %v1306
        %v1338 = vmul.f32 %v1302, %v1306
        %v1339 = vadd.f32 %v1238, %v1307
        %v1340 = vadd.f32 %v1239, %v1308
        %v1341 = vadd.f32 %v1240, %v1309
        %v1342 = vadd.f32 %v1241, %v1310
        %v1343 = vadd.f32 %v1242, %v1311
        %v1344 = vadd.f32 %v1243, %v1312
        %v1345 = vadd.f32 %v1244, %v1313
        %v1346 = vadd.f32 %v1245, %v1314
        %v1347 = vadd.f32 %v1246, %v1315
        %v1348 = vadd.f32 %v1247, %v1316
        %v1349 = vadd.f32 %v1248, %v1317
        %v1350 = vadd.f32 %v1249, %v1318
        %v1351 = vadd.f32 %v1250, %v1319
        %v1352 = vadd.f32 %v1251, %v1320
        %v1353 = vadd.f32 %v1252, %v1321
        %v1354 = vadd.f32 %v1253, %v1322
        %v1355 = vadd.f32 %v1254, %v1323
        %v1356 = vadd.f32 %v1255, %v1324
        %v1357 = vadd.f32 %v1256, %v1325
        %v1358 = vadd.f32 %v1257, %v1326
        %v1359 = vadd.f32 %v1258, %v1327
        %v1360 = vadd.f32 %v1259, %v1328
        %v1361 = vadd.f32 %v1260, %v1329
        %v1362 = vadd.f32 %v1261, %v1330
        %v1363 = vadd.f32 %v1262, %v1331
        %v1364 = vadd.f32 %v1263, %v1332
        %v1365 = vadd.f32 %v1264, %v1333
        %v1366 = vadd.f32 %v1265, %v1334
        %v1367 = vadd.f32 %v1266, %v1335
        %v1368 = vadd.f32 %v1267, %v1336
        %v1369 = vadd.f32 %v1268, %v1337
        %v1370 = vadd.f32 %v1269, %v1338
        %v1371 = vld [vmem:[#allocation9 + $0x6] sm:$0x1]
        %s1372 = scalar_lea.vmem [#allocation2], 64
        %v1373 = vld [vmem:[%s1372 + $0x7] sm:$0xff]
        %v1374 = vld [vmem:[%s1372 + $0xf] sm:$0xff]
        %v1375 = vld [vmem:[%s1372 + $0x27] sm:$0xff]
        %v1376 = vld [vmem:[%s1372 + $0x2f] sm:$0xff]
        %v1377 = vld [vmem:[%s1372 + $0x47] sm:$0xff]
        %v1378 = vld [vmem:[%s1372 + $0x4f] sm:$0xff]
        %v1379 = vld [vmem:[%s1372 + $0x67] sm:$0xff]
        %v1380 = vld [vmem:[%s1372 + $0x6f] sm:$0xff]
        %v1381 = vld [vmem:[%s1372 + $0x87] sm:$0xff]
        %v1382 = vld [vmem:[%s1372 + $0x8f] sm:$0xff]
        %v1383 = vld [vmem:[%s1372 + $0xa7] sm:$0xff]
        %v1384 = vld [vmem:[%s1372 + $0xaf] sm:$0xff]
        %v1385 = vld [vmem:[%s1372 + $0xc7] sm:$0xff]
        %v1386 = vld [vmem:[%s1372 + $0xcf] sm:$0xff]
        %v1387 = vld [vmem:[%s1372 + $0xe7] sm:$0xff]
        %v1388 = vld [vmem:[%s1372 + $0xef] sm:$0xff]
        %v1389 = vld [vmem:[%s1372 + $0x107] sm:$0xff]
        %v1390 = vld [vmem:[%s1372 + $0x10f] sm:$0xff]
        %v1391 = vld [vmem:[%s1372 + $0x127] sm:$0xff]
        %v1392 = vld [vmem:[%s1372 + $0x12f] sm:$0xff]
        %v1393 = vld [vmem:[%s1372 + $0x147] sm:$0xff]
        %v1394 = vld [vmem:[%s1372 + $0x14f] sm:$0xff]
        %v1395 = vld [vmem:[%s1372 + $0x167] sm:$0xff]
        %v1396 = vld [vmem:[%s1372 + $0x16f] sm:$0xff]
        %v1397 = vld [vmem:[%s1372 + $0x187] sm:$0xff]
        %v1398 = vld [vmem:[%s1372 + $0x18f] sm:$0xff]
        %v1399 = vld [vmem:[%s1372 + $0x1a7] sm:$0xff]
        %v1400 = vld [vmem:[%s1372 + $0x1af] sm:$0xff]
        %v1401 = vld [vmem:[%s1372 + $0x1c7] sm:$0xff]
        %v1402 = vld [vmem:[%s1372 + $0x1cf] sm:$0xff]
        %v1403 = vld [vmem:[%s1372 + $0x1e7] sm:$0xff]
        %v1404 = vld [vmem:[%s1372 + $0x1ef] sm:$0xff]
        %v1405 = vlaneseq
        %v1406 = vshrl.u32 %v1405, 7
        %v1407 = vsub.s32 0, %v1406
        %v1408 = vrot.slane %v1371, %v1407
        %v1409 = vmul.f32 %v1373, %v1408
        %v1410 = vmul.f32 %v1374, %v1408
        %v1411 = vmul.f32 %v1375, %v1408
        %v1412 = vmul.f32 %v1376, %v1408
        %v1413 = vmul.f32 %v1377, %v1408
        %v1414 = vmul.f32 %v1378, %v1408
        %v1415 = vmul.f32 %v1379, %v1408
        %v1416 = vmul.f32 %v1380, %v1408
        %v1417 = vmul.f32 %v1381, %v1408
        %v1418 = vmul.f32 %v1382, %v1408
        %v1419 = vmul.f32 %v1383, %v1408
        %v1420 = vmul.f32 %v1384, %v1408
        %v1421 = vmul.f32 %v1385, %v1408
        %v1422 = vmul.f32 %v1386, %v1408
        %v1423 = vmul.f32 %v1387, %v1408
        %v1424 = vmul.f32 %v1388, %v1408
        %v1425 = vmul.f32 %v1389, %v1408
        %v1426 = vmul.f32 %v1390, %v1408
        %v1427 = vmul.f32 %v1391, %v1408
        %v1428 = vmul.f32 %v1392, %v1408
        %v1429 = vmul.f32 %v1393, %v1408
        %v1430 = vmul.f32 %v1394, %v1408
        %v1431 = vmul.f32 %v1395, %v1408
        %v1432 = vmul.f32 %v1396, %v1408
        %v1433 = vmul.f32 %v1397, %v1408
        %v1434 = vmul.f32 %v1398, %v1408
        %v1435 = vmul.f32 %v1399, %v1408
        %v1436 = vmul.f32 %v1400, %v1408
        %v1437 = vmul.f32 %v1401, %v1408
        %v1438 = vmul.f32 %v1402, %v1408
        %v1439 = vmul.f32 %v1403, %v1408
        %v1440 = vmul.f32 %v1404, %v1408
        %v1441 = vadd.f32 %v1339, %v1409
        %v1442 = vadd.f32 %v1340, %v1410
        %v1443 = vadd.f32 %v1341, %v1411
        %v1444 = vadd.f32 %v1342, %v1412
        %v1445 = vadd.f32 %v1343, %v1413
        %v1446 = vadd.f32 %v1344, %v1414
        %v1447 = vadd.f32 %v1345, %v1415
        %v1448 = vadd.f32 %v1346, %v1416
        %v1449 = vadd.f32 %v1347, %v1417
        %v1450 = vadd.f32 %v1348, %v1418
        %v1451 = vadd.f32 %v1349, %v1419
        %v1452 = vadd.f32 %v1350, %v1420
        %v1453 = vadd.f32 %v1351, %v1421
        %v1454 = vadd.f32 %v1352, %v1422
        %v1455 = vadd.f32 %v1353, %v1423
        %v1456 = vadd.f32 %v1354, %v1424
        %v1457 = vadd.f32 %v1355, %v1425
        %v1458 = vadd.f32 %v1356, %v1426
        %v1459 = vadd.f32 %v1357, %v1427
        %v1460 = vadd.f32 %v1358, %v1428
        %v1461 = vadd.f32 %v1359, %v1429
        %v1462 = vadd.f32 %v1360, %v1430
        %v1463 = vadd.f32 %v1361, %v1431
        %v1464 = vadd.f32 %v1362, %v1432
        %v1465 = vadd.f32 %v1363, %v1433
        %v1466 = vadd.f32 %v1364, %v1434
        %v1467 = vadd.f32 %v1365, %v1435
        %v1468 = vadd.f32 %v1366, %v1436
        %v1469 = vadd.f32 %v1367, %v1437
        %v1470 = vadd.f32 %v1368, %v1438
        %v1471 = vadd.f32 %v1369, %v1439
        %v1472 = vadd.f32 %v1370, %v1440
        %v1473 = vld [vmem:[#allocation9 + $0x7] sm:$0x1]
        %v1474 = vld [vmem:[%s1372 + $0x8] sm:$0xff]
        %v1475 = vld [vmem:[%s1372 + $0x10] sm:$0xff]
        %v1476 = vld [vmem:[%s1372 + $0x28] sm:$0xff]
        %v1477 = vld [vmem:[%s1372 + $0x30] sm:$0xff]
        %v1478 = vld [vmem:[%s1372 + $0x48] sm:$0xff]
        %v1479 = vld [vmem:[%s1372 + $0x50] sm:$0xff]
        %v1480 = vld [vmem:[%s1372 + $0x68] sm:$0xff]
        %v1481 = vld [vmem:[%s1372 + $0x70] sm:$0xff]
        %v1482 = vld [vmem:[%s1372 + $0x88] sm:$0xff]
        %v1483 = vld [vmem:[%s1372 + $0x90] sm:$0xff]
        %v1484 = vld [vmem:[%s1372 + $0xa8] sm:$0xff]
        %v1485 = vld [vmem:[%s1372 + $0xb0] sm:$0xff]
        %v1486 = vld [vmem:[%s1372 + $0xc8] sm:$0xff]
        %v1487 = vld [vmem:[%s1372 + $0xd0] sm:$0xff]
        %v1488 = vld [vmem:[%s1372 + $0xe8] sm:$0xff]
        %v1489 = vld [vmem:[%s1372 + $0xf0] sm:$0xff]
        %v1490 = vld [vmem:[%s1372 + $0x108] sm:$0xff]
        %v1491 = vld [vmem:[%s1372 + $0x110] sm:$0xff]
        %v1492 = vld [vmem:[%s1372 + $0x128] sm:$0xff]
        %v1493 = vld [vmem:[%s1372 + $0x130] sm:$0xff]
        %v1494 = vld [vmem:[%s1372 + $0x148] sm:$0xff]
        %v1495 = vld [vmem:[%s1372 + $0x150] sm:$0xff]
        %v1496 = vld [vmem:[%s1372 + $0x168] sm:$0xff]
        %v1497 = vld [vmem:[%s1372 + $0x170] sm:$0xff]
        %v1498 = vld [vmem:[%s1372 + $0x188] sm:$0xff]
        %v1499 = vld [vmem:[%s1372 + $0x190] sm:$0xff]
        %v1500 = vld [vmem:[%s1372 + $0x1a8] sm:$0xff]
        %v1501 = vld [vmem:[%s1372 + $0x1b0] sm:$0xff]
        %v1502 = vld [vmem:[%s1372 + $0x1c8] sm:$0xff]
        %v1503 = vld [vmem:[%s1372 + $0x1d0] sm:$0xff]
        %v1504 = vld [vmem:[%s1372 + $0x1e8] sm:$0xff]
        %v1505 = vld [vmem:[%s1372 + $0x1f0] sm:$0xff]
        %v1506 = vlaneseq
        %v1507 = vshrl.u32 %v1506, 7
        %v1508 = vsub.s32 0, %v1507
        %v1509 = vrot.slane %v1473, %v1508
        %v1510 = vmul.f32 %v1474, %v1509
        %v1511 = vmul.f32 %v1475, %v1509
        %v1512 = vmul.f32 %v1476, %v1509
        %v1513 = vmul.f32 %v1477, %v1509
        %v1514 = vmul.f32 %v1478, %v1509
        %v1515 = vmul.f32 %v1479, %v1509
        %v1516 = vmul.f32 %v1480, %v1509
        %v1517 = vmul.f32 %v1481, %v1509
        %v1518 = vmul.f32 %v1482, %v1509
        %v1519 = vmul.f32 %v1483, %v1509
        %v1520 = vmul.f32 %v1484, %v1509
        %v1521 = vmul.f32 %v1485, %v1509
        %v1522 = vmul.f32 %v1486, %v1509
        %v1523 = vmul.f32 %v1487, %v1509
        %v1524 = vmul.f32 %v1488, %v1509
        %v1525 = vmul.f32 %v1489, %v1509
        %v1526 = vmul.f32 %v1490, %v1509
        %v1527 = vmul.f32 %v1491, %v1509
        %v1528 = vmul.f32 %v1492, %v1509
        %v1529 = vmul.f32 %v1493, %v1509
        %v1530 = vmul.f32 %v1494, %v1509
        %v1531 = vmul.f32 %v1495, %v1509
        %v1532 = vmul.f32 %v1496, %v1509
        %v1533 = vmul.f32 %v1497, %v1509
        %v1534 = vmul.f32 %v1498, %v1509
        %v1535 = vmul.f32 %v1499, %v1509
        %v1536 = vmul.f32 %v1500, %v1509
        %v1537 = vmul.f32 %v1501, %v1509
        %v1538 = vmul.f32 %v1502, %v1509
        %v1539 = vmul.f32 %v1503, %v1509
        %v1540 = vmul.f32 %v1504, %v1509
        %v1541 = vmul.f32 %v1505, %v1509
        %v1542 = vadd.f32 %v1441, %v1510
        %v1543 = vadd.f32 %v1442, %v1511
        %v1544 = vadd.f32 %v1443, %v1512
        %v1545 = vadd.f32 %v1444, %v1513
        %v1546 = vadd.f32 %v1445, %v1514
        %v1547 = vadd.f32 %v1446, %v1515
        %v1548 = vadd.f32 %v1447, %v1516
        %v1549 = vadd.f32 %v1448, %v1517
        %v1550 = vadd.f32 %v1449, %v1518
        %v1551 = vadd.f32 %v1450, %v1519
        %v1552 = vadd.f32 %v1451, %v1520
        %v1553 = vadd.f32 %v1452, %v1521
        %v1554 = vadd.f32 %v1453, %v1522
        %v1555 = vadd.f32 %v1454, %v1523
        %v1556 = vadd.f32 %v1455, %v1524
        %v1557 = vadd.f32 %v1456, %v1525
        %v1558 = vadd.f32 %v1457, %v1526
        %v1559 = vadd.f32 %v1458, %v1527
        %v1560 = vadd.f32 %v1459, %v1528
        %v1561 = vadd.f32 %v1460, %v1529
        %v1562 = vadd.f32 %v1461, %v1530
        %v1563 = vadd.f32 %v1462, %v1531
        %v1564 = vadd.f32 %v1463, %v1532
        %v1565 = vadd.f32 %v1464, %v1533
        %v1566 = vadd.f32 %v1465, %v1534
        %v1567 = vadd.f32 %v1466, %v1535
        %v1568 = vadd.f32 %v1467, %v1536
        %v1569 = vadd.f32 %v1468, %v1537
        %v1570 = vadd.f32 %v1469, %v1538
        %v1571 = vadd.f32 %v1470, %v1539
        %v1572 = vadd.f32 %v1471, %v1540
        %v1573 = vadd.f32 %v1472, %v1541
        %v1574 = vld [vmem:[#allocation9 + $0x8] sm:$0x1]
        %v1575 = vld [vmem:[%s1372 + $0x9] sm:$0xff]
        %v1576 = vld [vmem:[%s1372 + $0x11] sm:$0xff]
        %v1577 = vld [vmem:[%s1372 + $0x29] sm:$0xff]
        %v1578 = vld [vmem:[%s1372 + $0x31] sm:$0xff]
        %v1579 = vld [vmem:[%s1372 + $0x49] sm:$0xff]
        %v1580 = vld [vmem:[%s1372 + $0x51] sm:$0xff]
        %v1581 = vld [vmem:[%s1372 + $0x69] sm:$0xff]
        %v1582 = vld [vmem:[%s1372 + $0x71] sm:$0xff]
        %v1583 = vld [vmem:[%s1372 + $0x89] sm:$0xff]
        %v1584 = vld [vmem:[%s1372 + $0x91] sm:$0xff]
        %v1585 = vld [vmem:[%s1372 + $0xa9] sm:$0xff]
        %v1586 = vld [vmem:[%s1372 + $0xb1] sm:$0xff]
        %v1587 = vld [vmem:[%s1372 + $0xc9] sm:$0xff]
        %v1588 = vld [vmem:[%s1372 + $0xd1] sm:$0xff]
        %v1589 = vld [vmem:[%s1372 + $0xe9] sm:$0xff]
        %v1590 = vld [vmem:[%s1372 + $0xf1] sm:$0xff]
        %v1591 = vld [vmem:[%s1372 + $0x109] sm:$0xff]
        %v1592 = vld [vmem:[%s1372 + $0x111] sm:$0xff]
        %v1593 = vld [vmem:[%s1372 + $0x129] sm:$0xff]
        %v1594 = vld [vmem:[%s1372 + $0x131] sm:$0xff]
        %v1595 = vld [vmem:[%s1372 + $0x149] sm:$0xff]
        %v1596 = vld [vmem:[%s1372 + $0x151] sm:$0xff]
        %v1597 = vld [vmem:[%s1372 + $0x169] sm:$0xff]
        %v1598 = vld [vmem:[%s1372 + $0x171] sm:$0xff]
        %v1599 = vld [vmem:[%s1372 + $0x189] sm:$0xff]
        %v1600 = vld [vmem:[%s1372 + $0x191] sm:$0xff]
        %v1601 = vld [vmem:[%s1372 + $0x1a9] sm:$0xff]
        %v1602 = vld [vmem:[%s1372 + $0x1b1] sm:$0xff]
        %v1603 = vld [vmem:[%s1372 + $0x1c9] sm:$0xff]
        %v1604 = vld [vmem:[%s1372 + $0x1d1] sm:$0xff]
        %v1605 = vld [vmem:[%s1372 + $0x1e9] sm:$0xff]
        %v1606 = vld [vmem:[%s1372 + $0x1f1] sm:$0xff]
        %v1607 = vlaneseq
        %v1608 = vshrl.u32 %v1607, 7
        %v1609 = vsub.s32 0, %v1608
        %v1610 = vrot.slane %v1574, %v1609
        %v1611 = vmul.f32 %v1575, %v1610
        %v1612 = vmul.f32 %v1576, %v1610
        %v1613 = vmul.f32 %v1577, %v1610
        %v1614 = vmul.f32 %v1578, %v1610
        %v1615 = vmul.f32 %v1579, %v1610
        %v1616 = vmul.f32 %v1580, %v1610
        %v1617 = vmul.f32 %v1581, %v1610
        %v1618 = vmul.f32 %v1582, %v1610
        %v1619 = vmul.f32 %v1583, %v1610
        %v1620 = vmul.f32 %v1584, %v1610
        %v1621 = vmul.f32 %v1585, %v1610
        %v1622 = vmul.f32 %v1586, %v1610
        %v1623 = vmul.f32 %v1587, %v1610
        %v1624 = vmul.f32 %v1588, %v1610
        %v1625 = vmul.f32 %v1589, %v1610
        %v1626 = vmul.f32 %v1590, %v1610
        %v1627 = vmul.f32 %v1591, %v1610
        %v1628 = vmul.f32 %v1592, %v1610
        %v1629 = vmul.f32 %v1593, %v1610
        %v1630 = vmul.f32 %v1594, %v1610
        %v1631 = vmul.f32 %v1595, %v1610
        %v1632 = vmul.f32 %v1596, %v1610
        %v1633 = vmul.f32 %v1597, %v1610
        %v1634 = vmul.f32 %v1598, %v1610
        %v1635 = vmul.f32 %v1599, %v1610
        %v1636 = vmul.f32 %v1600, %v1610
        %v1637 = vmul.f32 %v1601, %v1610
        %v1638 = vmul.f32 %v1602, %v1610
        %v1639 = vmul.f32 %v1603, %v1610
        %v1640 = vmul.f32 %v1604, %v1610
        %v1641 = vmul.f32 %v1605, %v1610
        %v1642 = vmul.f32 %v1606, %v1610
        %v1643 = vadd.f32 %v1542, %v1611
        %v1644 = vadd.f32 %v1543, %v1612
        %v1645 = vadd.f32 %v1544, %v1613
        %v1646 = vadd.f32 %v1545, %v1614
        %v1647 = vadd.f32 %v1546, %v1615
        %v1648 = vadd.f32 %v1547, %v1616
        %v1649 = vadd.f32 %v1548, %v1617
        %v1650 = vadd.f32 %v1549, %v1618
        %v1651 = vadd.f32 %v1550, %v1619
        %v1652 = vadd.f32 %v1551, %v1620
        %v1653 = vadd.f32 %v1552, %v1621
        %v1654 = vadd.f32 %v1553, %v1622
        %v1655 = vadd.f32 %v1554, %v1623
        %v1656 = vadd.f32 %v1555, %v1624
        %v1657 = vadd.f32 %v1556, %v1625
        %v1658 = vadd.f32 %v1557, %v1626
        %v1659 = vadd.f32 %v1558, %v1627
        %v1660 = vadd.f32 %v1559, %v1628
        %v1661 = vadd.f32 %v1560, %v1629
        %v1662 = vadd.f32 %v1561, %v1630
        %v1663 = vadd.f32 %v1562, %v1631
        %v1664 = vadd.f32 %v1563, %v1632
        %v1665 = vadd.f32 %v1564, %v1633
        %v1666 = vadd.f32 %v1565, %v1634
        %v1667 = vadd.f32 %v1566, %v1635
        %v1668 = vadd.f32 %v1567, %v1636
        %v1669 = vadd.f32 %v1568, %v1637
        %v1670 = vadd.f32 %v1569, %v1638
        %v1671 = vadd.f32 %v1570, %v1639
        %v1672 = vadd.f32 %v1571, %v1640
        %v1673 = vadd.f32 %v1572, %v1641
        %v1674 = vadd.f32 %v1573, %v1642
        %v1675 = vld [vmem:[#allocation11] sm:$0x1]
        %v1677 = vlaneseq
        %v1678 = vshrl.u32 %v1677, 7
        %v1679 = vsub.s32 0, %v1678
        %v1680 = vrot.slane %v1675, %v1679
        %v1682 = vadd.f32 %v1643, %v1680
        %v1683 = vadd.f32 %v1644, %v1680
        %v1684 = vadd.f32 %v1645, %v1680
        %v1685 = vadd.f32 %v1646, %v1680
        %v1686 = vadd.f32 %v1647, %v1680
        %v1687 = vadd.f32 %v1648, %v1680
        %v1688 = vadd.f32 %v1649, %v1680
        %v1689 = vadd.f32 %v1650, %v1680
        %v1690 = vadd.f32 %v1651, %v1680
        %v1691 = vadd.f32 %v1652, %v1680
        %v1692 = vadd.f32 %v1653, %v1680
        %v1693 = vadd.f32 %v1654, %v1680
        %v1694 = vadd.f32 %v1655, %v1680
        %v1695 = vadd.f32 %v1656, %v1680
        %v1696 = vadd.f32 %v1657, %v1680
        %v1697 = vadd.f32 %v1658, %v1680
        %v1698 = vadd.f32 %v1659, %v1680
        %v1699 = vadd.f32 %v1660, %v1680
        %v1700 = vadd.f32 %v1661, %v1680
        %v1701 = vadd.f32 %v1662, %v1680
        %v1702 = vadd.f32 %v1663, %v1680
        %v1703 = vadd.f32 %v1664, %v1680
        %v1704 = vadd.f32 %v1665, %v1680
        %v1705 = vadd.f32 %v1666, %v1680
        %v1706 = vadd.f32 %v1667, %v1680
        %v1707 = vadd.f32 %v1668, %v1680
        %v1708 = vadd.f32 %v1669, %v1680
        %v1709 = vadd.f32 %v1670, %v1680
        %v1710 = vadd.f32 %v1671, %v1680
        %v1711 = vadd.f32 %v1672, %v1680
        %v1712 = vadd.f32 %v1673, %v1680
        %v1713 = vadd.f32 %v1674, %v1680
        %v1714 = vmul.f32 %v1682, 0.5
        %v1715 = vmul.f32 %v1683, 0.5
        %v1716 = vmul.f32 %v1684, 0.5
        %v1717 = vmul.f32 %v1685, 0.5
        %v1718 = vmul.f32 %v1686, 0.5
        %v1719 = vmul.f32 %v1687, 0.5
        %v1720 = vmul.f32 %v1688, 0.5
        %v1721 = vmul.f32 %v1689, 0.5
        %v1722 = vmul.f32 %v1690, 0.5
        %v1723 = vmul.f32 %v1691, 0.5
        %v1724 = vmul.f32 %v1692, 0.5
        %v1725 = vmul.f32 %v1693, 0.5
        %v1726 = vmul.f32 %v1694, 0.5
        %v1727 = vmul.f32 %v1695, 0.5
        %v1728 = vmul.f32 %v1696, 0.5
        %v1729 = vmul.f32 %v1697, 0.5
        %v1730 = vmul.f32 %v1698, 0.5
        %v1731 = vmul.f32 %v1699, 0.5
        %v1732 = vmul.f32 %v1700, 0.5
        %v1733 = vmul.f32 %v1701, 0.5
        %v1734 = vmul.f32 %v1702, 0.5
        %v1735 = vmul.f32 %v1703, 0.5
        %v1736 = vmul.f32 %v1704, 0.5
        %v1737 = vmul.f32 %v1705, 0.5
        %v1738 = vmul.f32 %v1706, 0.5
        %v1739 = vmul.f32 %v1707, 0.5
        %v1740 = vmul.f32 %v1708, 0.5
        %v1741 = vmul.f32 %v1709, 0.5
        %v1742 = vmul.f32 %v1710, 0.5
        %v1743 = vmul.f32 %v1711, 0.5
        %v1744 = vmul.f32 %v1712, 0.5
        %v1745 = vmul.f32 %v1713, 0.5
        %v1746 = vmul.f32 %v1682, 0.70710677
        %v1747 = vmul.f32 %v1683, 0.70710677
        %v1748 = vmul.f32 %v1684, 0.70710677
        %v1749 = vmul.f32 %v1685, 0.70710677
        %v1750 = vmul.f32 %v1686, 0.70710677
        %v1751 = vmul.f32 %v1687, 0.70710677
        %v1752 = vmul.f32 %v1688, 0.70710677
        %v1753 = vmul.f32 %v1689, 0.70710677
        %v1754 = vmul.f32 %v1690, 0.70710677
        %v1755 = vmul.f32 %v1691, 0.70710677
        %v1756 = vmul.f32 %v1692, 0.70710677
        %v1757 = vmul.f32 %v1693, 0.70710677
        %v1758 = vmul.f32 %v1694, 0.70710677
        %v1759 = vmul.f32 %v1695, 0.70710677
        %v1760 = vmul.f32 %v1696, 0.70710677
        %v1761 = vmul.f32 %v1697, 0.70710677
        %v1762 = vmul.f32 %v1698, 0.70710677
        %v1763 = vmul.f32 %v1699, 0.70710677
        %v1764 = vmul.f32 %v1700, 0.70710677
        %v1765 = vmul.f32 %v1701, 0.70710677
        %v1766 = vmul.f32 %v1702, 0.70710677
        %v1767 = vmul.f32 %v1703, 0.70710677
        %v1768 = vmul.f32 %v1704, 0.70710677
        %v1769 = vmul.f32 %v1705, 0.70710677
        %v1770 = vmul.f32 %v1706, 0.70710677
        %v1771 = vmul.f32 %v1707, 0.70710677
        %v1772 = vmul.f32 %v1708, 0.70710677
        %v1773 = vmul.f32 %v1709, 0.70710677
        %v1774 = vmul.f32 %v1710, 0.70710677
        %v1775 = vmul.f32 %v1711, 0.70710677
        %v1776 = vmul.f32 %v1712, 0.70710677
        %v1777 = vmul.f32 %v1713, 0.70710677
        %v1778 = vand.u32 2147483647, %v1746
        %v1779 = vand.u32 2147483647, %v1747
        %v1780 = vand.u32 2147483647, %v1748
        %v1781 = vand.u32 2147483647, %v1749
        %v1782 = vand.u32 2147483647, %v1750
        %v1783 = vand.u32 2147483647, %v1751
        %v1784 = vand.u32 2147483647, %v1752
        %v1785 = vand.u32 2147483647, %v1753
        %v1786 = vand.u32 2147483647, %v1754
        %v1787 = vand.u32 2147483647, %v1755
        %v1788 = vand.u32 2147483647, %v1756
        %v1789 = vand.u32 2147483647, %v1757
        %v1790 = vand.u32 2147483647, %v1758
        %v1791 = vand.u32 2147483647, %v1759
        %v1792 = vand.u32 2147483647, %v1760
        %v1793 = vand.u32 2147483647, %v1761
        %v1794 = vand.u32 2147483647, %v1762
        %v1795 = vand.u32 2147483647, %v1763
        %v1796 = vand.u32 2147483647, %v1764
        %v1797 = vand.u32 2147483647, %v1765
        %v1798 = vand.u32 2147483647, %v1766
        %v1799 = vand.u32 2147483647, %v1767
        %v1800 = vand.u32 2147483647, %v1768
        %v1801 = vand.u32 2147483647, %v1769
        %v1802 = vand.u32 2147483647, %v1770
        %v1803 = vand.u32 2147483647, %v1771
        %v1804 = vand.u32 2147483647, %v1772
        %v1805 = vand.u32 2147483647, %v1773
        %v1806 = vand.u32 2147483647, %v1774
        %v1807 = vand.u32 2147483647, %v1775
        %v1808 = vand.u32 2147483647, %v1776
        %v1809 = vand.u32 2147483647, %v1777
        %v1810 = vmul.f32 %v1778, 0.3275911
        %v1811 = vmul.f32 %v1779, 0.3275911
        %v1812 = vmul.f32 %v1780, 0.3275911
        %v1813 = vmul.f32 %v1781, 0.3275911
        %v1814 = vmul.f32 %v1782, 0.3275911
        %v1815 = vmul.f32 %v1783, 0.3275911
        %v1816 = vmul.f32 %v1784, 0.3275911
        %v1817 = vmul.f32 %v1785, 0.3275911
        %v1818 = vmul.f32 %v1786, 0.3275911
        %v1819 = vmul.f32 %v1787, 0.3275911
        %v1820 = vmul.f32 %v1788, 0.3275911
        %v1821 = vmul.f32 %v1789, 0.3275911
        %v1822 = vmul.f32 %v1790, 0.3275911
        %v1823 = vmul.f32 %v1791, 0.3275911
        %v1824 = vmul.f32 %v1792, 0.3275911
        %v1825 = vmul.f32 %v1793, 0.3275911
        %v1826 = vmul.f32 %v1794, 0.3275911
        %v1827 = vmul.f32 %v1795, 0.3275911
        %v1828 = vmul.f32 %v1796, 0.3275911
        %v1829 = vmul.f32 %v1797, 0.3275911
        %v1830 = vmul.f32 %v1798, 0.3275911
        %v1831 = vmul.f32 %v1799, 0.3275911
        %v1832 = vmul.f32 %v1800, 0.3275911
        %v1833 = vmul.f32 %v1801, 0.3275911
        %v1834 = vmul.f32 %v1802, 0.3275911
        %v1835 = vmul.f32 %v1803, 0.3275911
        %v1836 = vmul.f32 %v1804, 0.3275911
        %v1837 = vmul.f32 %v1805, 0.3275911
        %v1838 = vmul.f32 %v1806, 0.3275911
        %v1839 = vmul.f32 %v1807, 0.3275911
        %v1840 = vmul.f32 %v1808, 0.3275911
        %v1841 = vmul.f32 %v1809, 0.3275911
        %v1842 = vadd.f32 %v1810, 1.0
        %v1843 = vadd.f32 %v1811, 1.0
        %v1844 = vadd.f32 %v1812, 1.0
        %v1845 = vadd.f32 %v1813, 1.0
        %v1846 = vadd.f32 %v1814, 1.0
        %v1847 = vadd.f32 %v1815, 1.0
        %v1848 = vadd.f32 %v1816, 1.0
        %v1849 = vadd.f32 %v1817, 1.0
        %v1850 = vadd.f32 %v1818, 1.0
        %v1851 = vadd.f32 %v1819, 1.0
        %v1852 = vadd.f32 %v1820, 1.0
        %v1853 = vadd.f32 %v1821, 1.0
        %v1854 = vadd.f32 %v1822, 1.0
        %v1855 = vadd.f32 %v1823, 1.0
        %v1856 = vadd.f32 %v1824, 1.0
        %v1857 = vadd.f32 %v1825, 1.0
        %v1858 = vadd.f32 %v1826, 1.0
        %v1859 = vadd.f32 %v1827, 1.0
        %v1860 = vadd.f32 %v1828, 1.0
        %v1861 = vadd.f32 %v1829, 1.0
        %v1862 = vadd.f32 %v1830, 1.0
        %v1863 = vadd.f32 %v1831, 1.0
        %v1864 = vadd.f32 %v1832, 1.0
        %v1865 = vadd.f32 %v1833, 1.0
        %v1866 = vadd.f32 %v1834, 1.0
        %v1867 = vadd.f32 %v1835, 1.0
        %v1868 = vadd.f32 %v1836, 1.0
        %v1869 = vadd.f32 %v1837, 1.0
        %v1870 = vadd.f32 %v1838, 1.0
        %v1871 = vadd.f32 %v1839, 1.0
        %v1872 = vadd.f32 %v1840, 1.0
        %v1873 = vadd.f32 %v1841, 1.0
        %v1874 = vrcp.pop %v1842
        %v1875 = vrcp.pop %v1843
        %v1876 = vrcp.pop %v1844
        %v1877 = vrcp.pop %v1845
        %v1878 = vrcp.pop %v1846
        %v1879 = vrcp.pop %v1847
        %v1880 = vrcp.pop %v1848
        %v1881 = vrcp.pop %v1849
        %v1882 = vrcp.pop %v1850
        %v1883 = vrcp.pop %v1851
        %v1884 = vrcp.pop %v1852
        %v1885 = vrcp.pop %v1853
        %v1886 = vrcp.pop %v1854
        %v1887 = vrcp.pop %v1855
        %v1888 = vrcp.pop %v1856
        %v1889 = vrcp.pop %v1857
        %v1890 = vrcp.pop %v1858
        %v1891 = vrcp.pop %v1859
        %v1892 = vrcp.pop %v1860
        %v1893 = vrcp.pop %v1861
        %v1894 = vrcp.pop %v1862
        %v1895 = vrcp.pop %v1863
        %v1896 = vrcp.pop %v1864
        %v1897 = vrcp.pop %v1865
        %v1898 = vrcp.pop %v1866
        %v1899 = vrcp.pop %v1867
        %v1900 = vrcp.pop %v1868
        %v1901 = vrcp.pop %v1869
        %v1902 = vrcp.pop %v1870
        %v1903 = vrcp.pop %v1871
        %v1904 = vrcp.pop %v1872
        %v1905 = vrcp.pop %v1873
        %v1906 = vmul.f32 %v1874, 1.0614054
        %v1907 = vmul.f32 %v1875, 1.0614054
        %v1908 = vmul.f32 %v1876, 1.0614054
        %v1909 = vmul.f32 %v1877, 1.0614054
        %v1910 = vmul.f32 %v1878, 1.0614054
        %v1911 = vmul.f32 %v1879, 1.0614054
        %v1912 = vmul.f32 %v1880, 1.0614054
        %v1913 = vmul.f32 %v1881, 1.0614054
        %v1914 = vmul.f32 %v1882, 1.0614054
        %v1915 = vmul.f32 %v1883, 1.0614054
        %v1916 = vmul.f32 %v1884, 1.0614054
        %v1917 = vmul.f32 %v1885, 1.0614054
        %v1918 = vmul.f32 %v1886, 1.0614054
        %v1919 = vmul.f32 %v1887, 1.0614054
        %v1920 = vmul.f32 %v1888, 1.0614054
        %v1921 = vmul.f32 %v1889, 1.0614054
        %v1922 = vmul.f32 %v1890, 1.0614054
        %v1923 = vmul.f32 %v1891, 1.0614054
        %v1924 = vmul.f32 %v1892, 1.0614054
        %v1925 = vmul.f32 %v1893, 1.0614054
        %v1926 = vmul.f32 %v1894, 1.0614054
        %v1927 = vmul.f32 %v1895, 1.0614054
        %v1928 = vmul.f32 %v1896, 1.0614054
        %v1929 = vmul.f32 %v1897, 1.0614054
        %v1930 = vmul.f32 %v1898, 1.0614054
        %v1931 = vmul.f32 %v1899, 1.0614054
        %v1932 = vmul.f32 %v1900, 1.0614054
        %v1933 = vmul.f32 %v1901, 1.0614054
        %v1934 = vmul.f32 %v1902, 1.0614054
        %v1935 = vmul.f32 %v1903, 1.0614054
        %v1936 = vmul.f32 %v1904, 1.0614054
        %v1937 = vmul.f32 %v1905, 1.0614054
        %v1938 = vsub.f32 %v1906, 1.4531521
        %v1939 = vsub.f32 %v1907, 1.4531521
        %v1940 = vsub.f32 %v1908, 1.4531521
        %v1941 = vsub.f32 %v1909, 1.4531521
        %v1942 = vsub.f32 %v1910, 1.4531521
        %v1943 = vsub.f32 %v1911, 1.4531521
        %v1944 = vsub.f32 %v1912, 1.4531521
        %v1945 = vsub.f32 %v1913, 1.4531521
        %v1946 = vsub.f32 %v1914, 1.4531521
        %v1947 = vsub.f32 %v1915, 1.4531521
        %v1948 = vsub.f32 %v1916, 1.4531521
        %v1949 = vsub.f32 %v1917, 1.4531521
        %v1950 = vsub.f32 %v1918, 1.4531521
        %v1951 = vsub.f32 %v1919, 1.4531521
        %v1952 = vsub.f32 %v1920, 1.4531521
        %v1953 = vsub.f32 %v1921, 1.4531521
        %v1954 = vsub.f32 %v1922, 1.4531521
        %v1955 = vsub.f32 %v1923, 1.4531521
        %v1956 = vsub.f32 %v1924, 1.4531521
        %v1957 = vsub.f32 %v1925, 1.4531521
        %v1958 = vsub.f32 %v1926, 1.4531521
        %v1959 = vsub.f32 %v1927, 1.4531521
        %v1960 = vsub.f32 %v1928, 1.4531521
        %v1961 = vsub.f32 %v1929, 1.4531521
        %v1962 = vsub.f32 %v1930, 1.4531521
        %v1963 = vsub.f32 %v1931, 1.4531521
        %v1964 = vsub.f32 %v1932, 1.4531521
        %v1965 = vsub.f32 %v1933, 1.4531521
        %v1966 = vsub.f32 %v1934, 1.4531521
        %v1967 = vsub.f32 %v1935, 1.4531521
        %v1968 = vsub.f32 %v1936, 1.4531521
        %v1969 = vsub.f32 %v1937, 1.4531521
        %v1970 = vmul.f32 %v1938, %v1874
        %v1971 = vmul.f32 %v1939, %v1875
        %v1972 = vmul.f32 %v1940, %v1876
        %v1973 = vmul.f32 %v1941, %v1877
        %v1974 = vmul.f32 %v1942, %v1878
        %v1975 = vmul.f32 %v1943, %v1879
        %v1976 = vmul.f32 %v1944, %v1880
        %v1977 = vmul.f32 %v1945, %v1881
        %v1978 = vmul.f32 %v1946, %v1882
        %v1979 = vmul.f32 %v1947, %v1883
        %v1980 = vmul.f32 %v1948, %v1884
        %v1981 = vmul.f32 %v1949, %v1885
        %v1982 = vmul.f32 %v1950, %v1886
        %v1983 = vmul.f32 %v1951, %v1887
        %v1984 = vmul.f32 %v1952, %v1888
        %v1985 = vmul.f32 %v1953, %v1889
        %v1986 = vmul.f32 %v1954, %v1890
        %v1987 = vmul.f32 %v1955, %v1891
        %v1988 = vmul.f32 %v1956, %v1892
        %v1989 = vmul.f32 %v1957, %v1893
        %v1990 = vmul.f32 %v1958, %v1894
        %v1991 = vmul.f32 %v1959, %v1895
        %v1992 = vmul.f32 %v1960, %v1896
        %v1993 = vmul.f32 %v1961, %v1897
        %v1994 = vmul.f32 %v1962, %v1898
        %v1995 = vmul.f32 %v1963, %v1899
        %v1996 = vmul.f32 %v1964, %v1900
        %v1997 = vmul.f32 %v1965, %v1901
        %v1998 = vmul.f32 %v1966, %v1902
        %v1999 = vmul.f32 %v1967, %v1903
        %v2000 = vmul.f32 %v1968, %v1904
        %v2001 = vmul.f32 %v1969, %v1905
        %v2002 = vadd.f32 %v1970, 1.4214138
        %v2003 = vadd.f32 %v1971, 1.4214138
        %v2004 = vadd.f32 %v1972, 1.4214138
        %v2005 = vadd.f32 %v1973, 1.4214138
        %v2006 = vadd.f32 %v1974, 1.4214138
        %v2007 = vadd.f32 %v1975, 1.4214138
        %v2008 = vadd.f32 %v1976, 1.4214138
        %v2009 = vadd.f32 %v1977, 1.4214138
        %v2010 = vadd.f32 %v1978, 1.4214138
        %v2011 = vadd.f32 %v1979, 1.4214138
        %v2012 = vadd.f32 %v1980, 1.4214138
        %v2013 = vadd.f32 %v1981, 1.4214138
        %v2014 = vadd.f32 %v1982, 1.4214138
        %v2015 = vadd.f32 %v1983, 1.4214138
        %v2016 = vadd.f32 %v1984, 1.4214138
        %v2017 = vadd.f32 %v1985, 1.4214138
        %v2018 = vadd.f32 %v1986, 1.4214138
        %v2019 = vadd.f32 %v1987, 1.4214138
        %v2020 = vadd.f32 %v1988, 1.4214138
        %v2021 = vadd.f32 %v1989, 1.4214138
        %v2022 = vadd.f32 %v1990, 1.4214138
        %v2023 = vadd.f32 %v1991, 1.4214138
        %v2024 = vadd.f32 %v1992, 1.4214138
        %v2025 = vadd.f32 %v1993, 1.4214138
        %v2026 = vadd.f32 %v1994, 1.4214138
        %v2027 = vadd.f32 %v1995, 1.4214138
        %v2028 = vadd.f32 %v1996, 1.4214138
        %v2029 = vadd.f32 %v1997, 1.4214138
        %v2030 = vadd.f32 %v1998, 1.4214138
        %v2031 = vadd.f32 %v1999, 1.4214138
        %v2032 = vadd.f32 %v2000, 1.4214138
        %v2033 = vadd.f32 %v2001, 1.4214138
        %v2034 = vmul.f32 %v2002, %v1874
        %v2035 = vmul.f32 %v2003, %v1875
        %v2036 = vmul.f32 %v2004, %v1876
        %v2037 = vmul.f32 %v2005, %v1877
        %v2038 = vmul.f32 %v2006, %v1878
        %v2039 = vmul.f32 %v2007, %v1879
        %v2040 = vmul.f32 %v2008, %v1880
        %v2041 = vmul.f32 %v2009, %v1881
        %v2042 = vmul.f32 %v2010, %v1882
        %v2043 = vmul.f32 %v2011, %v1883
        %v2044 = vmul.f32 %v2012, %v1884
        %v2045 = vmul.f32 %v2013, %v1885
        %v2046 = vmul.f32 %v2014, %v1886
        %v2047 = vmul.f32 %v2015, %v1887
        %v2048 = vmul.f32 %v2016, %v1888
        %v2049 = vmul.f32 %v2017, %v1889
        %v2050 = vmul.f32 %v2018, %v1890
        %v2051 = vmul.f32 %v2019, %v1891
        %v2052 = vmul.f32 %v2020, %v1892
        %v2053 = vmul.f32 %v2021, %v1893
        %v2054 = vmul.f32 %v2022, %v1894
        %v2055 = vmul.f32 %v2023, %v1895
        %v2056 = vmul.f32 %v2024, %v1896
        %v2057 = vmul.f32 %v2025, %v1897
        %v2058 = vmul.f32 %v2026, %v1898
        %v2059 = vmul.f32 %v2027, %v1899
        %v2060 = vmul.f32 %v2028, %v1900
        %v2061 = vmul.f32 %v2029, %v1901
        %v2062 = vmul.f32 %v2030, %v1902
        %v2063 = vmul.f32 %v2031, %v1903
        %v2064 = vmul.f32 %v2032, %v1904
        %v2065 = vmul.f32 %v2033, %v1905
        %v2066 = vsub.f32 %v2034, 0.28449672
        %v2067 = vsub.f32 %v2035, 0.28449672
        %v2068 = vsub.f32 %v2036, 0.28449672
        %v2069 = vsub.f32 %v2037, 0.28449672
        %v2070 = vsub.f32 %v2038, 0.28449672
        %v2071 = vsub.f32 %v2039, 0.28449672
        %v2072 = vsub.f32 %v2040, 0.28449672
        %v2073 = vsub.f32 %v2041, 0.28449672
        %v2074 = vsub.f32 %v2042, 0.28449672
        %v2075 = vsub.f32 %v2043, 0.28449672
        %v2076 = vsub.f32 %v2044, 0.28449672
        %v2077 = vsub.f32 %v2045, 0.28449672
        %v2078 = vsub.f32 %v2046, 0.28449672
        %v2079 = vsub.f32 %v2047, 0.28449672
        %v2080 = vsub.f32 %v2048, 0.28449672
        %v2081 = vsub.f32 %v2049, 0.28449672
        %v2082 = vsub.f32 %v2050, 0.28449672
        %v2083 = vsub.f32 %v2051, 0.28449672
        %v2084 = vsub.f32 %v2052, 0.28449672
        %v2085 = vsub.f32 %v2053, 0.28449672
        %v2086 = vsub.f32 %v2054, 0.28449672
        %v2087 = vsub.f32 %v2055, 0.28449672
        %v2088 = vsub.f32 %v2056, 0.28449672
        %v2089 = vsub.f32 %v2057, 0.28449672
        %v2090 = vsub.f32 %v2058, 0.28449672
        %v2091 = vsub.f32 %v2059, 0.28449672
        %v2092 = vsub.f32 %v2060, 0.28449672
        %v2093 = vsub.f32 %v2061, 0.28449672
        %v2094 = vsub.f32 %v2062, 0.28449672
        %v2095 = vsub.f32 %v2063, 0.28449672
        %v2096 = vsub.f32 %v2064, 0.28449672
        %v2097 = vsub.f32 %v2065, 0.28449672
        %v2098 = vmul.f32 %v2066, %v1874
        %v2099 = vmul.f32 %v2067, %v1875
        %v2100 = vmul.f32 %v2068, %v1876
        %v2101 = vmul.f32 %v2069, %v1877
        %v2102 = vmul.f32 %v2070, %v1878
        %v2103 = vmul.f32 %v2071, %v1879
        %v2104 = vmul.f32 %v2072, %v1880
        %v2105 = vmul.f32 %v2073, %v1881
        %v2106 = vmul.f32 %v2074, %v1882
        %v2107 = vmul.f32 %v2075, %v1883
        %v2108 = vmul.f32 %v2076, %v1884
        %v2109 = vmul.f32 %v2077, %v1885
        %v2110 = vmul.f32 %v2078, %v1886
        %v2111 = vmul.f32 %v2079, %v1887
        %v2112 = vmul.f32 %v2080, %v1888
        %v2113 = vmul.f32 %v2081, %v1889
        %v2114 = vmul.f32 %v2082, %v1890
        %v2115 = vmul.f32 %v2083, %v1891
        %v2116 = vmul.f32 %v2084, %v1892
        %v2117 = vmul.f32 %v2085, %v1893
        %v2118 = vmul.f32 %v2086, %v1894
        %v2119 = vmul.f32 %v2087, %v1895
        %v2120 = vmul.f32 %v2088, %v1896
        %v2121 = vmul.f32 %v2089, %v1897
        %v2122 = vmul.f32 %v2090, %v1898
        %v2123 = vmul.f32 %v2091, %v1899
        %v2124 = vmul.f32 %v2092, %v1900
        %v2125 = vmul.f32 %v2093, %v1901
        %v2126 = vmul.f32 %v2094, %v1902
        %v2127 = vmul.f32 %v2095, %v1903
        %v2128 = vmul.f32 %v2096, %v1904
        %v2129 = vmul.f32 %v2097, %v1905
        %v2130 = vadd.f32 %v2098, 0.2548296
        %v2131 = vadd.f32 %v2099, 0.2548296
        %v2132 = vadd.f32 %v2100, 0.2548296
        %v2133 = vadd.f32 %v2101, 0.2548296
        %v2134 = vadd.f32 %v2102, 0.2548296
        %v2135 = vadd.f32 %v2103, 0.2548296
        %v2136 = vadd.f32 %v2104, 0.2548296
        %v2137 = vadd.f32 %v2105, 0.2548296
        %v2138 = vadd.f32 %v2106, 0.2548296
        %v2139 = vadd.f32 %v2107, 0.2548296
        %v2140 = vadd.f32 %v2108, 0.2548296
        %v2141 = vadd.f32 %v2109, 0.2548296
        %v2142 = vadd.f32 %v2110, 0.2548296
        %v2143 = vadd.f32 %v2111, 0.2548296
        %v2144 = vadd.f32 %v2112, 0.2548296
        %v2145 = vadd.f32 %v2113, 0.2548296
        %v2146 = vadd.f32 %v2114, 0.2548296
        %v2147 = vadd.f32 %v2115, 0.2548296
        %v2148 = vadd.f32 %v2116, 0.2548296
        %v2149 = vadd.f32 %v2117, 0.2548296
        %v2150 = vadd.f32 %v2118, 0.2548296
        %v2151 = vadd.f32 %v2119, 0.2548296
        %v2152 = vadd.f32 %v2120, 0.2548296
        %v2153 = vadd.f32 %v2121, 0.2548296
        %v2154 = vadd.f32 %v2122, 0.2548296
        %v2155 = vadd.f32 %v2123, 0.2548296
        %v2156 = vadd.f32 %v2124, 0.2548296
        %v2157 = vadd.f32 %v2125, 0.2548296
        %v2158 = vadd.f32 %v2126, 0.2548296
        %v2159 = vadd.f32 %v2127, 0.2548296
        %v2160 = vadd.f32 %v2128, 0.2548296
        %v2161 = vadd.f32 %v2129, 0.2548296
        %v2162 = vmul.f32 %v2130, %v1874
        %v2163 = vmul.f32 %v2131, %v1875
        %v2164 = vmul.f32 %v2132, %v1876
        %v2165 = vmul.f32 %v2133, %v1877
        %v2166 = vmul.f32 %v2134, %v1878
        %v2167 = vmul.f32 %v2135, %v1879
        %v2168 = vmul.f32 %v2136, %v1880
        %v2169 = vmul.f32 %v2137, %v1881
        %v2170 = vmul.f32 %v2138, %v1882
        %v2171 = vmul.f32 %v2139, %v1883
        %v2172 = vmul.f32 %v2140, %v1884
        %v2173 = vmul.f32 %v2141, %v1885
        %v2174 = vmul.f32 %v2142, %v1886
        %v2175 = vmul.f32 %v2143, %v1887
        %v2176 = vmul.f32 %v2144, %v1888
        %v2177 = vmul.f32 %v2145, %v1889
        %v2178 = vmul.f32 %v2146, %v1890
        %v2179 = vmul.f32 %v2147, %v1891
        %v2180 = vmul.f32 %v2148, %v1892
        %v2181 = vmul.f32 %v2149, %v1893
        %v2182 = vmul.f32 %v2150, %v1894
        %v2183 = vmul.f32 %v2151, %v1895
        %v2184 = vmul.f32 %v2152, %v1896
        %v2185 = vmul.f32 %v2153, %v1897
        %v2186 = vmul.f32 %v2154, %v1898
        %v2187 = vmul.f32 %v2155, %v1899
        %v2188 = vmul.f32 %v2156, %v1900
        %v2189 = vmul.f32 %v2157, %v1901
        %v2190 = vmul.f32 %v2158, %v1902
        %v2191 = vmul.f32 %v2159, %v1903
        %v2192 = vmul.f32 %v2160, %v1904
        %v2193 = vmul.f32 %v2161, %v1905
        %v2194 = vsub.f32 0.0, %v1778
        %v2195 = vsub.f32 0.0, %v1779
        %v2196 = vsub.f32 0.0, %v1780
        %v2197 = vsub.f32 0.0, %v1781
        %v2198 = vsub.f32 0.0, %v1782
        %v2199 = vsub.f32 0.0, %v1783
        %v2200 = vsub.f32 0.0, %v1784
        %v2201 = vsub.f32 0.0, %v1785
        %v2202 = vsub.f32 0.0, %v1786
        %v2203 = vsub.f32 0.0, %v1787
        %v2204 = vsub.f32 0.0, %v1788
        %v2205 = vsub.f32 0.0, %v1789
        %v2206 = vsub.f32 0.0, %v1790
        %v2207 = vsub.f32 0.0, %v1791
        %v2208 = vsub.f32 0.0, %v1792
        %v2209 = vsub.f32 0.0, %v1793
        %v2210 = vsub.f32 0.0, %v1794
        %v2211 = vsub.f32 0.0, %v1795
        %v2212 = vsub.f32 0.0, %v1796
        %v2213 = vsub.f32 0.0, %v1797
        %v2214 = vsub.f32 0.0, %v1798
        %v2215 = vsub.f32 0.0, %v1799
        %v2216 = vsub.f32 0.0, %v1800
        %v2217 = vsub.f32 0.0, %v1801
        %v2218 = vsub.f32 0.0, %v1802
        %v2219 = vsub.f32 0.0, %v1803
        %v2220 = vsub.f32 0.0, %v1804
        %v2221 = vsub.f32 0.0, %v1805
        %v2222 = vsub.f32 0.0, %v1806
        %v2223 = vsub.f32 0.0, %v1807
        %v2224 = vsub.f32 0.0, %v1808
        %v2225 = vsub.f32 0.0, %v1809
        %v2226 = vmul.f32 %v2194, %v1778
        %v2227 = vmul.f32 %v2195, %v1779
        %v2228 = vmul.f32 %v2196, %v1780
        %v2229 = vmul.f32 %v2197, %v1781
        %v2230 = vmul.f32 %v2198, %v1782
        %v2231 = vmul.f32 %v2199, %v1783
        %v2232 = vmul.f32 %v2200, %v1784
        %v2233 = vmul.f32 %v2201, %v1785
        %v2234 = vmul.f32 %v2202, %v1786
        %v2235 = vmul.f32 %v2203, %v1787
        %v2236 = vmul.f32 %v2204, %v1788
        %v2237 = vmul.f32 %v2205, %v1789
        %v2238 = vmul.f32 %v2206, %v1790
        %v2239 = vmul.f32 %v2207, %v1791
        %v2240 = vmul.f32 %v2208, %v1792
        %v2241 = vmul.f32 %v2209, %v1793
        %v2242 = vmul.f32 %v2210, %v1794
        %v2243 = vmul.f32 %v2211, %v1795
        %v2244 = vmul.f32 %v2212, %v1796
        %v2245 = vmul.f32 %v2213, %v1797
        %v2246 = vmul.f32 %v2214, %v1798
        %v2247 = vmul.f32 %v2215, %v1799
        %v2248 = vmul.f32 %v2216, %v1800
        %v2249 = vmul.f32 %v2217, %v1801
        %v2250 = vmul.f32 %v2218, %v1802
        %v2251 = vmul.f32 %v2219, %v1803
        %v2252 = vmul.f32 %v2220, %v1804
        %v2253 = vmul.f32 %v2221, %v1805
        %v2254 = vmul.f32 %v2222, %v1806
        %v2255 = vmul.f32 %v2223, %v1807
        %v2256 = vmul.f32 %v2224, %v1808
        %v2257 = vmul.f32 %v2225, %v1809
        %v2258 = vmul.f32 %v2226, 1.442695
        %v2259 = vpow.pop %v2258
        %v2260 = vmul.f32 %v2227, 1.442695
        %v2261 = vpow.pop %v2260
        %v2262 = vmul.f32 %v2228, 1.442695
        %v2263 = vpow.pop %v2262
        %v2264 = vmul.f32 %v2229, 1.442695
        %v2265 = vpow.pop %v2264
        %v2266 = vmul.f32 %v2230, 1.442695
        %v2267 = vpow.pop %v2266
        %v2268 = vmul.f32 %v2231, 1.442695
        %v2269 = vpow.pop %v2268
        %v2270 = vmul.f32 %v2232, 1.442695
        %v2271 = vpow.pop %v2270
        %v2272 = vmul.f32 %v2233, 1.442695
        %v2273 = vpow.pop %v2272
        %v2274 = vmul.f32 %v2234, 1.442695
        %v2275 = vpow.pop %v2274
        %v2276 = vmul.f32 %v2235, 1.442695
        %v2277 = vpow.pop %v2276
        %v2278 = vmul.f32 %v2236, 1.442695
        %v2279 = vpow.pop %v2278
        %v2280 = vmul.f32 %v2237, 1.442695
        %v2281 = vpow.pop %v2280
        %v2282 = vmul.f32 %v2238, 1.442695
        %v2283 = vpow.pop %v2282
        %v2284 = vmul.f32 %v2239, 1.442695
        %v2285 = vpow.pop %v2284
        %v2286 = vmul.f32 %v2240, 1.442695
        %v2287 = vpow.pop %v2286
        %v2288 = vmul.f32 %v2241, 1.442695
        %v2289 = vpow.pop %v2288
        %v2290 = vmul.f32 %v2242, 1.442695
        %v2291 = vpow.pop %v2290
        %v2292 = vmul.f32 %v2243, 1.442695
        %v2293 = vpow.pop %v2292
        %v2294 = vmul.f32 %v2244, 1.442695
        %v2295 = vpow.pop %v2294
        %v2296 = vmul.f32 %v2245, 1.442695
        %v2297 = vpow.pop %v2296
        %v2298 = vmul.f32 %v2246, 1.442695
        %v2299 = vpow.pop %v2298
        %v2300 = vmul.f32 %v2247, 1.442695
        %v2301 = vpow.pop %v2300
        %v2302 = vmul.f32 %v2248, 1.442695
        %v2303 = vpow.pop %v2302
        %v2304 = vmul.f32 %v2249, 1.442695
        %v2305 = vpow.pop %v2304
        %v2306 = vmul.f32 %v2250, 1.442695
        %v2307 = vpow.pop %v2306
        %v2308 = vmul.f32 %v2251, 1.442695
        %v2309 = vpow.pop %v2308
        %v2310 = vmul.f32 %v2252, 1.442695
        %v2311 = vpow.pop %v2310
        %v2312 = vmul.f32 %v2253, 1.442695
        %v2313 = vpow.pop %v2312
        %v2314 = vmul.f32 %v2254, 1.442695
        %v2315 = vpow.pop %v2314
        %v2316 = vmul.f32 %v2255, 1.442695
        %v2317 = vpow.pop %v2316
        %v2318 = vmul.f32 %v2256, 1.442695
        %v2319 = vpow.pop %v2318
        %v2320 = vmul.f32 %v2257, 1.442695
        %v2321 = vpow.pop %v2320
        %v2322 = vmul.f32 %v2162, %v2259
        %v2323 = vmul.f32 %v2163, %v2261
        %v2324 = vmul.f32 %v2164, %v2263
        %v2325 = vmul.f32 %v2165, %v2265
        %v2326 = vmul.f32 %v2166, %v2267
        %v2327 = vmul.f32 %v2167, %v2269
        %v2328 = vmul.f32 %v2168, %v2271
        %v2329 = vmul.f32 %v2169, %v2273
        %v2330 = vmul.f32 %v2170, %v2275
        %v2331 = vmul.f32 %v2171, %v2277
        %v2332 = vmul.f32 %v2172, %v2279
        %v2333 = vmul.f32 %v2173, %v2281
        %v2334 = vmul.f32 %v2174, %v2283
        %v2335 = vmul.f32 %v2175, %v2285
        %v2336 = vmul.f32 %v2176, %v2287
        %v2337 = vmul.f32 %v2177, %v2289
        %v2338 = vmul.f32 %v2178, %v2291
        %v2339 = vmul.f32 %v2179, %v2293
        %v2340 = vmul.f32 %v2180, %v2295
        %v2341 = vmul.f32 %v2181, %v2297
        %v2342 = vmul.f32 %v2182, %v2299
        %v2343 = vmul.f32 %v2183, %v2301
        %v2344 = vmul.f32 %v2184, %v2303
        %v2345 = vmul.f32 %v2185, %v2305
        %v2346 = vmul.f32 %v2186, %v2307
        %v2347 = vmul.f32 %v2187, %v2309
        %v2348 = vmul.f32 %v2188, %v2311
        %v2349 = vmul.f32 %v2189, %v2313
        %v2350 = vmul.f32 %v2190, %v2315
        %v2351 = vmul.f32 %v2191, %v2317
        %v2352 = vmul.f32 %v2192, %v2319
        %v2353 = vmul.f32 %v2193, %v2321
        %v2354 = vsub.f32 1.0, %v2322
        %v2355 = vsub.f32 1.0, %v2323
        %v2356 = vsub.f32 1.0, %v2324
        %v2357 = vsub.f32 1.0, %v2325
        %v2358 = vsub.f32 1.0, %v2326
        %v2359 = vsub.f32 1.0, %v2327
        %v2360 = vsub.f32 1.0, %v2328
        %v2361 = vsub.f32 1.0, %v2329
        %v2362 = vsub.f32 1.0, %v2330
        %v2363 = vsub.f32 1.0, %v2331
        %v2364 = vsub.f32 1.0, %v2332
        %v2365 = vsub.f32 1.0, %v2333
        %v2366 = vsub.f32 1.0, %v2334
        %v2367 = vsub.f32 1.0, %v2335
        %v2368 = vsub.f32 1.0, %v2336
        %v2369 = vsub.f32 1.0, %v2337
        %v2370 = vsub.f32 1.0, %v2338
        %v2371 = vsub.f32 1.0, %v2339
        %v2372 = vsub.f32 1.0, %v2340
        %v2373 = vsub.f32 1.0, %v2341
        %v2374 = vsub.f32 1.0, %v2342
        %v2375 = vsub.f32 1.0, %v2343
        %v2376 = vsub.f32 1.0, %v2344
        %v2377 = vsub.f32 1.0, %v2345
        %v2378 = vsub.f32 1.0, %v2346
        %v2379 = vsub.f32 1.0, %v2347
        %v2380 = vsub.f32 1.0, %v2348
        %v2381 = vsub.f32 1.0, %v2349
        %v2382 = vsub.f32 1.0, %v2350
        %v2383 = vsub.f32 1.0, %v2351
        %v2384 = vsub.f32 1.0, %v2352
        %v2385 = vsub.f32 1.0, %v2353
        %vm2386 = vcmp.ge.f32.partialorder %v1746, 0.0
        %vm2387 = vcmp.ge.f32.partialorder %v1747, 0.0
        %vm2388 = vcmp.ge.f32.partialorder %v1748, 0.0
        %vm2389 = vcmp.ge.f32.partialorder %v1749, 0.0
        %vm2390 = vcmp.ge.f32.partialorder %v1750, 0.0
        %vm2391 = vcmp.ge.f32.partialorder %v1751, 0.0
        %vm2392 = vcmp.ge.f32.partialorder %v1752, 0.0
        %vm2393 = vcmp.ge.f32.partialorder %v1753, 0.0
        %vm2394 = vcmp.ge.f32.partialorder %v1754, 0.0
        %vm2395 = vcmp.ge.f32.partialorder %v1755, 0.0
        %vm2396 = vcmp.ge.f32.partialorder %v1756, 0.0
        %vm2397 = vcmp.ge.f32.partialorder %v1757, 0.0
        %vm2398 = vcmp.ge.f32.partialorder %v1758, 0.0
        %vm2399 = vcmp.ge.f32.partialorder %v1759, 0.0
        %vm2400 = vcmp.ge.f32.partialorder %v1760, 0.0
        %vm2401 = vcmp.ge.f32.partialorder %v1761, 0.0
        %vm2402 = vcmp.ge.f32.partialorder %v1762, 0.0
        %vm2403 = vcmp.ge.f32.partialorder %v1763, 0.0
        %vm2404 = vcmp.ge.f32.partialorder %v1764, 0.0
        %vm2405 = vcmp.ge.f32.partialorder %v1765, 0.0
        %vm2406 = vcmp.ge.f32.partialorder %v1766, 0.0
        %vm2407 = vcmp.ge.f32.partialorder %v1767, 0.0
        %vm2408 = vcmp.ge.f32.partialorder %v1768, 0.0
        %vm2409 = vcmp.ge.f32.partialorder %v1769, 0.0
        %vm2410 = vcmp.ge.f32.partialorder %v1770, 0.0
        %vm2411 = vcmp.ge.f32.partialorder %v1771, 0.0
        %vm2412 = vcmp.ge.f32.partialorder %v1772, 0.0
        %vm2413 = vcmp.ge.f32.partialorder %v1773, 0.0
        %vm2414 = vcmp.ge.f32.partialorder %v1774, 0.0
        %vm2415 = vcmp.ge.f32.partialorder %v1775, 0.0
        %vm2416 = vcmp.ge.f32.partialorder %v1776, 0.0
        %vm2417 = vcmp.ge.f32.partialorder %v1777, 0.0
        %v2418 = vsub.f32 0.0, %v2354
        %v2419 = vsub.f32 0.0, %v2355
        %v2420 = vsub.f32 0.0, %v2356
        %v2421 = vsub.f32 0.0, %v2357
        %v2422 = vsub.f32 0.0, %v2358
        %v2423 = vsub.f32 0.0, %v2359
        %v2424 = vsub.f32 0.0, %v2360
        %v2425 = vsub.f32 0.0, %v2361
        %v2426 = vsub.f32 0.0, %v2362
        %v2427 = vsub.f32 0.0, %v2363
        %v2428 = vsub.f32 0.0, %v2364
        %v2429 = vsub.f32 0.0, %v2365
        %v2430 = vsub.f32 0.0, %v2366
        %v2431 = vsub.f32 0.0, %v2367
        %v2432 = vsub.f32 0.0, %v2368
        %v2433 = vsub.f32 0.0, %v2369
        %v2434 = vsub.f32 0.0, %v2370
        %v2435 = vsub.f32 0.0, %v2371
        %v2436 = vsub.f32 0.0, %v2372
        %v2437 = vsub.f32 0.0, %v2373
        %v2438 = vsub.f32 0.0, %v2374
        %v2439 = vsub.f32 0.0, %v2375
        %v2440 = vsub.f32 0.0, %v2376
        %v2441 = vsub.f32 0.0, %v2377
        %v2442 = vsub.f32 0.0, %v2378
        %v2443 = vsub.f32 0.0, %v2379
        %v2444 = vsub.f32 0.0, %v2380
        %v2445 = vsub.f32 0.0, %v2381
        %v2446 = vsub.f32 0.0, %v2382
        %v2447 = vsub.f32 0.0, %v2383
        %v2448 = vsub.f32 0.0, %v2384
        %v2449 = vsub.f32 0.0, %v2385
        %v2450 = vsel %vm2386, %v2354, %v2418
        %v2451 = vsel %vm2387, %v2355, %v2419
        %v2452 = vsel %vm2388, %v2356, %v2420
        %v2453 = vsel %vm2389, %v2357, %v2421
        %v2454 = vsel %vm2390, %v2358, %v2422
        %v2455 = vsel %vm2391, %v2359, %v2423
        %v2456 = vsel %vm2392, %v2360, %v2424
        %v2457 = vsel %vm2393, %v2361, %v2425
        %v2458 = vsel %vm2394, %v2362, %v2426
        %v2459 = vsel %vm2395, %v2363, %v2427
        %v2460 = vsel %vm2396, %v2364, %v2428
        %v2461 = vsel %vm2397, %v2365, %v2429
        %v2462 = vsel %vm2398, %v2366, %v2430
        %v2463 = vsel %vm2399, %v2367, %v2431
        %v2464 = vsel %vm2400, %v2368, %v2432
        %v2465 = vsel %vm2401, %v2369, %v2433
        %v2466 = vsel %vm2402, %v2370, %v2434
        %v2467 = vsel %vm2403, %v2371, %v2435
        %v2468 = vsel %vm2404, %v2372, %v2436
        %v2469 = vsel %vm2405, %v2373, %v2437
        %v2470 = vsel %vm2406, %v2374, %v2438
        %v2471 = vsel %vm2407, %v2375, %v2439
        %v2472 = vsel %vm2408, %v2376, %v2440
        %v2473 = vsel %vm2409, %v2377, %v2441
        %v2474 = vsel %vm2410, %v2378, %v2442
        %v2475 = vsel %vm2411, %v2379, %v2443
        %v2476 = vsel %vm2412, %v2380, %v2444
        %v2477 = vsel %vm2413, %v2381, %v2445
        %v2478 = vsel %vm2414, %v2382, %v2446
        %v2479 = vsel %vm2415, %v2383, %v2447
        %v2480 = vsel %vm2416, %v2384, %v2448
        %v2481 = vsel %vm2417, %v2385, %v2449
        %v2482 = vadd.f32 %v2450, 1.0
        %v2483 = vadd.f32 %v2451, 1.0
        %v2484 = vadd.f32 %v2452, 1.0
        %v2485 = vadd.f32 %v2453, 1.0
        %v2486 = vadd.f32 %v2454, 1.0
        %v2487 = vadd.f32 %v2455, 1.0
        %v2488 = vadd.f32 %v2456, 1.0
        %v2489 = vadd.f32 %v2457, 1.0
        %v2490 = vadd.f32 %v2458, 1.0
        %v2491 = vadd.f32 %v2459, 1.0
        %v2492 = vadd.f32 %v2460, 1.0
        %v2493 = vadd.f32 %v2461, 1.0
        %v2494 = vadd.f32 %v2462, 1.0
        %v2495 = vadd.f32 %v2463, 1.0
        %v2496 = vadd.f32 %v2464, 1.0
        %v2497 = vadd.f32 %v2465, 1.0
        %v2498 = vadd.f32 %v2466, 1.0
        %v2499 = vadd.f32 %v2467, 1.0
        %v2500 = vadd.f32 %v2468, 1.0
        %v2501 = vadd.f32 %v2469, 1.0
        %v2502 = vadd.f32 %v2470, 1.0
        %v2503 = vadd.f32 %v2471, 1.0
        %v2504 = vadd.f32 %v2472, 1.0
        %v2505 = vadd.f32 %v2473, 1.0
        %v2506 = vadd.f32 %v2474, 1.0
        %v2507 = vadd.f32 %v2475, 1.0
        %v2508 = vadd.f32 %v2476, 1.0
        %v2509 = vadd.f32 %v2477, 1.0
        %v2510 = vadd.f32 %v2478, 1.0
        %v2511 = vadd.f32 %v2479, 1.0
        %v2512 = vadd.f32 %v2480, 1.0
        %v2513 = vadd.f32 %v2481, 1.0
        %v2514 = vmul.f32 %v1714, %v2482
        %v2515 = vmul.f32 %v1715, %v2483
        %v2516 = vmul.f32 %v1716, %v2484
        %v2517 = vmul.f32 %v1717, %v2485
        %v2518 = vmul.f32 %v1718, %v2486
        %v2519 = vmul.f32 %v1719, %v2487
        %v2520 = vmul.f32 %v1720, %v2488
        %v2521 = vmul.f32 %v1721, %v2489
        %v2522 = vmul.f32 %v1722, %v2490
        %v2523 = vmul.f32 %v1723, %v2491
        %v2524 = vmul.f32 %v1724, %v2492
        %v2525 = vmul.f32 %v1725, %v2493
        %v2526 = vmul.f32 %v1726, %v2494
        %v2527 = vmul.f32 %v1727, %v2495
        %v2528 = vmul.f32 %v1728, %v2496
        %v2529 = vmul.f32 %v1729, %v2497
        %v2530 = vmul.f32 %v1730, %v2498
        %v2531 = vmul.f32 %v1731, %v2499
        %v2532 = vmul.f32 %v1732, %v2500
        %v2533 = vmul.f32 %v1733, %v2501
        %v2534 = vmul.f32 %v1734, %v2502
        %v2535 = vmul.f32 %v1735, %v2503
        %v2536 = vmul.f32 %v1736, %v2504
        %v2537 = vmul.f32 %v1737, %v2505
        %v2538 = vmul.f32 %v1738, %v2506
        %v2539 = vmul.f32 %v1739, %v2507
        %v2540 = vmul.f32 %v1740, %v2508
        %v2541 = vmul.f32 %v1741, %v2509
        %v2542 = vmul.f32 %v1742, %v2510
        %v2543 = vmul.f32 %v1743, %v2511
        %v2544 = vmul.f32 %v1744, %v2512
        %v2545 = vmul.f32 %v1745, %v2513
        %v2546 = vpack.c.bf16 %v2515, %v2514
        %v2547 = vpack.c.bf16 %v2517, %v2516
        %v2548 = vpack.c.bf16 %v2519, %v2518
        %v2549 = vpack.c.bf16 %v2521, %v2520
        %v2550 = vpack.c.bf16 %v2523, %v2522
        %v2551 = vpack.c.bf16 %v2525, %v2524
        %v2552 = vpack.c.bf16 %v2527, %v2526
        %v2553 = vpack.c.bf16 %v2529, %v2528
        %v2554 = vpack.c.bf16 %v2531, %v2530
        %v2555 = vpack.c.bf16 %v2533, %v2532
        %v2556 = vpack.c.bf16 %v2535, %v2534
        %v2557 = vpack.c.bf16 %v2537, %v2536
        %v2558 = vpack.c.bf16 %v2539, %v2538
        %v2559 = vpack.c.bf16 %v2541, %v2540
        %v2560 = vpack.c.bf16 %v2543, %v2542
        %v2561 = vpack.c.bf16 %v2545, %v2544
        %v2562 = vld [vmem:[#allocation12] sm:$0xf]
        %v2563 = vld [vmem:[#allocation12 + $0x4] sm:$0xf]
        %v2564 = vld [vmem:[#allocation12 + $0x8] sm:$0xf]
        %v2565 = vld [vmem:[#allocation12 + $0xc] sm:$0xf]
        %v2566 = vld [vmem:[#allocation12 + $0x10] sm:$0xf]
        %v2567 = vld [vmem:[#allocation12 + $0x14] sm:$0xf]
        %v2568 = vld [vmem:[#allocation12 + $0x18] sm:$0xf]
        %v2569 = vld [vmem:[#allocation12 + $0x1c] sm:$0xf]
        %v2570 = vld [vmem:[#allocation12 + $0x20] sm:$0xf]
        %v2571 = vld [vmem:[#allocation12 + $0x24] sm:$0xf]
        %v2572 = vld [vmem:[#allocation12 + $0x28] sm:$0xf]
        %v2573 = vld [vmem:[#allocation12 + $0x2c] sm:$0xf]
        %v2574 = vld [vmem:[#allocation12 + $0x30] sm:$0xf]
        %v2575 = vld [vmem:[#allocation12 + $0x34] sm:$0xf]
        %v2576 = vld [vmem:[#allocation12 + $0x38] sm:$0xf]
        %v2577 = vld [vmem:[#allocation12 + $0x3c] sm:$0xf]
        %v2578 = vld [vmem:[#allocation14] sm:$0x1]
        %v2580 = vlaneseq
        %v2581 = vshrl.u32 %v2580, 7
        %v2582 = vsub.s32 0, %v2581
        %v2583 = vrot.slane %v2578, %v2582
        %v2601 = vunpack.c.l.b16 %v2562
        %v2602 = vunpack.c.l.b16 %v2563
        %v2603 = vunpack.c.l.b16 %v2564
        %v2604 = vunpack.c.l.b16 %v2565
        %v2605 = vunpack.c.l.b16 %v2566
        %v2606 = vunpack.c.l.b16 %v2567
        %v2607 = vunpack.c.l.b16 %v2568
        %v2608 = vunpack.c.l.b16 %v2569
        %v2609 = vunpack.c.l.b16 %v2570
        %v2610 = vunpack.c.l.b16 %v2571
        %v2611 = vunpack.c.l.b16 %v2572
        %v2612 = vunpack.c.l.b16 %v2573
        %v2613 = vunpack.c.l.b16 %v2574
        %v2614 = vunpack.c.l.b16 %v2575
        %v2615 = vunpack.c.l.b16 %v2576
        %v2616 = vunpack.c.l.b16 %v2577
        %v2617 = vpack.c.b16 %v2602, %v2601
        %v2618 = vpack.c.b16 %v2604, %v2603
        %v2619 = vpack.c.b16 %v2606, %v2605
        %v2620 = vpack.c.b16 %v2608, %v2607
        %v2621 = vpack.c.b16 %v2610, %v2609
        %v2622 = vpack.c.b16 %v2612, %v2611
        %v2623 = vpack.c.b16 %v2614, %v2613
        %v2624 = vpack.c.b16 %v2616, %v2615
        %2633 = vmatprep.subr.bf16.mxu0 0
        %2634 = vmatpush1.bf16.msra.mxu0 %v2617
        %2635 = vmatprep.subr.bf16.mxu0 0
        %2636 = vmatpush1.bf16.msra.mxu0 %v2618
        %2637 = vmatprep.subr.bf16.mxu0 0
        %2638 = vmatpush1.bf16.msra.mxu0 %v2619
        %2639 = vmatprep.subr.bf16.mxu0 0
        %2640 = vmatpush1.bf16.msra.mxu0 %v2620
        %2641 = vmatprep.subr.bf16.mxu0 0
        %2642 = vmatpush1.bf16.msra.mxu0 %v2621
        %2643 = vmatprep.subr.bf16.mxu0 0
        %2644 = vmatpush1.bf16.msra.mxu0 %v2622
        %2645 = vmatprep.subr.bf16.mxu0 0
        %2646 = vmatpush1.bf16.msra.mxu0 %v2623
        %2647 = vmatprep.subr.bf16.mxu0 0
        %2648 = vmatpush1.bf16.msra.mxu0 %v2624
        %2649 = vmatprep.subr.bf16.mxu0 0
        %2650 = vmatpush1.bf16.msra.mxu0 0
        %2651 = vmatprep.subr.bf16.mxu0 0
        %2652 = vmatpush1.bf16.msra.mxu0 0
        %2653 = vmatprep.subr.bf16.mxu0 0
        %2654 = vmatpush1.bf16.msra.mxu0 0
        %2655 = vmatprep.subr.bf16.mxu0 0
        %2656 = vmatpush1.bf16.msra.mxu0 0
        %2657 = vmatprep.subr.bf16.mxu0 0
        %2658 = vmatpush1.bf16.msra.mxu0 0
        %2659 = vmatprep.subr.bf16.mxu0 0
        %2660 = vmatpush1.bf16.msra.mxu0 0
        %2661 = vmatprep.subr.bf16.mxu0 0
        %2662 = vmatpush1.bf16.msra.mxu0 0
        %2663 = vmatprep.subr.bf16.mxu0 0
        %2664 = vmatpush1.bf16.msra.mxu0 0
        %2665 = vmatprep.mubr.bf16.mxu0 0
        %2666 = vmatmul.mubr.bf16.gmra.mrb[0].mxu0 %v2546
        %v2667 = vpop.f32.mrb[0].mxu0
        %v2668 = vadd.f32 %v2583, %v2667
        %v2669 = vpop.f32.mrb[0].mxu0
        %v2670 = vpop.f32.mrb[0].mxu0
        %v2671 = vadd.f32 %v2583, %v2670
        %v2672 = vpop.f32.mrb[0].mxu0
        %2673 = vmatprep.mubr.bf16.mxu0 0
        %2674 = vmatmul.mubr.bf16.gmra.mrb[0].mxu0 %v2547
        %v2675 = vpop.f32.mrb[0].mxu0
        %v2676 = vadd.f32 %v2583, %v2675
        %v2677 = vpop.f32.mrb[0].mxu0
        %v2678 = vpop.f32.mrb[0].mxu0
        %v2679 = vadd.f32 %v2583, %v2678
        %v2680 = vpop.f32.mrb[0].mxu0
        %2681 = vmatprep.mubr.bf16.mxu0 0
        %2682 = vmatmul.mubr.bf16.gmra.mrb[0].mxu0 %v2548
        %v2683 = vpop.f32.mrb[0].mxu0
        %v2684 = vadd.f32 %v2583, %v2683
        %v2685 = vpop.f32.mrb[0].mxu0
        %v2686 = vpop.f32.mrb[0].mxu0
        %v2687 = vadd.f32 %v2583, %v2686
        %v2688 = vpop.f32.mrb[0].mxu0
        %2689 = vmatprep.mubr.bf16.mxu0 0
        %2690 = vmatmul.mubr.bf16.gmra.mrb[0].mxu0 %v2549
        %v2691 = vpop.f32.mrb[0].mxu0
        %v2692 = vadd.f32 %v2583, %v2691
        %v2693 = vpop.f32.mrb[0].mxu0
        %v2694 = vpop.f32.mrb[0].mxu0
        %v2695 = vadd.f32 %v2583, %v2694
        %v2696 = vpop.f32.mrb[0].mxu0
        %2697 = vmatprep.mubr.bf16.mxu0 0
        %2698 = vmatmul.mubr.bf16.gmra.mrb[0].mxu0 %v2550
        %v2699 = vpop.f32.mrb[0].mxu0
        %v2700 = vadd.f32 %v2583, %v2699
        %v2701 = vpop.f32.mrb[0].mxu0
        %v2702 = vpop.f32.mrb[0].mxu0
        %v2703 = vadd.f32 %v2583, %v2702
        %v2704 = vpop.f32.mrb[0].mxu0
        %2705 = vmatprep.mubr.bf16.mxu0 0
        %2706 = vmatmul.mubr.bf16.gmra.mrb[0].mxu0 %v2551
        %v2707 = vpop.f32.mrb[0].mxu0
        %v2708 = vadd.f32 %v2583, %v2707
        %v2709 = vpop.f32.mrb[0].mxu0
        %v2710 = vpop.f32.mrb[0].mxu0
        %v2711 = vadd.f32 %v2583, %v2710
        %v2712 = vpop.f32.mrb[0].mxu0
        %2713 = vmatprep.mubr.bf16.mxu0 0
        %2714 = vmatmul.mubr.bf16.gmra.mrb[0].mxu0 %v2552
        %v2715 = vpop.f32.mrb[0].mxu0
        %v2716 = vadd.f32 %v2583, %v2715
        %v2717 = vpop.f32.mrb[0].mxu0
        %v2718 = vpop.f32.mrb[0].mxu0
        %v2719 = vadd.f32 %v2583, %v2718
        %v2720 = vpop.f32.mrb[0].mxu0
        %2721 = vmatprep.mubr.bf16.mxu0 0
        %2722 = vmatmul.mubr.bf16.gmra.mrb[0].mxu0 %v2553
        %v2723 = vpop.f32.mrb[0].mxu0
        %v2724 = vadd.f32 %v2583, %v2723
        %v2725 = vpop.f32.mrb[0].mxu0
        %v2726 = vpop.f32.mrb[0].mxu0
        %v2727 = vadd.f32 %v2583, %v2726
        %v2728 = vpop.f32.mrb[0].mxu0
        %2729 = vmatprep.mubr.bf16.mxu0 0
        %2730 = vmatmul.mubr.bf16.gmra.mrb[0].mxu0 %v2554
        %v2731 = vpop.f32.mrb[0].mxu0
        %v2732 = vadd.f32 %v2583, %v2731
        %v2733 = vpop.f32.mrb[0].mxu0
        %v2734 = vpop.f32.mrb[0].mxu0
        %v2735 = vadd.f32 %v2583, %v2734
        %v2736 = vpop.f32.mrb[0].mxu0
        %2737 = vmatprep.mubr.bf16.mxu0 0
        %2738 = vmatmul.mubr.bf16.gmra.mrb[0].mxu0 %v2555
        %v2739 = vpop.f32.mrb[0].mxu0
        %v2740 = vadd.f32 %v2583, %v2739
        %v2741 = vpop.f32.mrb[0].mxu0
        %v2742 = vpop.f32.mrb[0].mxu0
        %v2743 = vadd.f32 %v2583, %v2742
        %v2744 = vpop.f32.mrb[0].mxu0
        %2745 = vmatprep.mubr.bf16.mxu0 0
        %2746 = vmatmul.mubr.bf16.gmra.mrb[0].mxu0 %v2556
        %v2747 = vpop.f32.mrb[0].mxu0
        %v2748 = vadd.f32 %v2583, %v2747
        %v2749 = vpop.f32.mrb[0].mxu0
        %v2750 = vpop.f32.mrb[0].mxu0
        %v2751 = vadd.f32 %v2583, %v2750
        %v2752 = vpop.f32.mrb[0].mxu0
        %2753 = vmatprep.mubr.bf16.mxu0 0
        %2754 = vmatmul.mubr.bf16.gmra.mrb[0].mxu0 %v2557
        %v2755 = vpop.f32.mrb[0].mxu0
        %v2756 = vadd.f32 %v2583, %v2755
        %v2757 = vpop.f32.mrb[0].mxu0
        %v2758 = vpop.f32.mrb[0].mxu0
        %v2759 = vadd.f32 %v2583, %v2758
        %v2760 = vpop.f32.mrb[0].mxu0
        %2761 = vmatprep.mubr.bf16.mxu0 0
        %2762 = vmatmul.mubr.bf16.gmra.mrb[0].mxu0 %v2558
        %v2763 = vpop.f32.mrb[0].mxu0
        %v2764 = vadd.f32 %v2583, %v2763
        %v2765 = vpop.f32.mrb[0].mxu0
        %v2766 = vpop.f32.mrb[0].mxu0
        %v2767 = vadd.f32 %v2583, %v2766
        %v2768 = vpop.f32.mrb[0].mxu0
        %2769 = vmatprep.mubr.bf16.mxu0 0
        %2770 = vmatmul.mubr.bf16.gmra.mrb[0].mxu0 %v2559
        %v2771 = vpop.f32.mrb[0].mxu0
        %v2772 = vadd.f32 %v2583, %v2771
        %v2773 = vpop.f32.mrb[0].mxu0
        %v2774 = vpop.f32.mrb[0].mxu0
        %v2775 = vadd.f32 %v2583, %v2774
        %v2776 = vpop.f32.mrb[0].mxu0
        %2777 = vmatprep.mubr.bf16.mxu0 0
        %2778 = vmatmul.mubr.bf16.gmra.mrb[0].mxu0 %v2560
        %v2779 = vpop.f32.mrb[0].mxu0
        %v2780 = vadd.f32 %v2583, %v2779
        %v2781 = vpop.f32.mrb[0].mxu0
        %v2782 = vpop.f32.mrb[0].mxu0
        %v2783 = vadd.f32 %v2583, %v2782
        %v2784 = vpop.f32.mrb[0].mxu0
        %2785 = vmatprep.mubr.bf16.mxu0 0
        %2786 = vmatmul.mubr.bf16.gmra.mrb[0].mxu0 %v2561
        %v2787 = vpop.f32.mrb[0].mxu0
        %v2788 = vadd.f32 %v2583, %v2787
        %v2789 = vpop.f32.mrb[0].mxu0
        %v2790 = vpop.f32.mrb[0].mxu0
        %v2791 = vadd.f32 %v2583, %v2790
        %v2792 = vpop.f32.mrb[0].mxu0
        %2793 = vdwg.mxu0
        %2794 = vst [vmem:[%s377] sm:$0xff] %v2668
        %2795 = vst [vmem:[%s377 + $0x8] sm:$0xff] %v2671
        %2796 = vst [vmem:[%s377 + $0x10] sm:$0xff] %v2676
        %2797 = vst [vmem:[%s377 + $0x18] sm:$0xff] %v2679
        %2798 = vst [vmem:[%s377 + $0x20] sm:$0xff] %v2684
        %2799 = vst [vmem:[%s377 + $0x28] sm:$0xff] %v2687
        %2800 = vst [vmem:[%s377 + $0x30] sm:$0xff] %v2692
        %2801 = vst [vmem:[%s377 + $0x38] sm:$0xff] %v2695
        %2802 = vst [vmem:[%s377 + $0x40] sm:$0xff] %v2700
        %2803 = vst [vmem:[%s377 + $0x48] sm:$0xff] %v2703
        %2804 = vst [vmem:[%s377 + $0x50] sm:$0xff] %v2708
        %2805 = vst [vmem:[%s377 + $0x58] sm:$0xff] %v2711
        %2806 = vst [vmem:[%s377 + $0x60] sm:$0xff] %v2716
        %2807 = vst [vmem:[%s377 + $0x68] sm:$0xff] %v2719
        %2808 = vst [vmem:[%s377 + $0x70] sm:$0xff] %v2724
        %2809 = vst [vmem:[%s377 + $0x78] sm:$0xff] %v2727
        %2810 = vst [vmem:[%s377 + $0x80] sm:$0xff] %v2732
        %2811 = vst [vmem:[%s377 + $0x88] sm:$0xff] %v2735
        %2812 = vst [vmem:[%s377 + $0x90] sm:$0xff] %v2740
        %2813 = vst [vmem:[%s377 + $0x98] sm:$0xff] %v2743
        %2814 = vst [vmem:[%s377 + $0xa0] sm:$0xff] %v2748
        %2815 = vst [vmem:[%s377 + $0xa8] sm:$0xff] %v2751
        %2816 = vst [vmem:[%s377 + $0xb0] sm:$0xff] %v2756
        %2817 = vst [vmem:[%s377 + $0xb8] sm:$0xff] %v2759
        %2818 = vst [vmem:[%s377 + $0xc0] sm:$0xff] %v2764
        %2819 = vst [vmem:[%s377 + $0xc8] sm:$0xff] %v2767
        %2820 = vst [vmem:[%s377 + $0xd0] sm:$0xff] %v2772
        %2821 = vst [vmem:[%s377 + $0xd8] sm:$0xff] %v2775
        %2822 = vst [vmem:[%s377 + $0xe0] sm:$0xff] %v2780
        %2823 = vst [vmem:[%s377 + $0xe8] sm:$0xff] %v2783
        %2824 = vst [vmem:[%s377 + $0xf0] sm:$0xff] %v2788
        %2825 = vst [vmem:[%s377 + $0xf8] sm:$0xff] %v2791
        %s2826 = sand.u32 %s187, 1
        %s2827 = scalar_lea.sflag [#allocation5], %s2826
        %s2828 = sand.u32 %s187, 1
        %s2829 = smul.addr %s2828, 256
        %s2830 = scalar_lea.vmem [#allocation15], %s2829
        // Predicated region
        $region77: #{tpu_custom_call.1} parent=47 // pred_check
          %p2831 = pneg %p197
        $region78: #{tpu_custom_call.1} parent=47 // pred_check_branch
          %2833 = sbr.rel (%p2831) target = $region80
        $region79: #{tpu_custom_call.1} parent=47 // pred_region
          %s2835 = ssub.s32 4096, 4096
          %2836 = vsyncadd %s2827, %s2835
          %s2837 = smul.addr %s27, 32
          %s2838 = smul.addr %s2837, 128
          %s2839 = scalar_lea.hbm %s7, %s2838
          %s2840 = sshll.u32 %s2830, 4
          %s2841 = int_to_ptr.vmem [resolvable:$true] %s2840
          %2846 = dma.vmem_to_hbm [thread:$0]  %s2841, 4096, %s2839, %s2827, 128, 128, 8
        $region80: #{tpu_custom_call.1} parent=47 // pred_fallthru
          _
      $region48: #{tpu_custom_call.1} parent=5 // pred_fallthru
        _
      %p2847 = scmp.le.s32.totalorder 2, %s22
      // Predicated region
      $region81: #{tpu_custom_call.1} parent=5 // pred_check
        %p2848 = pneg %p2847
      $region82: #{tpu_custom_call.1} parent=5 // pred_check_branch
        %2850 = sbr.rel (%p2848) target = $region84
      $region83: #{tpu_custom_call.1} parent=5 // pred_region
        %s2851 = ssub.s32 %s22, 2
        // Predicated region
        $region85: #{tpu_custom_call.1} parent=83 // pred_check
          %p2852 = pneg %p203
        $region86: #{tpu_custom_call.1} parent=83 // pred_check_branch
          %2854 = sbr.rel (%p2852) target = $region88
        $region87: #{tpu_custom_call.1} parent=83 // pred_region
          %s2855 = sand.u32 %s188, 1
          %s2856 = scalar_lea.sflag [#allocation5], %s2855
          %s2857 = sand.u32 %s188, 1
          %s2858 = smul.addr %s2857, 256
          %s2859 = scalar_lea.vmem [#allocation15], %s2858
          %2860 = dma.done %s2856, 4096
        $region88: #{tpu_custom_call.1} parent=83 // pred_fallthru
          _
      $region84: #{tpu_custom_call.1} parent=5 // pred_fallthru
        _
    $region6: #{tpu_custom_call.1} parent=1 // loop_footer
      %s26 = sadd.s32 1, %s22
    $region7: #{tpu_custom_call.1} parent=1 // loop_footer_branch
      %21 = sbr.rel target = $region3
    $region8: #{tpu_custom_call.1} parent=1 // loop_exit
      _
    %2861 = vsyncpa [#allocation4], 1
    %s2862 = scalar_lea.sflag [#allocation4], 1
    %2863 = vsyncpa %s2862, 1
    %2864 = vsyncpa [#allocation7], 1
    %2865 = vsyncpa [#allocation10], 1
    %2866 = vsyncpa [#allocation13], 1
    %2867 = vsyncpa [#allocation5], 1
    %s2868 = scalar_lea.sflag [#allocation5], 1
    %2869 = vsyncpa %s2868, 1

</llo_original>
